<compile_context>
chip_gen: v7x
topology: tpu7x:2x2x1
jax: 0.10.0
libtpu: 0.0.40
codegen_flags: <defaults>
</compile_context>

<pallas_src>
import functools

import jax
import jax.numpy as jnp
from jax.experimental import pallas as pl
from jax.experimental.pallas import tpu as pltpu

# ---------------------------------------------------------------------------
# Hyper-parameters (small, consistent with the module's forward pass)
# ---------------------------------------------------------------------------
N_CLASSES = 10
N_DOMAINS = 4
LATENT_DIM = 32
CHANNELS = 1
IMG_SIZE = 16
DROPOUT_PROB = 0.0          # -> dropout layers are not inserted (as in reference)
BATCH = 8

IMG_SHAPE = (CHANNELS, IMG_SIZE, IMG_SIZE)
IMG_FLAT = CHANNELS * IMG_SIZE * IMG_SIZE          # 256
BN_EPS = 0.8                # nn.BatchNorm1d(out_feat, 0.8) -> eps = 0.8

# (in_feat, out_feat, has_batchnorm) — mirrors the nn.Sequential structure.
LAYER_DIMS = [
    (LATENT_DIM + N_CLASSES, 128, False),
    (128, 256, True),
    (256, 256, True),
    (256, 512, True),
    (512, 512, True),
    (512, 1024, True),
    (1024, IMG_FLAT, False),
]
N_BN = sum(1 for (_fi, _fo, bn) in LAYER_DIMS if bn)        # 5

# --- packed weight buffer A (lane width 256, bf16), ordered by first use ----
EMB_PAD = 16                       # pad folded embedding tables to 16 rows
A_ELAB = 0                         # folded label_emb @ W0[:10]   (10, 128)
A_EDOM = 16                        # folded domain_emb @ W0[10:]  ( 4, 128)
A_W1 = 32                          # W1 (128, 256)
A_W2 = A_W1 + 128                  # W2 (256, 256)
A_W6 = A_W2 + 256                  # W6 (1024, 256)  (last layer; covered by A's wait)
A_ROWS = A_W6 + 1024               # 1440

# --- packed weight buffer B (lane width 512, bf16) --------------------------
B_W3 = 0                           # W3 (256, 512)
B_W4 = 256                         # W4 (512, 512)
B_ROWS = 768

# --- packed weight buffer C (lane width 1024, bf16) -------------------------
C_ROWS = 512                       # W5 (512, 1024)

# --- packed small-vector slab (f32, lane width 1024) ------------------------
VEC_ROWS = 16                      # padded to a full sublane tile
ROW_B0 = 0                         # bias of layer 0   (width 128)
ROW_B6 = 1                         # bias of last layer (width 256)
ROW_GAMMA = 2                      # BN gammas, rows 2..6
ROW_BETA = 7                       # BN betas,  rows 7..11


# ---------------------------------------------------------------------------
# Fused Generator kernel (one grid step, everything resident in VMEM)
# ---------------------------------------------------------------------------
def _generator_kernel(ld_ref, vec_ref, wa_hbm, wb_hbm, wc_hbm, o_ref,
                      wa, wb, wc, sems, *, eps):
    # ---- 1) launch the three packed weight DMAs up front; each group is
    #         waited on right before its first consuming layer ----
    cp_a = pltpu.make_async_copy(wa_hbm, wa, sems.at[0]); cp_a.start()
    cp_b = pltpu.make_async_copy(wb_hbm, wb, sems.at[1]); cp_b.start()
    cp_c = pltpu.make_async_copy(wc_hbm, wc, sems.at[2]); cp_c.start()

    bsz = ld_ref.shape[0]

    # ---- 2) embedding lookups as gather-free one-hot matmuls against the
    #         (embedding @ W0) tables folded into buffer A ----
    lab_oh = (ld_ref[:, 0:1] ==
              jax.lax.broadcasted_iota(jnp.int32, (bsz, EMB_PAD), 1)
              ).astype(jnp.bfloat16)
    dom_oh = (ld_ref[:, 1:2] ==
              jax.lax.broadcasted_iota(jnp.int32, (bsz, EMB_PAD), 1)
              ).astype(jnp.bfloat16)

    def lrelu(v):
        return jnp.maximum(v, 0.2 * v)           # LeakyReLU(0.2)

    def vrow(row, width):
        return vec_ref[row:row + 1, 0:width]      # (1, width) f32

    # ---- 3) layer 0: Linear(42 -> 128) + LeakyReLU (no BN, bias kept) ----
    cp_a.wait()
    y = (jnp.dot(lab_oh, wa[A_ELAB:A_ELAB + EMB_PAD, 0:128],
                 preferred_element_type=jnp.float32)
         + jnp.dot(dom_oh, wa[A_EDOM:A_EDOM + EMB_PAD, 0:128],
                   preferred_element_type=jnp.float32)
         + vrow(ROW_B0, 128))
    y = lrelu(y)

    # ---- 4) 5 x [Linear + BatchNorm1d(train-mode, eps) + LeakyReLU] ----
    # Linear bias omitted: train-mode BN subtracts the batch mean, which
    # exactly cancels a constant per-feature bias.
    bn_layers = [
        (wa, A_W1, 128, 256, None),   # 128 -> 256
        (wa, A_W2, 256, 256, None),   # 256 -> 256
        (wb, B_W3, 256, 512, cp_b),   # 256 -> 512   (wait on group B here)
        (wb, B_W4, 512, 512, None),   # 512 -> 512
        (wc, 0,    512, 1024, cp_c),  # 512 -> 1024  (wait on group C here)
    ]
    for j, (buf, off, fin, fout, cp) in enumerate(bn_layers):
        if cp is not None:
            cp.wait()
        y = jnp.dot(y.astype(jnp.bfloat16), buf[off:off + fin, 0:fout],
                    preferred_element_type=jnp.float32)
        mean = jnp.mean(y, axis=0, keepdims=True)
        centered = y - mean
        var = jnp.mean(centered * centered, axis=0, keepdims=True)  # two-pass
        inv = vrow(ROW_GAMMA + j, fout) * jax.lax.rsqrt(var + eps)
        y = lrelu(centered * inv + vrow(ROW_BETA + j, fout))

    # ---- 5) final Linear(1024 -> C*H*W) + Tanh ----
    y = (jnp.dot(y.astype(jnp.bfloat16), wa[A_W6:A_W6 + 1024, 0:256],
                 preferred_element_type=jnp.float32)
         + vrow(ROW_B6, 256))
    o_ref[...] = jnp.tanh(y).astype(o_ref.dtype)


# ---------------------------------------------------------------------------
# Forward pass: single fused pallas_call + final NCHW reshape
# ---------------------------------------------------------------------------
@jax.jit
def generator_forward(params, domain, labels):
    bsz = labels.shape[0]
    # one (B, 2) int32 array instead of two separate tiny inputs
    ld = jnp.stack([labels.astype(jnp.int32), domain.astype(jnp.int32)], axis=-1)

    out = pl.pallas_call(
        functools.partial(_generator_kernel, eps=BN_EPS),
        out_shape=jax.ShapeDtypeStruct((bsz, IMG_FLAT), jnp.float32),
        grid=(1,),
        in_specs=[
            pl.BlockSpec((bsz, 2), lambda i: (0, 0)),            # labels|domain
            pl.BlockSpec((VEC_ROWS, 1024), lambda i: (0, 0)),    # packed vectors
            pl.BlockSpec(memory_space=pl.ANY),                   # weight buf A (HBM)
            pl.BlockSpec(memory_space=pl.ANY),                   # weight buf B (HBM)
            pl.BlockSpec(memory_space=pl.ANY),                   # weight buf C (HBM)
        ],
        out_specs=pl.BlockSpec((bsz, IMG_FLAT), lambda i: (0, 0)),
        scratch_shapes=[
            pltpu.VMEM((A_ROWS, 256), jnp.bfloat16),
            pltpu.VMEM((B_ROWS, 512), jnp.bfloat16),
            pltpu.VMEM((C_ROWS, 1024), jnp.bfloat16),
            pltpu.SemaphoreType.DMA((3,)),
        ],
        compiler_params=pltpu.CompilerParams(
            dimension_semantics=("arbitrary",)),
    )(ld, params["vecs"], params["wA"], params["wB"], params["wC"])

    return out.reshape(bsz, *IMG_SHAPE)                          # (B, C, H, W)


# ---------------------------------------------------------------------------
# Deterministic parameter initialization + kernel-ready packing
# ---------------------------------------------------------------------------
def init_params(key):
    key, k1, k2 = jax.random.split(key, 3)
    label_emb = jax.random.normal(k1, (N_CLASSES, N_CLASSES), jnp.float32)
    domain_emb = jax.random.normal(k2, (N_DOMAINS, LATENT_DIM), jnp.float32)

    ws, bs, gammas, betas = [], [], [], []
    for (fin, fout, use_bn) in LAYER_DIMS:
        key, kw, kb = jax.random.split(key, 3)
        bound = 1.0 / float(fin) ** 0.5
        ws.append(jax.random.uniform(kw, (fin, fout), jnp.float32, -bound, bound))
        bs.append(jax.random.uniform(kb, (1, fout), jnp.float32, -bound, bound))
        if use_bn:
            gammas.append(jnp.ones((fout,), jnp.float32))   # BN weight default
            betas.append(jnp.zeros((fout,), jnp.float32))   # BN bias default

    # Exact fold of the embedding tables into the first Linear:
    #   cat(label_emb[l], domain_emb[d]) @ W0
    #     == one_hot(l) @ (label_emb @ W0[:10]) + one_hot(d) @ (domain_emb @ W0[10:])
    e_lab = label_emb @ ws[0][:N_CLASSES, :]      # (10, 128)
    e_dom = domain_emb @ ws[0][N_CLASSES:, :]     # (4, 128)

    # ---- pack bf16 weights into 3 contiguous HBM buffers (first-use order) --
    w_a = jnp.zeros((A_ROWS, 256), jnp.float32)
    w_a = w_a.at[A_ELAB:A_ELAB + N_CLASSES, :128].set(e_lab)
    w_a = w_a.at[A_EDOM:A_EDOM + N_DOMAINS, :128].set(e_dom)
    w_a = w_a.at[A_W1:A_W1 + 128, :].set(ws[1])
    w_a = w_a.at[A_W2:A_W2 + 256, :].set(ws[2])
    w_a = w_a.at[A_W6:A_W6 + 1024, :].set(ws[6])
    w_b = jnp.concatenate([ws[3], ws[4]], axis=0)             # (768, 512)
    w_c = ws[5]                                                # (512, 1024)

    # ---- pack biases / BN affine params into one lane-aligned f32 slab ------
    vecs = jnp.zeros((VEC_ROWS, 1024), jnp.float32)
    vecs = vecs.at[ROW_B0, :128].set(bs[0][0])
    vecs = vecs.at[ROW_B6, :IMG_FLAT].set(bs[6][0])
    for j, (g, bt) in enumerate(zip(gammas, betas)):
        w = g.shape[0]
        vecs = vecs.at[ROW_GAMMA + j, :w].set(g)
        vecs = vecs.at[ROW_BETA + j, :w].set(bt)
    # Biases of the BN'd Linears (bs[1:6]) are intentionally unused:
    # train-mode BatchNorm cancels any constant per-feature bias exactly.

    return dict(
        wA=w_a.astype(jnp.bfloat16),
        wB=w_b.astype(jnp.bfloat16),
        wC=w_c.astype(jnp.bfloat16),
        vecs=vecs,
    )


if __name__ == "__main__":
    key = jax.random.PRNGKey(0)
    key, kp, kd, kl = jax.random.split(key, 4)
    params = init_params(kp)

    domain = jax.random.randint(kd, (BATCH,), 0, N_DOMAINS, dtype=jnp.int32)
    labels = jax.random.randint(kl, (BATCH,), 0, N_CLASSES, dtype=jnp.int32)

    img = generator_forward(params, domain, labels)
    jax.block_until_ready(img)

    assert img.shape == (BATCH, CHANNELS, IMG_SIZE, IMG_SIZE), img.shape
    assert img.dtype == jnp.float32
    assert bool(jnp.all(jnp.isfinite(img)))
    assert bool(jnp.all(jnp.abs(img) <= 1.0))   # tanh range
    print("KERNEL_OK")
</pallas_src>

<mosaic_0001>
module attributes {stable_mosaic.version = 11 : i64} {
  func.func @_generator_kernel(%arg0: i32, %arg1: memref<8x2xi32, #tpu.memory_space<vmem>>, %arg2: memref<16x1024xf32, #tpu.memory_space<vmem>>, %arg3: memref<1440x256xbf16, #tpu.memory_space<any>>, %arg4: memref<768x512xbf16, #tpu.memory_space<any>>, %arg5: memref<512x1024xbf16, #tpu.memory_space<any>>, %arg6: memref<8x256xf32, #tpu.memory_space<vmem>>, %arg7: memref<1440x256xbf16, #tpu.memory_space<vmem>>, %arg8: memref<768x512xbf16, #tpu.memory_space<vmem>>, %arg9: memref<512x1024xbf16, #tpu.memory_space<vmem>>, %arg10: memref<3x!tpu.dma_semaphore, #tpu.memory_space<semaphore_mem>>) attributes {dimension_semantics = [#tpu.dimension_semantics<arbitrary>], iteration_bounds = array<i64: 1>, scalar_prefetch = 0 : i64, scratch_operands = 4 : i64, tpu.core_type = #tpu.core_type<tc>, window_params = [{pipeline_mode = #tpu.pipeline_mode<synchronous>, transform_indices = @transform_0, window_bounds = array<i64: 8, 2>}, {pipeline_mode = #tpu.pipeline_mode<synchronous>, transform_indices = @transform_1, window_bounds = array<i64: 16, 1024>}, {}, {}, {}, {pipeline_mode = #tpu.pipeline_mode<synchronous>, transform_indices = @transform_5, window_bounds = array<i64: 8, 256>}]} {
    %c0_i32 = arith.constant 0 : i32
    %0 = tpu.memref_slice %arg10[%c0_i32] : memref<3x!tpu.dma_semaphore, #tpu.memory_space<semaphore_mem>> -> memref<1x!tpu.dma_semaphore, #tpu.memory_space<semaphore_mem>>
    %1 = tpu.memref_squeeze %0 : memref<1x!tpu.dma_semaphore, #tpu.memory_space<semaphore_mem>> -> memref<!tpu.dma_semaphore, #tpu.memory_space<semaphore_mem>>
    tpu.enqueue_dma source(%arg3 : memref<1440x256xbf16, #tpu.memory_space<any>>) target(%arg7 : memref<1440x256xbf16, #tpu.memory_space<vmem>>) target_semaphore(%1 : memref<!tpu.dma_semaphore, #tpu.memory_space<semaphore_mem>>)
    %c1_i32 = arith.constant 1 : i32
    %2 = tpu.memref_slice %arg10[%c1_i32] : memref<3x!tpu.dma_semaphore, #tpu.memory_space<semaphore_mem>> -> memref<1x!tpu.dma_semaphore, #tpu.memory_space<semaphore_mem>>
    %3 = tpu.memref_squeeze %2 : memref<1x!tpu.dma_semaphore, #tpu.memory_space<semaphore_mem>> -> memref<!tpu.dma_semaphore, #tpu.memory_space<semaphore_mem>>
    tpu.enqueue_dma source(%arg4 : memref<768x512xbf16, #tpu.memory_space<any>>) target(%arg8 : memref<768x512xbf16, #tpu.memory_space<vmem>>) target_semaphore(%3 : memref<!tpu.dma_semaphore, #tpu.memory_space<semaphore_mem>>)
    %c2_i32 = arith.constant 2 : i32
    %4 = tpu.memref_slice %arg10[%c2_i32] : memref<3x!tpu.dma_semaphore, #tpu.memory_space<semaphore_mem>> -> memref<1x!tpu.dma_semaphore, #tpu.memory_space<semaphore_mem>>
    %5 = tpu.memref_squeeze %4 : memref<1x!tpu.dma_semaphore, #tpu.memory_space<semaphore_mem>> -> memref<!tpu.dma_semaphore, #tpu.memory_space<semaphore_mem>>
    tpu.enqueue_dma source(%arg5 : memref<512x1024xbf16, #tpu.memory_space<any>>) target(%arg9 : memref<512x1024xbf16, #tpu.memory_space<vmem>>) target_semaphore(%5 : memref<!tpu.dma_semaphore, #tpu.memory_space<semaphore_mem>>)
    %c0 = arith.constant 0 : index
    %c0_0 = arith.constant 0 : index
    %6 = vector.load %arg1[%c0, %c0_0] : memref<8x2xi32, #tpu.memory_space<vmem>>, vector<8x1xi32>
    %7 = tpu.iota {dimensions = array<i32: 1>} : vector<8x16xi32>
    %8 = vector.broadcast %6 : vector<8x1xi32> to vector<8x16xi32>
    %9 = arith.cmpi eq, %8, %7 : vector<8x16xi32>
    %10 = arith.extui %9 : vector<8x16xi1> to vector<8x16xi32>
    %11 = arith.sitofp %10 : vector<8x16xi32> to vector<8x16xf32>
    %12 = arith.truncf %11 : vector<8x16xf32> to vector<8x16xbf16>
    %c0_1 = arith.constant 0 : index
    %c1 = arith.constant 1 : index
    %13 = vector.load %arg1[%c0_1, %c1] : memref<8x2xi32, #tpu.memory_space<vmem>>, vector<8x1xi32>
    %14 = tpu.iota {dimensions = array<i32: 1>} : vector<8x16xi32>
    %15 = vector.broadcast %13 : vector<8x1xi32> to vector<8x16xi32>
    %16 = arith.cmpi eq, %15, %14 : vector<8x16xi32>
    %17 = arith.extui %16 : vector<8x16xi1> to vector<8x16xi32>
    %18 = arith.sitofp %17 : vector<8x16xi32> to vector<8x16xf32>
    %19 = arith.truncf %18 : vector<8x16xf32> to vector<8x16xbf16>
    %c0_i32_2 = arith.constant 0 : i32
    %20 = tpu.memref_slice %arg10[%c0_i32_2] : memref<3x!tpu.dma_semaphore, #tpu.memory_space<semaphore_mem>> -> memref<1x!tpu.dma_semaphore, #tpu.memory_space<semaphore_mem>>
    %21 = tpu.memref_squeeze %20 : memref<1x!tpu.dma_semaphore, #tpu.memory_space<semaphore_mem>> -> memref<!tpu.dma_semaphore, #tpu.memory_space<semaphore_mem>>
    tpu.wait_dma2 semaphore(%21 : memref<!tpu.dma_semaphore, #tpu.memory_space<semaphore_mem>>) src(%arg3 : memref<1440x256xbf16, #tpu.memory_space<any>>) dst(%arg7 : memref<1440x256xbf16, #tpu.memory_space<vmem>>)
    %c0_3 = arith.constant 0 : index
    %c0_4 = arith.constant 0 : index
    %22 = vector.load %arg7[%c0_3, %c0_4] : memref<1440x256xbf16, #tpu.memory_space<vmem>>, vector<16x128xbf16>
    %cst = arith.constant dense<0.000000e+00> : vector<8x128xf32>
    %23 = tpu.matmul %12, %22, %cst {dimension_numbers = #tpu.dot_dimension_numbers<[1], [0], [0], [1], [0, 0, 1, 1], [], []>} : vector<8x16xbf16>, vector<16x128xbf16>, vector<8x128xf32> -> vector<8x128xf32>
    %c16 = arith.constant 16 : index
    %c0_5 = arith.constant 0 : index
    %24 = vector.load %arg7[%c16, %c0_5] : memref<1440x256xbf16, #tpu.memory_space<vmem>>, vector<16x128xbf16>
    %cst_6 = arith.constant dense<0.000000e+00> : vector<8x128xf32>
    %25 = tpu.matmul %19, %24, %cst_6 {dimension_numbers = #tpu.dot_dimension_numbers<[1], [0], [0], [1], [0, 0, 1, 1], [], []>} : vector<8x16xbf16>, vector<16x128xbf16>, vector<8x128xf32> -> vector<8x128xf32>
    %26 = arith.addf %23, %25 : vector<8x128xf32>
    %c0_7 = arith.constant 0 : index
    %c0_8 = arith.constant 0 : index
    %27 = vector.load %arg2[%c0_7, %c0_8] : memref<16x1024xf32, #tpu.memory_space<vmem>>, vector<1x128xf32>
    %28 = vector.broadcast %27 : vector<1x128xf32> to vector<8x128xf32>
    %29 = arith.addf %26, %28 : vector<8x128xf32>
    %cst_9 = arith.constant 2.000000e-01 : f32
    %30 = vector.broadcast %cst_9 : f32 to vector<8x128xf32>
    %31 = arith.mulf %30, %29 : vector<8x128xf32>
    %32 = arith.maximumf %29, %31 : vector<8x128xf32>
    %33 = arith.truncf %32 : vector<8x128xf32> to vector<8x128xbf16>
    %c32 = arith.constant 32 : index
    %c0_10 = arith.constant 0 : index
    %34 = vector.load %arg7[%c32, %c0_10] : memref<1440x256xbf16, #tpu.memory_space<vmem>>, vector<128x256xbf16>
    %cst_11 = arith.constant dense<0.000000e+00> : vector<8x256xf32>
    %35 = tpu.matmul %33, %34, %cst_11 {dimension_numbers = #tpu.dot_dimension_numbers<[1], [0], [0], [1], [0, 0, 1, 1], [], []>} : vector<8x128xbf16>, vector<128x256xbf16>, vector<8x256xf32> -> vector<8x256xf32>
    %cst_12 = arith.constant dense<0.000000e+00> : vector<256xf32>
    %36 = vector.multi_reduction <add>, %35, %cst_12 [0] : vector<8x256xf32> to vector<256xf32>
    %37 = vector.shape_cast %36 : vector<256xf32> to vector<1x256xf32>
    %cst_13 = arith.constant 8.000000e+00 : f32
    %38 = vector.broadcast %cst_13 : f32 to vector<1x256xf32>
    %39 = arith.divf %37, %38 : vector<1x256xf32>
    %40 = vector.broadcast %39 : vector<1x256xf32> to vector<8x256xf32>
    %41 = arith.subf %35, %40 : vector<8x256xf32>
    %42 = arith.mulf %41, %41 : vector<8x256xf32>
    %cst_14 = arith.constant dense<0.000000e+00> : vector<256xf32>
    %43 = vector.multi_reduction <add>, %42, %cst_14 [0] : vector<8x256xf32> to vector<256xf32>
    %44 = vector.shape_cast %43 : vector<256xf32> to vector<1x256xf32>
    %cst_15 = arith.constant 8.000000e+00 : f32
    %45 = vector.broadcast %cst_15 : f32 to vector<1x256xf32>
    %46 = arith.divf %44, %45 : vector<1x256xf32>
    %c2 = arith.constant 2 : index
    %c0_16 = arith.constant 0 : index
    %47 = vector.load %arg2[%c2, %c0_16] : memref<16x1024xf32, #tpu.memory_space<vmem>>, vector<1x256xf32>
    %cst_17 = arith.constant 8.000000e-01 : f32
    %48 = vector.broadcast %cst_17 : f32 to vector<1x256xf32>
    %49 = arith.addf %46, %48 : vector<1x256xf32>
    %50 = math.rsqrt %49 : vector<1x256xf32>
    %51 = arith.mulf %47, %50 : vector<1x256xf32>
    %52 = vector.broadcast %51 : vector<1x256xf32> to vector<8x256xf32>
    %53 = arith.mulf %41, %52 : vector<8x256xf32>
    %c7 = arith.constant 7 : index
    %c0_18 = arith.constant 0 : index
    %54 = vector.load %arg2[%c7, %c0_18] : memref<16x1024xf32, #tpu.memory_space<vmem>>, vector<1x256xf32>
    %55 = vector.broadcast %54 : vector<1x256xf32> to vector<8x256xf32>
    %56 = arith.addf %53, %55 : vector<8x256xf32>
    %cst_19 = arith.constant 2.000000e-01 : f32
    %57 = vector.broadcast %cst_19 : f32 to vector<8x256xf32>
    %58 = arith.mulf %57, %56 : vector<8x256xf32>
    %59 = arith.maximumf %56, %58 : vector<8x256xf32>
    %60 = arith.truncf %59 : vector<8x256xf32> to vector<8x256xbf16>
    %c160 = arith.constant 160 : index
    %c0_20 = arith.constant 0 : index
    %61 = vector.load %arg7[%c160, %c0_20] : memref<1440x256xbf16, #tpu.memory_space<vmem>>, vector<256x256xbf16>
    %cst_21 = arith.constant dense<0.000000e+00> : vector<8x256xf32>
    %62 = tpu.matmul %60, %61, %cst_21 {dimension_numbers = #tpu.dot_dimension_numbers<[1], [0], [0], [1], [0, 0, 1, 1], [], []>} : vector<8x256xbf16>, vector<256x256xbf16>, vector<8x256xf32> -> vector<8x256xf32>
    %cst_22 = arith.constant dense<0.000000e+00> : vector<256xf32>
    %63 = vector.multi_reduction <add>, %62, %cst_22 [0] : vector<8x256xf32> to vector<256xf32>
    %64 = vector.shape_cast %63 : vector<256xf32> to vector<1x256xf32>
    %cst_23 = arith.constant 8.000000e+00 : f32
    %65 = vector.broadcast %cst_23 : f32 to vector<1x256xf32>
    %66 = arith.divf %64, %65 : vector<1x256xf32>
    %67 = vector.broadcast %66 : vector<1x256xf32> to vector<8x256xf32>
    %68 = arith.subf %62, %67 : vector<8x256xf32>
    %69 = arith.mulf %68, %68 : vector<8x256xf32>
    %cst_24 = arith.constant dense<0.000000e+00> : vector<256xf32>
    %70 = vector.multi_reduction <add>, %69, %cst_24 [0] : vector<8x256xf32> to vector<256xf32>
    %71 = vector.shape_cast %70 : vector<256xf32> to vector<1x256xf32>
    %cst_25 = arith.constant 8.000000e+00 : f32
    %72 = vector.broadcast %cst_25 : f32 to vector<1x256xf32>
    %73 = arith.divf %71, %72 : vector<1x256xf32>
    %c3 = arith.constant 3 : index
    %c0_26 = arith.constant 0 : index
    %74 = vector.load %arg2[%c3, %c0_26] : memref<16x1024xf32, #tpu.memory_space<vmem>>, vector<1x256xf32>
    %cst_27 = arith.constant 8.000000e-01 : f32
    %75 = vector.broadcast %cst_27 : f32 to vector<1x256xf32>
    %76 = arith.addf %73, %75 : vector<1x256xf32>
    %77 = math.rsqrt %76 : vector<1x256xf32>
    %78 = arith.mulf %74, %77 : vector<1x256xf32>
    %79 = vector.broadcast %78 : vector<1x256xf32> to vector<8x256xf32>
    %80 = arith.mulf %68, %79 : vector<8x256xf32>
    %c8 = arith.constant 8 : index
    %c0_28 = arith.constant 0 : index
    %81 = vector.load %arg2[%c8, %c0_28] : memref<16x1024xf32, #tpu.memory_space<vmem>>, vector<1x256xf32>
    %82 = vector.broadcast %81 : vector<1x256xf32> to vector<8x256xf32>
    %83 = arith.addf %80, %82 : vector<8x256xf32>
    %cst_29 = arith.constant 2.000000e-01 : f32
    %84 = vector.broadcast %cst_29 : f32 to vector<8x256xf32>
    %85 = arith.mulf %84, %83 : vector<8x256xf32>
    %86 = arith.maximumf %83, %85 : vector<8x256xf32>
    %c1_i32_30 = arith.constant 1 : i32
    %87 = tpu.memref_slice %arg10[%c1_i32_30] : memref<3x!tpu.dma_semaphore, #tpu.memory_space<semaphore_mem>> -> memref<1x!tpu.dma_semaphore, #tpu.memory_space<semaphore_mem>>
    %88 = tpu.memref_squeeze %87 : memref<1x!tpu.dma_semaphore, #tpu.memory_space<semaphore_mem>> -> memref<!tpu.dma_semaphore, #tpu.memory_space<semaphore_mem>>
    tpu.wait_dma2 semaphore(%88 : memref<!tpu.dma_semaphore, #tpu.memory_space<semaphore_mem>>) src(%arg4 : memref<768x512xbf16, #tpu.memory_space<any>>) dst(%arg8 : memref<768x512xbf16, #tpu.memory_space<vmem>>)
    %89 = arith.truncf %86 : vector<8x256xf32> to vector<8x256xbf16>
    %c0_31 = arith.constant 0 : index
    %c0_32 = arith.constant 0 : index
    %90 = vector.load %arg8[%c0_31, %c0_32] : memref<768x512xbf16, #tpu.memory_space<vmem>>, vector<256x512xbf16>
    %cst_33 = arith.constant dense<0.000000e+00> : vector<8x512xf32>
    %91 = tpu.matmul %89, %90, %cst_33 {dimension_numbers = #tpu.dot_dimension_numbers<[1], [0], [0], [1], [0, 0, 1, 1], [], []>} : vector<8x256xbf16>, vector<256x512xbf16>, vector<8x512xf32> -> vector<8x512xf32>
    %cst_34 = arith.constant dense<0.000000e+00> : vector<512xf32>
    %92 = vector.multi_reduction <add>, %91, %cst_34 [0] : vector<8x512xf32> to vector<512xf32>
    %93 = vector.shape_cast %92 : vector<512xf32> to vector<1x512xf32>
    %cst_35 = arith.constant 8.000000e+00 : f32
    %94 = vector.broadcast %cst_35 : f32 to vector<1x512xf32>
    %95 = arith.divf %93, %94 : vector<1x512xf32>
    %96 = vector.broadcast %95 : vector<1x512xf32> to vector<8x512xf32>
    %97 = arith.subf %91, %96 : vector<8x512xf32>
    %98 = arith.mulf %97, %97 : vector<8x512xf32>
    %cst_36 = arith.constant dense<0.000000e+00> : vector<512xf32>
    %99 = vector.multi_reduction <add>, %98, %cst_36 [0] : vector<8x512xf32> to vector<512xf32>
    %100 = vector.shape_cast %99 : vector<512xf32> to vector<1x512xf32>
    %cst_37 = arith.constant 8.000000e+00 : f32
    %101 = vector.broadcast %cst_37 : f32 to vector<1x512xf32>
    %102 = arith.divf %100, %101 : vector<1x512xf32>
    %c4 = arith.constant 4 : index
    %c0_38 = arith.constant 0 : index
    %103 = vector.load %arg2[%c4, %c0_38] : memref<16x1024xf32, #tpu.memory_space<vmem>>, vector<1x512xf32>
    %cst_39 = arith.constant 8.000000e-01 : f32
    %104 = vector.broadcast %cst_39 : f32 to vector<1x512xf32>
    %105 = arith.addf %102, %104 : vector<1x512xf32>
    %106 = math.rsqrt %105 : vector<1x512xf32>
    %107 = arith.mulf %103, %106 : vector<1x512xf32>
    %108 = vector.broadcast %107 : vector<1x512xf32> to vector<8x512xf32>
    %109 = arith.mulf %97, %108 : vector<8x512xf32>
    %c9 = arith.constant 9 : index
    %c0_40 = arith.constant 0 : index
    %110 = vector.load %arg2[%c9, %c0_40] : memref<16x1024xf32, #tpu.memory_space<vmem>>, vector<1x512xf32>
    %111 = vector.broadcast %110 : vector<1x512xf32> to vector<8x512xf32>
    %112 = arith.addf %109, %111 : vector<8x512xf32>
    %cst_41 = arith.constant 2.000000e-01 : f32
    %113 = vector.broadcast %cst_41 : f32 to vector<8x512xf32>
    %114 = arith.mulf %113, %112 : vector<8x512xf32>
    %115 = arith.maximumf %112, %114 : vector<8x512xf32>
    %116 = arith.truncf %115 : vector<8x512xf32> to vector<8x512xbf16>
    %c256 = arith.constant 256 : index
    %c0_42 = arith.constant 0 : index
    %117 = vector.load %arg8[%c256, %c0_42] : memref<768x512xbf16, #tpu.memory_space<vmem>>, vector<512x512xbf16>
    %cst_43 = arith.constant dense<0.000000e+00> : vector<8x512xf32>
    %118 = tpu.matmul %116, %117, %cst_43 {dimension_numbers = #tpu.dot_dimension_numbers<[1], [0], [0], [1], [0, 0, 1, 1], [], []>} : vector<8x512xbf16>, vector<512x512xbf16>, vector<8x512xf32> -> vector<8x512xf32>
    %cst_44 = arith.constant dense<0.000000e+00> : vector<512xf32>
    %119 = vector.multi_reduction <add>, %118, %cst_44 [0] : vector<8x512xf32> to vector<512xf32>
    %120 = vector.shape_cast %119 : vector<512xf32> to vector<1x512xf32>
    %cst_45 = arith.constant 8.000000e+00 : f32
    %121 = vector.broadcast %cst_45 : f32 to vector<1x512xf32>
    %122 = arith.divf %120, %121 : vector<1x512xf32>
    %123 = vector.broadcast %122 : vector<1x512xf32> to vector<8x512xf32>
    %124 = arith.subf %118, %123 : vector<8x512xf32>
    %125 = arith.mulf %124, %124 : vector<8x512xf32>
    %cst_46 = arith.constant dense<0.000000e+00> : vector<512xf32>
    %126 = vector.multi_reduction <add>, %125, %cst_46 [0] : vector<8x512xf32> to vector<512xf32>
    %127 = vector.shape_cast %126 : vector<512xf32> to vector<1x512xf32>
    %cst_47 = arith.constant 8.000000e+00 : f32
    %128 = vector.broadcast %cst_47 : f32 to vector<1x512xf32>
    %129 = arith.divf %127, %128 : vector<1x512xf32>
    %c5 = arith.constant 5 : index
    %c0_48 = arith.constant 0 : index
    %130 = vector.load %arg2[%c5, %c0_48] : memref<16x1024xf32, #tpu.memory_space<vmem>>, vector<1x512xf32>
    %cst_49 = arith.constant 8.000000e-01 : f32
    %131 = vector.broadcast %cst_49 : f32 to vector<1x512xf32>
    %132 = arith.addf %129, %131 : vector<1x512xf32>
    %133 = math.rsqrt %132 : vector<1x512xf32>
    %134 = arith.mulf %130, %133 : vector<1x512xf32>
    %135 = vector.broadcast %134 : vector<1x512xf32> to vector<8x512xf32>
    %136 = arith.mulf %124, %135 : vector<8x512xf32>
    %c10 = arith.constant 10 : index
    %c0_50 = arith.constant 0 : index
    %137 = vector.load %arg2[%c10, %c0_50] : memref<16x1024xf32, #tpu.memory_space<vmem>>, vector<1x512xf32>
    %138 = vector.broadcast %137 : vector<1x512xf32> to vector<8x512xf32>
    %139 = arith.addf %136, %138 : vector<8x512xf32>
    %cst_51 = arith.constant 2.000000e-01 : f32
    %140 = vector.broadcast %cst_51 : f32 to vector<8x512xf32>
    %141 = arith.mulf %140, %139 : vector<8x512xf32>
    %142 = arith.maximumf %139, %141 : vector<8x512xf32>
    %c2_i32_52 = arith.constant 2 : i32
    %143 = tpu.memref_slice %arg10[%c2_i32_52] : memref<3x!tpu.dma_semaphore, #tpu.memory_space<semaphore_mem>> -> memref<1x!tpu.dma_semaphore, #tpu.memory_space<semaphore_mem>>
    %144 = tpu.memref_squeeze %143 : memref<1x!tpu.dma_semaphore, #tpu.memory_space<semaphore_mem>> -> memref<!tpu.dma_semaphore, #tpu.memory_space<semaphore_mem>>
    tpu.wait_dma2 semaphore(%144 : memref<!tpu.dma_semaphore, #tpu.memory_space<semaphore_mem>>) src(%arg5 : memref<512x1024xbf16, #tpu.memory_space<any>>) dst(%arg9 : memref<512x1024xbf16, #tpu.memory_space<vmem>>)
    %145 = arith.truncf %142 : vector<8x512xf32> to vector<8x512xbf16>
    %c0_53 = arith.constant 0 : index
    %c0_54 = arith.constant 0 : index
    %146 = vector.load %arg9[%c0_53, %c0_54] : memref<512x1024xbf16, #tpu.memory_space<vmem>>, vector<512x1024xbf16>
    %cst_55 = arith.constant dense<0.000000e+00> : vector<8x1024xf32>
    %147 = tpu.matmul %145, %146, %cst_55 {dimension_numbers = #tpu.dot_dimension_numbers<[1], [0], [0], [1], [0, 0, 1, 1], [], []>} : vector<8x512xbf16>, vector<512x1024xbf16>, vector<8x1024xf32> -> vector<8x1024xf32>
    %cst_56 = arith.constant dense<0.000000e+00> : vector<1024xf32>
    %148 = vector.multi_reduction <add>, %147, %cst_56 [0] : vector<8x1024xf32> to vector<1024xf32>
    %149 = vector.shape_cast %148 : vector<1024xf32> to vector<1x1024xf32>
    %cst_57 = arith.constant 8.000000e+00 : f32
    %150 = vector.broadcast %cst_57 : f32 to vector<1x1024xf32>
    %151 = arith.divf %149, %150 : vector<1x1024xf32>
    %152 = vector.broadcast %151 : vector<1x1024xf32> to vector<8x1024xf32>
    %153 = arith.subf %147, %152 : vector<8x1024xf32>
    %154 = arith.mulf %153, %153 : vector<8x1024xf32>
    %cst_58 = arith.constant dense<0.000000e+00> : vector<1024xf32>
    %155 = vector.multi_reduction <add>, %154, %cst_58 [0] : vector<8x1024xf32> to vector<1024xf32>
    %156 = vector.shape_cast %155 : vector<1024xf32> to vector<1x1024xf32>
    %cst_59 = arith.constant 8.000000e+00 : f32
    %157 = vector.broadcast %cst_59 : f32 to vector<1x1024xf32>
    %158 = arith.divf %156, %157 : vector<1x1024xf32>
    %c6 = arith.constant 6 : index
    %c0_60 = arith.constant 0 : index
    %159 = vector.load %arg2[%c6, %c0_60] : memref<16x1024xf32, #tpu.memory_space<vmem>>, vector<1x1024xf32>
    %cst_61 = arith.constant 8.000000e-01 : f32
    %160 = vector.broadcast %cst_61 : f32 to vector<1x1024xf32>
    %161 = arith.addf %158, %160 : vector<1x1024xf32>
    %162 = math.rsqrt %161 : vector<1x1024xf32>
    %163 = arith.mulf %159, %162 : vector<1x1024xf32>
    %164 = vector.broadcast %163 : vector<1x1024xf32> to vector<8x1024xf32>
    %165 = arith.mulf %153, %164 : vector<8x1024xf32>
    %c11 = arith.constant 11 : index
    %c0_62 = arith.constant 0 : index
    %166 = vector.load %arg2[%c11, %c0_62] : memref<16x1024xf32, #tpu.memory_space<vmem>>, vector<1x1024xf32>
    %167 = vector.broadcast %166 : vector<1x1024xf32> to vector<8x1024xf32>
    %168 = arith.addf %165, %167 : vector<8x1024xf32>
    %cst_63 = arith.constant 2.000000e-01 : f32
    %169 = vector.broadcast %cst_63 : f32 to vector<8x1024xf32>
    %170 = arith.mulf %169, %168 : vector<8x1024xf32>
    %171 = arith.maximumf %168, %170 : vector<8x1024xf32>
    %172 = arith.truncf %171 : vector<8x1024xf32> to vector<8x1024xbf16>
    %c416 = arith.constant 416 : index
    %c0_64 = arith.constant 0 : index
    %173 = vector.load %arg7[%c416, %c0_64] : memref<1440x256xbf16, #tpu.memory_space<vmem>>, vector<1024x256xbf16>
    %cst_65 = arith.constant dense<0.000000e+00> : vector<8x256xf32>
    %174 = tpu.matmul %172, %173, %cst_65 {dimension_numbers = #tpu.dot_dimension_numbers<[1], [0], [0], [1], [0, 0, 1, 1], [], []>} : vector<8x1024xbf16>, vector<1024x256xbf16>, vector<8x256xf32> -> vector<8x256xf32>
    %c1_66 = arith.constant 1 : index
    %c0_67 = arith.constant 0 : index
    %175 = vector.load %arg2[%c1_66, %c0_67] : memref<16x1024xf32, #tpu.memory_space<vmem>>, vector<1x256xf32>
    %176 = vector.broadcast %175 : vector<1x256xf32> to vector<8x256xf32>
    %177 = arith.addf %174, %176 : vector<8x256xf32>
    %178 = math.tanh %177 : vector<8x256xf32>
    %c0_68 = arith.constant 0 : index
    %c0_69 = arith.constant 0 : index
    %179 = vector.load %arg6[%c0_68, %c0_69] : memref<8x256xf32, #tpu.memory_space<vmem>>, vector<8x256xf32>
    tpu.vector_store %arg6[%c0_68, %c0_69], %178 {strides = array<i32>} : memref<8x256xf32, #tpu.memory_space<vmem>>, vector<8x256xf32>,
    return
  }
  func.func @transform_0(%arg0: i32) -> (i32, i32) {
    %c0_i32 = arith.constant 0 : i32
    %c0_i32_0 = arith.constant 0 : i32
    %c0_i32_1 = arith.constant 0 : i32
    return %c0_i32, %c0_i32_0 : i32, i32
  }
  func.func @transform_1(%arg0: i32) -> (i32, i32) {
    %c0_i32 = arith.constant 0 : i32
    %c0_i32_0 = arith.constant 0 : i32
    %c0_i32_1 = arith.constant 0 : i32
    return %c0_i32, %c0_i32_0 : i32, i32
  }
  func.func @transform_5(%arg0: i32) -> (i32, i32) {
    %c0_i32 = arith.constant 0 : i32
    %c0_i32_0 = arith.constant 0 : i32
    %c0_i32_1 = arith.constant 0 : i32
    return %c0_i32, %c0_i32_0 : i32, i32
  }
}

</mosaic_0001>

<llo_original>
// kernel: generator_forward.1
$region0: #{generator_forward.1}
  #allocation0 [shape = 'u32[]', space=smem, size = 0x4, offset = 0x4, fixed_abs, tag = 'smem constant byte address 0x4 - core index']
  #allocation1 [shape = 'u32[144,128]{1,0:T(1,128)}', space=vmem, size = 0x12000, scoped, tag = 'internal scratch']
  #allocation2 [shape = 'bf16[1440,256]{1,0:T(16,128)(2,1)}', space=vmem, size = 0xb4000, scoped, tag = 'scratch operand']
  #allocation3 [shape = 'bf16[768,512]{1,0:T(16,128)(2,1)}', space=vmem, size = 0xc0000, scoped, tag = 'scratch operand']
  #allocation4 [shape = 'bf16[512,1024]{1,0:T(16,128)(2,1)}', space=vmem, size = 0x100000, scoped, tag = 'scratch operand']
  #allocation5 [shape = 's32[3]{0}', space=sflag, size = 0xc, scoped, tag = 'scratch operand']
  #allocation8 [shape = 's32[]', space=sflag, size = 0x4, offset = 0, fixed_abs, tag = 'sflag constant byte address 0x0 - dummy sync flag']
  #allocation10 [shape = 's32[]', space=sflag, size = 0x4, offset = 0, fixed_abs, tag = 'sflag constant byte address 0x0 - dummy sync flag']
  #allocation12 [shape = 's32[]', space=sflag, size = 0x4, offset = 0, fixed_abs, tag = 'sflag constant byte address 0x0 - dummy sync flag']
  %s0 = inlined_call_operand.vmem [shape: s32[8,2], index: 0, kind: input, shape index: {}]
  %s1 = inlined_call_operand.hbm [shape: f32[16,1024], index: 1, kind: input, shape index: {}]
  %s2 = inlined_call_operand.hbm [shape: bf16[1440,256], index: 2, kind: input, shape index: {}]
  %s3 = inlined_call_operand.hbm [shape: bf16[768,512], index: 3, kind: input, shape index: {}]
  %s4 = inlined_call_operand.hbm [shape: bf16[512,1024], index: 4, kind: input, shape index: {}]
  %s5 = inlined_call_operand.vmem [shape: f32[8,256], index: 5, kind: output, shape index: {}]
  %s6 = sld [smem:[#allocation0]]
  $region22: #{generator_forward.1} parent=0
    _
  %s8 = ssub.s32 1, %s6
  %s9 = scalar_select 0, %s8, %s6
  $region1: #{generator_forward.1} parent=0
    #allocation6 [shape = 'u8[65536]{0}', space=vmem, size = 0x10000, scoped, tag = 'input window, operand 1, single buffered']
    #allocation7 [shape = 's32[1]{0}', space=sflag, size = 0x4, scoped, tag = 'scoped memory for generator_forward.1']
    #allocation9 [shape = 'u32[9]{0}', space=smem, size = 0x24, scoped, tag = 'DMA stride descriptor']
    #allocation11 [shape = 'u32[9]{0}', space=smem, size = 0x24, scoped, tag = 'DMA stride descriptor']
    #allocation13 [shape = 'u32[9]{0}', space=smem, size = 0x24, scoped, tag = 'DMA stride descriptor']
    %10 = vsyncpa [#allocation7], 0
    // Predicated region
    $region2: #{generator_forward.1} parent=1 // pred_check
      _
    $region3: #{generator_forward.1} parent=1 // pred_check_branch
      %12 = sbr.rel (0) target = $region5
    $region4: #{generator_forward.1} parent=1 // pred_region
      _
    $region5: #{generator_forward.1} parent=1 // pred_fallthru
      _
    // Predicated region
    $region6: #{generator_forward.1} parent=1 // pred_check
      _
    $region7: #{generator_forward.1} parent=1 // pred_check_branch
      %14 = sbr.rel (0) target = $region9
    $region8: #{generator_forward.1} parent=1 // pred_region
      %s16 = ssub.s32 2048, 2048
      %17 = vsyncadd [#allocation7], %s16
      %s18 = sshll.u32 [#allocation6], 4
      %s19 = int_to_ptr.vmem [resolvable:$true] %s18
      %24 = dma.hbm_to_vmem [thread:$0]  %s1, 2048, %s19, [#allocation7], 1024, 1024, 64
    $region9: #{generator_forward.1} parent=1 // pred_fallthru
      _
    // Predicated region
    $region10: #{generator_forward.1} parent=1 // pred_check
      _
    $region11: #{generator_forward.1} parent=1 // pred_check_branch
      %26 = sbr.rel (0) target = $region13
    $region12: #{generator_forward.1} parent=1 // pred_region
      %27 = dma.done [#allocation7], 2048
    $region13: #{generator_forward.1} parent=1 // pred_fallthru
      _
    %s30 = sshll.u32 1, 14
    %s31 = sxor.u32 4294967295, %s30
    %s33 = sld [smem:[#allocation0]]
    %s34 = sadd.s32 2, %s33
    %s36 = sshll.u32 7, 26
    %s37 = sxor.u32 4294967295, %s36
    %s38 = sand.u32 0, %s37
    %s39 = sshll.u32 %s34, 26
    %s40 = sor.u32 %s38, %s39
    %s41 = sshll.u32 [#allocation2], 4
    %s42 = int_to_ptr.vmem [resolvable:$true] %s41
    %45 = sst [smem:[#allocation9]] 256
    %s46 = scalar_lea.smem [#allocation9], 1
    %47 = sst [smem:[%s46]] 256
    %s48 = scalar_lea.smem [#allocation9], 2
    %49 = sst [smem:[%s48]] 2
    %s50 = scalar_lea.smem [#allocation9], 3
    %51 = sst [smem:[%s50]] 64
    %s52 = scalar_lea.smem [#allocation9], 4
    %53 = sst [smem:[%s52]] 128
    %s54 = scalar_lea.smem [#allocation9], 5
    %55 = sst [smem:[%s54]] 2
    %s56 = scalar_lea.smem [#allocation9], 6
    %57 = sst [smem:[%s56]] 128
    %s58 = scalar_lea.smem [#allocation9], 7
    %59 = sst [smem:[%s58]] 64
    %s60 = scalar_lea.smem [#allocation9], 8
    %61 = sst [smem:[%s60]] 4
    %63 = dma.general %s2, 23040, %s42, [#allocation5], [#allocation8], [#allocation9], %s40, 0
    %s64 = scalar_lea.sflag [#allocation5], 1
    %s66 = sshll.u32 1, 14
    %s67 = sxor.u32 4294967295, %s66
    %s69 = sadd.s32 2, %s33
    %s71 = sshll.u32 7, 26
    %s72 = sxor.u32 4294967295, %s71
    %s73 = sand.u32 0, %s72
    %s74 = sshll.u32 %s69, 26
    %s75 = sor.u32 %s73, %s74
    %s76 = sshll.u32 [#allocation3], 4
    %s77 = int_to_ptr.vmem [resolvable:$true] %s76
    %80 = sst [smem:[#allocation11]] 512
    %s81 = scalar_lea.smem [#allocation11], 1
    %82 = sst [smem:[%s81]] 512
    %s83 = scalar_lea.smem [#allocation11], 2
    %84 = sst [smem:[%s83]] 4
    %s85 = scalar_lea.smem [#allocation11], 3
    %86 = sst [smem:[%s85]] 64
    %s87 = scalar_lea.smem [#allocation11], 4
    %88 = sst [smem:[%s87]] 128
    %s89 = scalar_lea.smem [#allocation11], 5
    %90 = sst [smem:[%s89]] 2
    %s91 = scalar_lea.smem [#allocation11], 6
    %92 = sst [smem:[%s91]] 256
    %s93 = scalar_lea.smem [#allocation11], 7
    %94 = sst [smem:[%s93]] 64
    %s95 = scalar_lea.smem [#allocation11], 8
    %96 = sst [smem:[%s95]] 4
    %98 = dma.general %s3, 24576, %s77, %s64, [#allocation10], [#allocation11], %s75, 0
    %s99 = scalar_lea.sflag [#allocation5], 2
    %s101 = sshll.u32 1, 14
    %s102 = sxor.u32 4294967295, %s101
    %s104 = sadd.s32 2, %s33
    %s106 = sshll.u32 7, 26
    %s107 = sxor.u32 4294967295, %s106
    %s108 = sand.u32 0, %s107
    %s109 = sshll.u32 %s104, 26
    %s110 = sor.u32 %s108, %s109
    %s111 = sshll.u32 [#allocation4], 4
    %s112 = int_to_ptr.vmem [resolvable:$true] %s111
    %115 = sst [smem:[#allocation13]] 1024
    %s116 = scalar_lea.smem [#allocation13], 1
    %117 = sst [smem:[%s116]] 1024
    %s118 = scalar_lea.smem [#allocation13], 2
    %119 = sst [smem:[%s118]] 8
    %s120 = scalar_lea.smem [#allocation13], 3
    %121 = sst [smem:[%s120]] 64
    %s122 = scalar_lea.smem [#allocation13], 4
    %123 = sst [smem:[%s122]] 128
    %s124 = scalar_lea.smem [#allocation13], 5
    %125 = sst [smem:[%s124]] 2
    %s126 = scalar_lea.smem [#allocation13], 6
    %127 = sst [smem:[%s126]] 512
    %s128 = scalar_lea.smem [#allocation13], 7
    %129 = sst [smem:[%s128]] 64
    %s130 = scalar_lea.smem [#allocation13], 8
    %131 = sst [smem:[%s130]] 4
    %133 = dma.general %s4, 32768, %s112, %s99, [#allocation12], [#allocation13], %s110, 0
    %v134 = vld [vmem:[%s0] sm:$0xff]
    %v135 = vlaneseq
    %v136 = vand.u32 %v135, 127
    %137 = vset.pattern.permute.xlu0 0
    %138 = vperm.xlu0 %137, %v134
    %v139 = vpop.permute.xlu0 %138
    %vm140 = vcmp.eq.s32.totalorder %v139, %v136
    %v141 = vsel %vm140, 1, 0
    %v142 = vcvt.s32.f32 %v141
    %v143 = vpack.c.bf16 %v142, %v142
    %144 = vset.pattern.permute.xlu0 1
    %145 = vperm.xlu0 %144, %v134
    %v146 = vpop.permute.xlu0 %145
    %vm147 = vcmp.eq.s32.totalorder %v146, %v136
    %v148 = vsel %vm147, 1, 0
    %v149 = vcvt.s32.f32 %v148
    %v150 = vpack.c.bf16 %v149, %v149
    %s151 = smul.u32 4, 180
    %s152 = smul.u32 %s151, 2
    %s153 = sshll.u32 %s152, 4
    %154 = dma.done [#allocation5], %s153
    %v155 = vld [vmem:[#allocation2] sm:$0xff]
    %v156 = vld [vmem:[#allocation2 + $0x10] sm:$0xff]
    %vm157 = vcmask 130048
    %v159 = vsel %vm157, %v150, 0
    %161 = vmatprep.subr.bf16.mxu0 0
    %162 = vmatpush1.bf16.msra.mxu0 %v156
    %163 = vmatprep.subr.bf16.mxu0 0
    %164 = vmatpush1.bf16.msra.mxu0 0
    %165 = vmatprep.subr.bf16.mxu0 0
    %166 = vmatpush1.bf16.msra.mxu0 0
    %167 = vmatprep.subr.bf16.mxu0 0
    %168 = vmatpush1.bf16.msra.mxu0 0
    %169 = vmatprep.subr.bf16.mxu0 0
    %170 = vmatpush1.bf16.msra.mxu0 0
    %171 = vmatprep.subr.bf16.mxu0 0
    %172 = vmatpush1.bf16.msra.mxu0 0
    %173 = vmatprep.subr.bf16.mxu0 0
    %174 = vmatpush1.bf16.msra.mxu0 0
    %175 = vmatprep.subr.bf16.mxu0 0
    %176 = vmatpush1.bf16.msra.mxu0 0
    %177 = vmatprep.subr.bf16.mxu0 0
    %178 = vmatpush1.bf16.msra.mxu0 0
    %179 = vmatprep.subr.bf16.mxu0 0
    %180 = vmatpush1.bf16.msra.mxu0 0
    %181 = vmatprep.subr.bf16.mxu0 0
    %182 = vmatpush1.bf16.msra.mxu0 0
    %183 = vmatprep.subr.bf16.mxu0 0
    %184 = vmatpush1.bf16.msra.mxu0 0
    %185 = vmatprep.subr.bf16.mxu0 0
    %186 = vmatpush1.bf16.msra.mxu0 0
    %187 = vmatprep.subr.bf16.mxu0 0
    %188 = vmatpush1.bf16.msra.mxu0 0
    %189 = vmatprep.subr.bf16.mxu0 0
    %190 = vmatpush1.bf16.msra.mxu0 0
    %191 = vmatprep.subr.bf16.mxu0 0
    %192 = vmatpush1.bf16.msra.mxu0 0
    %193 = vmatprep.mubr.bf16.mxu0 0
    %194 = vmatmul.mubr.bf16.gmra.mrb[0].mxu0 %v159
    %v195 = vpop.f32.mrb[0].mxu0
    %v196 = vadd.f32 0.0, %v195
    %v197 = vpop.f32.mrb[0].mxu0
    %v198 = vpop.f32.mrb[0].mxu0
    %v199 = vpop.f32.mrb[0].mxu0
    %200 = vdwg.mxu0
    %v202 = vsel %vm157, %v143, 0
    %204 = vmatprep.subr.bf16.mxu0 0
    %205 = vmatpush1.bf16.msra.mxu0 %v155
    %206 = vmatprep.subr.bf16.mxu0 0
    %207 = vmatpush1.bf16.msra.mxu0 0
    %208 = vmatprep.subr.bf16.mxu0 0
    %209 = vmatpush1.bf16.msra.mxu0 0
    %210 = vmatprep.subr.bf16.mxu0 0
    %211 = vmatpush1.bf16.msra.mxu0 0
    %212 = vmatprep.subr.bf16.mxu0 0
    %213 = vmatpush1.bf16.msra.mxu0 0
    %214 = vmatprep.subr.bf16.mxu0 0
    %215 = vmatpush1.bf16.msra.mxu0 0
    %216 = vmatprep.subr.bf16.mxu0 0
    %217 = vmatpush1.bf16.msra.mxu0 0
    %218 = vmatprep.subr.bf16.mxu0 0
    %219 = vmatpush1.bf16.msra.mxu0 0
    %220 = vmatprep.subr.bf16.mxu0 0
    %221 = vmatpush1.bf16.msra.mxu0 0
    %222 = vmatprep.subr.bf16.mxu0 0
    %223 = vmatpush1.bf16.msra.mxu0 0
    %224 = vmatprep.subr.bf16.mxu0 0
    %225 = vmatpush1.bf16.msra.mxu0 0
    %226 = vmatprep.subr.bf16.mxu0 0
    %227 = vmatpush1.bf16.msra.mxu0 0
    %228 = vmatprep.subr.bf16.mxu0 0
    %229 = vmatpush1.bf16.msra.mxu0 0
    %230 = vmatprep.subr.bf16.mxu0 0
    %231 = vmatpush1.bf16.msra.mxu0 0
    %232 = vmatprep.subr.bf16.mxu0 0
    %233 = vmatpush1.bf16.msra.mxu0 0
    %234 = vmatprep.subr.bf16.mxu0 0
    %235 = vmatpush1.bf16.msra.mxu0 0
    %236 = vmatprep.mubr.bf16.mxu0 0
    %237 = vmatmul.mubr.bf16.gmra.mrb[0].mxu0 %v202
    %v238 = vpop.f32.mrb[0].mxu0
    %v239 = vadd.f32 %v196, %v238
    %v240 = vpop.f32.mrb[0].mxu0
    %v241 = vpop.f32.mrb[0].mxu0
    %v242 = vpop.f32.mrb[0].mxu0
    %243 = vdwg.mxu0
    %v244 = vld [vmem:[#allocation6] ss:$0 sm:$0xff]
    %v245 = vadd.f32 %v239, %v244
    %v246 = vmul.f32 %v245, 0.2
    %v247 = vmax.f32 %v245, %v246
    %v248 = vpack.c.bf16 %v247, %v247
    %v249 = vld [vmem:[#allocation2 + $0x20] sm:$0xff]
    %v250 = vld [vmem:[#allocation2 + $0x28] sm:$0xff]
    %v251 = vld [vmem:[#allocation2 + $0x30] sm:$0xff]
    %v252 = vld [vmem:[#allocation2 + $0x38] sm:$0xff]
    %v253 = vld [vmem:[#allocation2 + $0x40] sm:$0xff]
    %v254 = vld [vmem:[#allocation2 + $0x48] sm:$0xff]
    %v255 = vld [vmem:[#allocation2 + $0x50] sm:$0xff]
    %v256 = vld [vmem:[#allocation2 + $0x58] sm:$0xff]
    %v257 = vld [vmem:[#allocation2 + $0x60] sm:$0xff]
    %v258 = vld [vmem:[#allocation2 + $0x68] sm:$0xff]
    %v259 = vld [vmem:[#allocation2 + $0x70] sm:$0xff]
    %v260 = vld [vmem:[#allocation2 + $0x78] sm:$0xff]
    %v261 = vld [vmem:[#allocation2 + $0x80] sm:$0xff]
    %v262 = vld [vmem:[#allocation2 + $0x88] sm:$0xff]
    %v263 = vld [vmem:[#allocation2 + $0x90] sm:$0xff]
    %v264 = vld [vmem:[#allocation2 + $0x98] sm:$0xff]
    %265 = vmatprep.subr.bf16.mxu0 %v250
    %266 = vmatpush1.bf16.msra.mxu0 %v249
    %267 = vmatprep.subr.bf16.mxu0 %v252
    %268 = vmatpush1.bf16.msra.mxu0 %v251
    %269 = vmatprep.subr.bf16.mxu0 %v254
    %270 = vmatpush1.bf16.msra.mxu0 %v253
    %271 = vmatprep.subr.bf16.mxu0 %v256
    %272 = vmatpush1.bf16.msra.mxu0 %v255
    %273 = vmatprep.subr.bf16.mxu0 %v258
    %274 = vmatpush1.bf16.msra.mxu0 %v257
    %275 = vmatprep.subr.bf16.mxu0 %v260
    %276 = vmatpush1.bf16.msra.mxu0 %v259
    %277 = vmatprep.subr.bf16.mxu0 %v262
    %278 = vmatpush1.bf16.msra.mxu0 %v261
    %279 = vmatprep.subr.bf16.mxu0 %v264
    %280 = vmatpush1.bf16.msra.mxu0 %v263
    %281 = vmatprep.subr.bf16.mxu0 0
    %282 = vmatpush1.bf16.msra.mxu0 0
    %283 = vmatprep.subr.bf16.mxu0 0
    %284 = vmatpush1.bf16.msra.mxu0 0
    %285 = vmatprep.subr.bf16.mxu0 0
    %286 = vmatpush1.bf16.msra.mxu0 0
    %287 = vmatprep.subr.bf16.mxu0 0
    %288 = vmatpush1.bf16.msra.mxu0 0
    %289 = vmatprep.subr.bf16.mxu0 0
    %290 = vmatpush1.bf16.msra.mxu0 0
    %291 = vmatprep.subr.bf16.mxu0 0
    %292 = vmatpush1.bf16.msra.mxu0 0
    %293 = vmatprep.subr.bf16.mxu0 0
    %294 = vmatpush1.bf16.msra.mxu0 0
    %295 = vmatprep.subr.bf16.mxu0 0
    %296 = vmatpush1.bf16.msra.mxu0 0
    %297 = vmatprep.mubr.bf16.mxu0 0
    %298 = vmatmul.mubr.bf16.gmra.mrb[0].mxu0 %v248
    %v299 = vpop.f32.mrb[0].mxu0
    %v300 = vadd.f32 0.0, %v299
    %v301 = vpop.f32.mrb[0].mxu0
    %v302 = vadd.f32 0.0, %v301
    %v303 = vpop.f32.mrb[0].mxu0
    %v304 = vpop.f32.mrb[0].mxu0
    %305 = vdwg.mxu0
    %v306 = vrot.slane %v300, 4
    %v307 = vadd.f32 %v300, %v306
    %v308 = vrot.slane %v307, 2
    %v309 = vadd.f32 %v307, %v308
    %v310 = vrot.slane %v309, 1
    %v311 = vadd.f32 %v309, %v310
    %v312 = vrot.slane %v302, 4
    %v313 = vadd.f32 %v302, %v312
    %v314 = vrot.slane %v313, 2
    %v315 = vadd.f32 %v313, %v314
    %v316 = vrot.slane %v315, 1
    %v317 = vadd.f32 %v315, %v316
    %v318 = vrcp.pop 8.0
    %v319 = vmul.f32 %v311, %v318
    %v320 = vmul.f32 %v317, %v318
    %v321 = vsub.f32 %v300, %v319
    %v322 = vsub.f32 %v302, %v320
    %v323 = vmul.f32 %v321, %v321
    %v324 = vmul.f32 %v322, %v322
    %v325 = vrot.slane %v323, 4
    %v326 = vadd.f32 %v323, %v325
    %v327 = vrot.slane %v326, 2
    %v328 = vadd.f32 %v326, %v327
    %v329 = vrot.slane %v328, 1
    %v330 = vadd.f32 %v328, %v329
    %v331 = vrot.slane %v324, 4
    %v332 = vadd.f32 %v324, %v331
    %v333 = vrot.slane %v332, 2
    %v334 = vadd.f32 %v332, %v333
    %v335 = vrot.slane %v334, 1
    %v336 = vadd.f32 %v334, %v335
    %v337 = vmul.f32 %v330, %v318
    %v338 = vmul.f32 %v336, %v318
    %s339 = scalar_lea.vmem [#allocation6], 2
    %v340 = vld [vmem:[%s339] ss:$8 sm:$0x3]
    %v341 = vadd.f32 %v337, 0.8
    %v342 = vadd.f32 %v338, 0.8
    %v343 = vrsqrt.pop %v341
    %v344 = vrsqrt.pop %v342
    %v347 = vcombine.low %v343, %v344
    %v349 = vunpack.c.l.s4 1966171168
    %v350 = vunpack.c.0.s8 %v349
    %v351 = vlaneseq
    %v352 = vshrl.u32 %v351, 7
    %v353 = vsub.s32 %v350, %v352
    %v354 = vrot.slane %v347, %v353
    %v356 = vunpack.c.l.s4 1966171168
    %v357 = vunpack.c.0.s8 %v356
    %v358 = vlaneseq
    %v359 = vshrl.u32 %v358, 7
    %v360 = vsub.s32 %v357, %v359
    %v361 = vrot.slane %v354, %v360
    %v363 = vmul.f32 %v340, %v361
    %v365 = vlaneseq
    %v366 = vshrl.u32 %v365, 7
    %v367 = vsub.s32 0, %v366
    %v368 = vrot.slane %v363, %v367
    %v369 = vlaneseq
    %v370 = vshrl.u32 %v369, 7
    %v371 = vsub.s32 1, %v370
    %v372 = vrot.slane %v363, %v371
    %v375 = vmul.f32 %v321, %v368
    %v376 = vmul.f32 %v322, %v372
    %s377 = scalar_lea.vmem [#allocation6], 7
    %v378 = vld [vmem:[%s377] ss:$8 sm:$0x3]
    %v380 = vlaneseq
    %v381 = vshrl.u32 %v380, 7
    %v382 = vsub.s32 0, %v381
    %v383 = vrot.slane %v378, %v382
    %v384 = vlaneseq
    %v385 = vshrl.u32 %v384, 7
    %v386 = vsub.s32 1, %v385
    %v387 = vrot.slane %v378, %v386
    %v390 = vadd.f32 %v375, %v383
    %v391 = vadd.f32 %v376, %v387
    %v392 = vmul.f32 %v390, 0.2
    %v393 = vmul.f32 %v391, 0.2
    %v394 = vmax.f32 %v390, %v392
    %v395 = vmax.f32 %v391, %v393
    %v396 = vpack.c.bf16 %v394, %v394
    %v397 = vpack.c.bf16 %v395, %v395
    %v398 = vld [vmem:[#allocation2 + $0xa0] sm:$0xff]
    %v399 = vld [vmem:[#allocation2 + $0xa8] sm:$0xff]
    %v400 = vld [vmem:[#allocation2 + $0xb0] sm:$0xff]
    %v401 = vld [vmem:[#allocation2 + $0xb8] sm:$0xff]
    %v402 = vld [vmem:[#allocation2 + $0xc0] sm:$0xff]
    %v403 = vld [vmem:[#allocation2 + $0xc8] sm:$0xff]
    %v404 = vld [vmem:[#allocation2 + $0xd0] sm:$0xff]
    %v405 = vld [vmem:[#allocation2 + $0xd8] sm:$0xff]
    %v406 = vld [vmem:[#allocation2 + $0xe0] sm:$0xff]
    %v407 = vld [vmem:[#allocation2 + $0xe8] sm:$0xff]
    %v408 = vld [vmem:[#allocation2 + $0xf0] sm:$0xff]
    %v409 = vld [vmem:[#allocation2 + $0xf8] sm:$0xff]
    %v410 = vld [vmem:[#allocation2 + $0x100] sm:$0xff]
    %v411 = vld [vmem:[#allocation2 + $0x108] sm:$0xff]
    %v412 = vld [vmem:[#allocation2 + $0x110] sm:$0xff]
    %v413 = vld [vmem:[#allocation2 + $0x118] sm:$0xff]
    %v414 = vld [vmem:[#allocation2 + $0x120] sm:$0xff]
    %v415 = vld [vmem:[#allocation2 + $0x128] sm:$0xff]
    %v416 = vld [vmem:[#allocation2 + $0x130] sm:$0xff]
    %v417 = vld [vmem:[#allocation2 + $0x138] sm:$0xff]
    %v418 = vld [vmem:[#allocation2 + $0x140] sm:$0xff]
    %v419 = vld [vmem:[#allocation2 + $0x148] sm:$0xff]
    %v420 = vld [vmem:[#allocation2 + $0x150] sm:$0xff]
    %v421 = vld [vmem:[#allocation2 + $0x158] sm:$0xff]
    %v422 = vld [vmem:[#allocation2 + $0x160] sm:$0xff]
    %v423 = vld [vmem:[#allocation2 + $0x168] sm:$0xff]
    %v424 = vld [vmem:[#allocation2 + $0x170] sm:$0xff]
    %v425 = vld [vmem:[#allocation2 + $0x178] sm:$0xff]
    %v426 = vld [vmem:[#allocation2 + $0x180] sm:$0xff]
    %v427 = vld [vmem:[#allocation2 + $0x188] sm:$0xff]
    %v428 = vld [vmem:[#allocation2 + $0x190] sm:$0xff]
    %v429 = vld [vmem:[#allocation2 + $0x198] sm:$0xff]
    %430 = vmatprep.subr.bf16.mxu0 %v399
    %431 = vmatpush1.bf16.msra.mxu0 %v398
    %432 = vmatprep.subr.bf16.mxu0 %v401
    %433 = vmatpush1.bf16.msra.mxu0 %v400
    %434 = vmatprep.subr.bf16.mxu0 %v403
    %435 = vmatpush1.bf16.msra.mxu0 %v402
    %436 = vmatprep.subr.bf16.mxu0 %v405
    %437 = vmatpush1.bf16.msra.mxu0 %v404
    %438 = vmatprep.subr.bf16.mxu0 %v407
    %439 = vmatpush1.bf16.msra.mxu0 %v406
    %440 = vmatprep.subr.bf16.mxu0 %v409
    %441 = vmatpush1.bf16.msra.mxu0 %v408
    %442 = vmatprep.subr.bf16.mxu0 %v411
    %443 = vmatpush1.bf16.msra.mxu0 %v410
    %444 = vmatprep.subr.bf16.mxu0 %v413
    %445 = vmatpush1.bf16.msra.mxu0 %v412
    %446 = vmatprep.subr.bf16.mxu0 %v415
    %447 = vmatpush1.bf16.msra.mxu0 %v414
    %448 = vmatprep.subr.bf16.mxu0 %v417
    %449 = vmatpush1.bf16.msra.mxu0 %v416
    %450 = vmatprep.subr.bf16.mxu0 %v419
    %451 = vmatpush1.bf16.msra.mxu0 %v418
    %452 = vmatprep.subr.bf16.mxu0 %v421
    %453 = vmatpush1.bf16.msra.mxu0 %v420
    %454 = vmatprep.subr.bf16.mxu0 %v423
    %455 = vmatpush1.bf16.msra.mxu0 %v422
    %456 = vmatprep.subr.bf16.mxu0 %v425
    %457 = vmatpush1.bf16.msra.mxu0 %v424
    %458 = vmatprep.subr.bf16.mxu0 %v427
    %459 = vmatpush1.bf16.msra.mxu0 %v426
    %460 = vmatprep.subr.bf16.mxu0 %v429
    %461 = vmatpush1.bf16.msra.mxu0 %v428
    %462 = vmatprep.mubr.bf16.mxu0 %v397
    %463 = vmatmul.mubr.bf16.gmra.mrb[0].mxu0 %v396
    %v464 = vpop.f32.mrb[0].mxu0
    %v465 = vadd.f32 0.0, %v464
    %v466 = vpop.f32.mrb[0].mxu0
    %v467 = vadd.f32 0.0, %v466
    %v468 = vpop.f32.mrb[0].mxu0
    %v469 = vpop.f32.mrb[0].mxu0
    %470 = vdwg.mxu0
    %v471 = vrot.slane %v465, 4
    %v472 = vadd.f32 %v465, %v471
    %v473 = vrot.slane %v472, 2
    %v474 = vadd.f32 %v472, %v473
    %v475 = vrot.slane %v474, 1
    %v476 = vadd.f32 %v474, %v475
    %v477 = vrot.slane %v467, 4
    %v478 = vadd.f32 %v467, %v477
    %v479 = vrot.slane %v478, 2
    %v480 = vadd.f32 %v478, %v479
    %v481 = vrot.slane %v480, 1
    %v482 = vadd.f32 %v480, %v481
    %v483 = vmul.f32 %v476, %v318
    %v484 = vmul.f32 %v482, %v318
    %v485 = vsub.f32 %v465, %v483
    %v486 = vsub.f32 %v467, %v484
    %v487 = vmul.f32 %v485, %v485
    %v488 = vmul.f32 %v486, %v486
    %v489 = vrot.slane %v487, 4
    %v490 = vadd.f32 %v487, %v489
    %v491 = vrot.slane %v490, 2
    %v492 = vadd.f32 %v490, %v491
    %v493 = vrot.slane %v492, 1
    %v494 = vadd.f32 %v492, %v493
    %v495 = vrot.slane %v488, 4
    %v496 = vadd.f32 %v488, %v495
    %v497 = vrot.slane %v496, 2
    %v498 = vadd.f32 %v496, %v497
    %v499 = vrot.slane %v498, 1
    %v500 = vadd.f32 %v498, %v499
    %v501 = vmul.f32 %v494, %v318
    %v502 = vmul.f32 %v500, %v318
    %s503 = scalar_lea.vmem [#allocation6], 3
    %v504 = vld [vmem:[%s503] ss:$8 sm:$0x3]
    %v505 = vadd.f32 %v501, 0.8
    %v506 = vadd.f32 %v502, 0.8
    %v507 = vrsqrt.pop %v505
    %v508 = vrsqrt.pop %v506
    %v511 = vcombine.low %v507, %v508
    %v513 = vunpack.c.l.s4 1966171168
    %v514 = vunpack.c.0.s8 %v513
    %v515 = vlaneseq
    %v516 = vshrl.u32 %v515, 7
    %v517 = vsub.s32 %v514, %v516
    %v518 = vrot.slane %v511, %v517
    %v520 = vunpack.c.l.s4 1966171168
    %v521 = vunpack.c.0.s8 %v520
    %v522 = vlaneseq
    %v523 = vshrl.u32 %v522, 7
    %v524 = vsub.s32 %v521, %v523
    %v525 = vrot.slane %v518, %v524
    %v527 = vmul.f32 %v504, %v525
    %v529 = vlaneseq
    %v530 = vshrl.u32 %v529, 7
    %v531 = vsub.s32 0, %v530
    %v532 = vrot.slane %v527, %v531
    %v533 = vlaneseq
    %v534 = vshrl.u32 %v533, 7
    %v535 = vsub.s32 1, %v534
    %v536 = vrot.slane %v527, %v535
    %v539 = vmul.f32 %v485, %v532
    %v540 = vmul.f32 %v486, %v536
    %s541 = scalar_lea.vmem [#allocation6], 64
    %v542 = vld [vmem:[%s541] ss:$8 sm:$0x3]
    %v544 = vlaneseq
    %v545 = vshrl.u32 %v544, 7
    %v546 = vsub.s32 0, %v545
    %v547 = vrot.slane %v542, %v546
    %v548 = vlaneseq
    %v549 = vshrl.u32 %v548, 7
    %v550 = vsub.s32 1, %v549
    %v551 = vrot.slane %v542, %v550
    %v554 = vadd.f32 %v539, %v547
    %v555 = vadd.f32 %v540, %v551
    %v556 = vmul.f32 %v554, 0.2
    %v557 = vmul.f32 %v555, 0.2
    %v558 = vmax.f32 %v554, %v556
    %v559 = vmax.f32 %v555, %v557
    %s560 = smul.u32 4, 96
    %s561 = smul.u32 %s560, 4
    %s562 = sshll.u32 %s561, 4
    %563 = dma.done %s64, %s562
    %v564 = vpack.c.bf16 %v558, %v558
    %v565 = vpack.c.bf16 %v559, %v559
    %v566 = vld [vmem:[#allocation3] sm:$0xff]
    %v567 = vld [vmem:[#allocation3 + $0x8] sm:$0xff]
    %v568 = vld [vmem:[#allocation3 + $0x10] sm:$0xff]
    %v569 = vld [vmem:[#allocation3 + $0x18] sm:$0xff]
    %v570 = vld [vmem:[#allocation3 + $0x20] sm:$0xff]
    %v571 = vld [vmem:[#allocation3 + $0x28] sm:$0xff]
    %v572 = vld [vmem:[#allocation3 + $0x30] sm:$0xff]
    %v573 = vld [vmem:[#allocation3 + $0x38] sm:$0xff]
    %v574 = vld [vmem:[#allocation3 + $0x40] sm:$0xff]
    %v575 = vld [vmem:[#allocation3 + $0x48] sm:$0xff]
    %v576 = vld [vmem:[#allocation3 + $0x50] sm:$0xff]
    %v577 = vld [vmem:[#allocation3 + $0x58] sm:$0xff]
    %v578 = vld [vmem:[#allocation3 + $0x60] sm:$0xff]
    %v579 = vld [vmem:[#allocation3 + $0x68] sm:$0xff]
    %v580 = vld [vmem:[#allocation3 + $0x70] sm:$0xff]
    %v581 = vld [vmem:[#allocation3 + $0x78] sm:$0xff]
    %v582 = vld [vmem:[#allocation3 + $0x80] sm:$0xff]
    %v583 = vld [vmem:[#allocation3 + $0x88] sm:$0xff]
    %v584 = vld [vmem:[#allocation3 + $0x90] sm:$0xff]
    %v585 = vld [vmem:[#allocation3 + $0x98] sm:$0xff]
    %v586 = vld [vmem:[#allocation3 + $0xa0] sm:$0xff]
    %v587 = vld [vmem:[#allocation3 + $0xa8] sm:$0xff]
    %v588 = vld [vmem:[#allocation3 + $0xb0] sm:$0xff]
    %v589 = vld [vmem:[#allocation3 + $0xb8] sm:$0xff]
    %v590 = vld [vmem:[#allocation3 + $0xc0] sm:$0xff]
    %v591 = vld [vmem:[#allocation3 + $0xc8] sm:$0xff]
    %v592 = vld [vmem:[#allocation3 + $0xd0] sm:$0xff]
    %v593 = vld [vmem:[#allocation3 + $0xd8] sm:$0xff]
    %v594 = vld [vmem:[#allocation3 + $0xe0] sm:$0xff]
    %v595 = vld [vmem:[#allocation3 + $0xe8] sm:$0xff]
    %v596 = vld [vmem:[#allocation3 + $0xf0] sm:$0xff]
    %v597 = vld [vmem:[#allocation3 + $0xf8] sm:$0xff]
    %v598 = vld [vmem:[#allocation3 + $0x100] sm:$0xff]
    %v599 = vld [vmem:[#allocation3 + $0x108] sm:$0xff]
    %v600 = vld [vmem:[#allocation3 + $0x110] sm:$0xff]
    %v601 = vld [vmem:[#allocation3 + $0x118] sm:$0xff]
    %v602 = vld [vmem:[#allocation3 + $0x120] sm:$0xff]
    %v603 = vld [vmem:[#allocation3 + $0x128] sm:$0xff]
    %v604 = vld [vmem:[#allocation3 + $0x130] sm:$0xff]
    %v605 = vld [vmem:[#allocation3 + $0x138] sm:$0xff]
    %v606 = vld [vmem:[#allocation3 + $0x140] sm:$0xff]
    %v607 = vld [vmem:[#allocation3 + $0x148] sm:$0xff]
    %v608 = vld [vmem:[#allocation3 + $0x150] sm:$0xff]
    %v609 = vld [vmem:[#allocation3 + $0x158] sm:$0xff]
    %v610 = vld [vmem:[#allocation3 + $0x160] sm:$0xff]
    %v611 = vld [vmem:[#allocation3 + $0x168] sm:$0xff]
    %v612 = vld [vmem:[#allocation3 + $0x170] sm:$0xff]
    %v613 = vld [vmem:[#allocation3 + $0x178] sm:$0xff]
    %v614 = vld [vmem:[#allocation3 + $0x180] sm:$0xff]
    %v615 = vld [vmem:[#allocation3 + $0x188] sm:$0xff]
    %v616 = vld [vmem:[#allocation3 + $0x190] sm:$0xff]
    %v617 = vld [vmem:[#allocation3 + $0x198] sm:$0xff]
    %v618 = vld [vmem:[#allocation3 + $0x1a0] sm:$0xff]
    %v619 = vld [vmem:[#allocation3 + $0x1a8] sm:$0xff]
    %v620 = vld [vmem:[#allocation3 + $0x1b0] sm:$0xff]
    %v621 = vld [vmem:[#allocation3 + $0x1b8] sm:$0xff]
    %v622 = vld [vmem:[#allocation3 + $0x1c0] sm:$0xff]
    %v623 = vld [vmem:[#allocation3 + $0x1c8] sm:$0xff]
    %v624 = vld [vmem:[#allocation3 + $0x1d0] sm:$0xff]
    %v625 = vld [vmem:[#allocation3 + $0x1d8] sm:$0xff]
    %v626 = vld [vmem:[#allocation3 + $0x1e0] sm:$0xff]
    %v627 = vld [vmem:[#allocation3 + $0x1e8] sm:$0xff]
    %v628 = vld [vmem:[#allocation3 + $0x1f0] sm:$0xff]
    %v629 = vld [vmem:[#allocation3 + $0x1f8] sm:$0xff]
    %630 = vmatprep.subr.bf16.mxu0 %v567
    %631 = vmatpush1.bf16.msra.mxu0 %v566
    %632 = vmatprep.subr.bf16.mxu0 %v571
    %633 = vmatpush1.bf16.msra.mxu0 %v570
    %634 = vmatprep.subr.bf16.mxu0 %v575
    %635 = vmatpush1.bf16.msra.mxu0 %v574
    %636 = vmatprep.subr.bf16.mxu0 %v579
    %637 = vmatpush1.bf16.msra.mxu0 %v578
    %638 = vmatprep.subr.bf16.mxu0 %v583
    %639 = vmatpush1.bf16.msra.mxu0 %v582
    %640 = vmatprep.subr.bf16.mxu0 %v587
    %641 = vmatpush1.bf16.msra.mxu0 %v586
    %642 = vmatprep.subr.bf16.mxu0 %v591
    %643 = vmatpush1.bf16.msra.mxu0 %v590
    %644 = vmatprep.subr.bf16.mxu0 %v595
    %645 = vmatpush1.bf16.msra.mxu0 %v594
    %646 = vmatprep.subr.bf16.mxu0 %v599
    %647 = vmatpush1.bf16.msra.mxu0 %v598
    %648 = vmatprep.subr.bf16.mxu0 %v603
    %649 = vmatpush1.bf16.msra.mxu0 %v602
    %650 = vmatprep.subr.bf16.mxu0 %v607
    %651 = vmatpush1.bf16.msra.mxu0 %v606
    %652 = vmatprep.subr.bf16.mxu0 %v611
    %653 = vmatpush1.bf16.msra.mxu0 %v610
    %654 = vmatprep.subr.bf16.mxu0 %v615
    %655 = vmatpush1.bf16.msra.mxu0 %v614
    %656 = vmatprep.subr.bf16.mxu0 %v619
    %657 = vmatpush1.bf16.msra.mxu0 %v618
    %658 = vmatprep.subr.bf16.mxu0 %v623
    %659 = vmatpush1.bf16.msra.mxu0 %v622
    %660 = vmatprep.subr.bf16.mxu0 %v627
    %661 = vmatpush1.bf16.msra.mxu0 %v626
    %662 = vmatprep.mubr.bf16.mxu0 %v565
    %663 = vmatmul.mubr.bf16.gmra.mrb[0].mxu0 %v564
    %v664 = vpop.f32.mrb[0].mxu0
    %v665 = vadd.f32 0.0, %v664
    %v666 = vpop.f32.mrb[0].mxu0
    %v667 = vadd.f32 0.0, %v666
    %v668 = vpop.f32.mrb[0].mxu0
    %v669 = vpop.f32.mrb[0].mxu0
    %670 = vdwg.mxu0
    %671 = vmatprep.subr.bf16.mxu0 %v569
    %672 = vmatpush1.bf16.msra.mxu0 %v568
    %673 = vmatprep.subr.bf16.mxu0 %v573
    %674 = vmatpush1.bf16.msra.mxu0 %v572
    %675 = vmatprep.subr.bf16.mxu0 %v577
    %676 = vmatpush1.bf16.msra.mxu0 %v576
    %677 = vmatprep.subr.bf16.mxu0 %v581
    %678 = vmatpush1.bf16.msra.mxu0 %v580
    %679 = vmatprep.subr.bf16.mxu0 %v585
    %680 = vmatpush1.bf16.msra.mxu0 %v584
    %681 = vmatprep.subr.bf16.mxu0 %v589
    %682 = vmatpush1.bf16.msra.mxu0 %v588
    %683 = vmatprep.subr.bf16.mxu0 %v593
    %684 = vmatpush1.bf16.msra.mxu0 %v592
    %685 = vmatprep.subr.bf16.mxu0 %v597
    %686 = vmatpush1.bf16.msra.mxu0 %v596
    %687 = vmatprep.subr.bf16.mxu0 %v601
    %688 = vmatpush1.bf16.msra.mxu0 %v600
    %689 = vmatprep.subr.bf16.mxu0 %v605
    %690 = vmatpush1.bf16.msra.mxu0 %v604
    %691 = vmatprep.subr.bf16.mxu0 %v609
    %692 = vmatpush1.bf16.msra.mxu0 %v608
    %693 = vmatprep.subr.bf16.mxu0 %v613
    %694 = vmatpush1.bf16.msra.mxu0 %v612
    %695 = vmatprep.subr.bf16.mxu0 %v617
    %696 = vmatpush1.bf16.msra.mxu0 %v616
    %697 = vmatprep.subr.bf16.mxu0 %v621
    %698 = vmatpush1.bf16.msra.mxu0 %v620
    %699 = vmatprep.subr.bf16.mxu0 %v625
    %700 = vmatpush1.bf16.msra.mxu0 %v624
    %701 = vmatprep.subr.bf16.mxu0 %v629
    %702 = vmatpush1.bf16.msra.mxu0 %v628
    %703 = vmatprep.mubr.bf16.mxu0 %v565
    %704 = vmatmul.mubr.bf16.gmra.mrb[0].mxu0 %v564
    %v705 = vpop.f32.mrb[0].mxu0
    %v706 = vadd.f32 0.0, %v705
    %v707 = vpop.f32.mrb[0].mxu0
    %v708 = vadd.f32 0.0, %v707
    %v709 = vpop.f32.mrb[0].mxu0
    %v710 = vpop.f32.mrb[0].mxu0
    %711 = vdwg.mxu0
    %v712 = vrot.slane %v665, 4
    %v713 = vadd.f32 %v665, %v712
    %v714 = vrot.slane %v713, 2
    %v715 = vadd.f32 %v713, %v714
    %v716 = vrot.slane %v715, 1
    %v717 = vadd.f32 %v715, %v716
    %v718 = vrot.slane %v667, 4
    %v719 = vadd.f32 %v667, %v718
    %v720 = vrot.slane %v719, 2
    %v721 = vadd.f32 %v719, %v720
    %v722 = vrot.slane %v721, 1
    %v723 = vadd.f32 %v721, %v722
    %v724 = vrot.slane %v706, 4
    %v725 = vadd.f32 %v706, %v724
    %v726 = vrot.slane %v725, 2
    %v727 = vadd.f32 %v725, %v726
    %v728 = vrot.slane %v727, 1
    %v729 = vadd.f32 %v727, %v728
    %v730 = vrot.slane %v708, 4
    %v731 = vadd.f32 %v708, %v730
    %v732 = vrot.slane %v731, 2
    %v733 = vadd.f32 %v731, %v732
    %v734 = vrot.slane %v733, 1
    %v735 = vadd.f32 %v733, %v734
    %v736 = vmul.f32 %v717, %v318
    %v737 = vmul.f32 %v723, %v318
    %v738 = vmul.f32 %v729, %v318
    %v739 = vmul.f32 %v735, %v318
    %v740 = vsub.f32 %v665, %v736
    %v741 = vsub.f32 %v667, %v737
    %v742 = vsub.f32 %v706, %v738
    %v743 = vsub.f32 %v708, %v739
    %v744 = vmul.f32 %v740, %v740
    %v745 = vmul.f32 %v741, %v741
    %v746 = vmul.f32 %v742, %v742
    %v747 = vmul.f32 %v743, %v743
    %v748 = vrot.slane %v744, 4
    %v749 = vadd.f32 %v744, %v748
    %v750 = vrot.slane %v749, 2
    %v751 = vadd.f32 %v749, %v750
    %v752 = vrot.slane %v751, 1
    %v753 = vadd.f32 %v751, %v752
    %v754 = vrot.slane %v745, 4
    %v755 = vadd.f32 %v745, %v754
    %v756 = vrot.slane %v755, 2
    %v757 = vadd.f32 %v755, %v756
    %v758 = vrot.slane %v757, 1
    %v759 = vadd.f32 %v757, %v758
    %v760 = vrot.slane %v746, 4
    %v761 = vadd.f32 %v746, %v760
    %v762 = vrot.slane %v761, 2
    %v763 = vadd.f32 %v761, %v762
    %v764 = vrot.slane %v763, 1
    %v765 = vadd.f32 %v763, %v764
    %v766 = vrot.slane %v747, 4
    %v767 = vadd.f32 %v747, %v766
    %v768 = vrot.slane %v767, 2
    %v769 = vadd.f32 %v767, %v768
    %v770 = vrot.slane %v769, 1
    %v771 = vadd.f32 %v769, %v770
    %v772 = vmul.f32 %v753, %v318
    %v773 = vmul.f32 %v759, %v318
    %v774 = vmul.f32 %v765, %v318
    %v775 = vmul.f32 %v771, %v318
    %s776 = scalar_lea.vmem [#allocation6], 4
    %v777 = vld [vmem:[%s776] ss:$8 sm:$0xf]
    %v778 = vadd.f32 %v772, 0.8
    %v779 = vadd.f32 %v773, 0.8
    %v780 = vadd.f32 %v774, 0.8
    %v781 = vadd.f32 %v775, 0.8
    %v782 = vrsqrt.pop %v778
    %v783 = vrsqrt.pop %v779
    %v784 = vrsqrt.pop %v780
    %v785 = vrsqrt.pop %v781
    %v790 = vcombine.low %v782, %v783
    %v791 = vcombine.low %v784, %v785
    %v793 = vunpack.c.l.s4 1966171168
    %v794 = vunpack.c.0.s8 %v793
    %v795 = vlaneseq
    %v796 = vshrl.u32 %v795, 7
    %v797 = vsub.s32 %v794, %v796
    %v798 = vrot.slane %v790, %v797
    %v800 = vunpack.c.l.s4 1966171168
    %v801 = vunpack.c.0.s8 %v800
    %v802 = vlaneseq
    %v803 = vshrl.u32 %v802, 7
    %v804 = vsub.s32 %v801, %v803
    %v805 = vrot.slane %v791, %v804
    %v806 = vcombine.low %v798, %v805
    %v808 = vunpack.c.l.s4 1966171168
    %v809 = vunpack.c.0.s8 %v808
    %v810 = vlaneseq
    %v811 = vshrl.u32 %v810, 7
    %v812 = vsub.s32 %v809, %v811
    %v813 = vrot.slane %v806, %v812
    %v815 = vmul.f32 %v777, %v813
    %v817 = vlaneseq
    %v818 = vshrl.u32 %v817, 7
    %v819 = vsub.s32 0, %v818
    %v820 = vrot.slane %v815, %v819
    %v821 = vlaneseq
    %v822 = vshrl.u32 %v821, 7
    %v823 = vsub.s32 1, %v822
    %v824 = vrot.slane %v815, %v823
    %v825 = vlaneseq
    %v826 = vshrl.u32 %v825, 7
    %v827 = vsub.s32 2, %v826
    %v828 = vrot.slane %v815, %v827
    %v829 = vlaneseq
    %v830 = vshrl.u32 %v829, 7
    %v831 = vsub.s32 3, %v830
    %v832 = vrot.slane %v815, %v831
    %v837 = vmul.f32 %v740, %v820
    %v838 = vmul.f32 %v741, %v824
    %v839 = vmul.f32 %v742, %v828
    %v840 = vmul.f32 %v743, %v832
    %s841 = scalar_lea.vmem [#allocation6], 65
    %v842 = vld [vmem:[%s841] ss:$8 sm:$0xf]
    %v844 = vlaneseq
    %v845 = vshrl.u32 %v844, 7
    %v846 = vsub.s32 0, %v845
    %v847 = vrot.slane %v842, %v846
    %v848 = vlaneseq
    %v849 = vshrl.u32 %v848, 7
    %v850 = vsub.s32 1, %v849
    %v851 = vrot.slane %v842, %v850
    %v852 = vlaneseq
    %v853 = vshrl.u32 %v852, 7
    %v854 = vsub.s32 2, %v853
    %v855 = vrot.slane %v842, %v854
    %v856 = vlaneseq
    %v857 = vshrl.u32 %v856, 7
    %v858 = vsub.s32 3, %v857
    %v859 = vrot.slane %v842, %v858
    %v864 = vadd.f32 %v837, %v847
    %v865 = vadd.f32 %v838, %v851
    %v866 = vadd.f32 %v839, %v855
    %v867 = vadd.f32 %v840, %v859
    %v868 = vmul.f32 %v864, 0.2
    %v869 = vmul.f32 %v865, 0.2
    %v870 = vmul.f32 %v866, 0.2
    %v871 = vmul.f32 %v867, 0.2
    %v872 = vmax.f32 %v864, %v868
    %v873 = vmax.f32 %v865, %v869
    %v874 = vmax.f32 %v866, %v870
    %v875 = vmax.f32 %v867, %v871
    %v876 = vpack.c.bf16 %v872, %v872
    %v877 = vpack.c.bf16 %v873, %v873
    %v878 = vpack.c.bf16 %v874, %v874
    %v879 = vpack.c.bf16 %v875, %v875
    %v880 = vld [vmem:[#allocation3 + $0x200] sm:$0xff]
    %v881 = vld [vmem:[#allocation3 + $0x208] sm:$0xff]
    %v882 = vld [vmem:[#allocation3 + $0x210] sm:$0xff]
    %v883 = vld [vmem:[#allocation3 + $0x218] sm:$0xff]
    %v884 = vld [vmem:[#allocation3 + $0x220] sm:$0xff]
    %v885 = vld [vmem:[#allocation3 + $0x228] sm:$0xff]
    %v886 = vld [vmem:[#allocation3 + $0x230] sm:$0xff]
    %v887 = vld [vmem:[#allocation3 + $0x238] sm:$0xff]
    %v888 = vld [vmem:[#allocation3 + $0x240] sm:$0xff]
    %v889 = vld [vmem:[#allocation3 + $0x248] sm:$0xff]
    %v890 = vld [vmem:[#allocation3 + $0x250] sm:$0xff]
    %v891 = vld [vmem:[#allocation3 + $0x258] sm:$0xff]
    %v892 = vld [vmem:[#allocation3 + $0x260] sm:$0xff]
    %v893 = vld [vmem:[#allocation3 + $0x268] sm:$0xff]
    %v894 = vld [vmem:[#allocation3 + $0x270] sm:$0xff]
    %v895 = vld [vmem:[#allocation3 + $0x278] sm:$0xff]
    %v896 = vld [vmem:[#allocation3 + $0x280] sm:$0xff]
    %v897 = vld [vmem:[#allocation3 + $0x288] sm:$0xff]
    %v898 = vld [vmem:[#allocation3 + $0x290] sm:$0xff]
    %v899 = vld [vmem:[#allocation3 + $0x298] sm:$0xff]
    %v900 = vld [vmem:[#allocation3 + $0x2a0] sm:$0xff]
    %v901 = vld [vmem:[#allocation3 + $0x2a8] sm:$0xff]
    %v902 = vld [vmem:[#allocation3 + $0x2b0] sm:$0xff]
    %v903 = vld [vmem:[#allocation3 + $0x2b8] sm:$0xff]
    %v904 = vld [vmem:[#allocation3 + $0x2c0] sm:$0xff]
    %v905 = vld [vmem:[#allocation3 + $0x2c8] sm:$0xff]
    %v906 = vld [vmem:[#allocation3 + $0x2d0] sm:$0xff]
    %v907 = vld [vmem:[#allocation3 + $0x2d8] sm:$0xff]
    %v908 = vld [vmem:[#allocation3 + $0x2e0] sm:$0xff]
    %v909 = vld [vmem:[#allocation3 + $0x2e8] sm:$0xff]
    %v910 = vld [vmem:[#allocation3 + $0x2f0] sm:$0xff]
    %v911 = vld [vmem:[#allocation3 + $0x2f8] sm:$0xff]
    %v912 = vld [vmem:[#allocation3 + $0x300] sm:$0xff]
    %v913 = vld [vmem:[#allocation3 + $0x308] sm:$0xff]
    %v914 = vld [vmem:[#allocation3 + $0x310] sm:$0xff]
    %v915 = vld [vmem:[#allocation3 + $0x318] sm:$0xff]
    %v916 = vld [vmem:[#allocation3 + $0x320] sm:$0xff]
    %v917 = vld [vmem:[#allocation3 + $0x328] sm:$0xff]
    %v918 = vld [vmem:[#allocation3 + $0x330] sm:$0xff]
    %v919 = vld [vmem:[#allocation3 + $0x338] sm:$0xff]
    %v920 = vld [vmem:[#allocation3 + $0x340] sm:$0xff]
    %v921 = vld [vmem:[#allocation3 + $0x348] sm:$0xff]
    %v922 = vld [vmem:[#allocation3 + $0x350] sm:$0xff]
    %v923 = vld [vmem:[#allocation3 + $0x358] sm:$0xff]
    %v924 = vld [vmem:[#allocation3 + $0x360] sm:$0xff]
    %v925 = vld [vmem:[#allocation3 + $0x368] sm:$0xff]
    %v926 = vld [vmem:[#allocation3 + $0x370] sm:$0xff]
    %v927 = vld [vmem:[#allocation3 + $0x378] sm:$0xff]
    %v928 = vld [vmem:[#allocation3 + $0x380] sm:$0xff]
    %v929 = vld [vmem:[#allocation3 + $0x388] sm:$0xff]
    %v930 = vld [vmem:[#allocation3 + $0x390] sm:$0xff]
    %v931 = vld [vmem:[#allocation3 + $0x398] sm:$0xff]
    %v932 = vld [vmem:[#allocation3 + $0x3a0] sm:$0xff]
    %v933 = vld [vmem:[#allocation3 + $0x3a8] sm:$0xff]
    %v934 = vld [vmem:[#allocation3 + $0x3b0] sm:$0xff]
    %v935 = vld [vmem:[#allocation3 + $0x3b8] sm:$0xff]
    %v936 = vld [vmem:[#allocation3 + $0x3c0] sm:$0xff]
    %v937 = vld [vmem:[#allocation3 + $0x3c8] sm:$0xff]
    %v938 = vld [vmem:[#allocation3 + $0x3d0] sm:$0xff]
    %v939 = vld [vmem:[#allocation3 + $0x3d8] sm:$0xff]
    %v940 = vld [vmem:[#allocation3 + $0x3e0] sm:$0xff]
    %v941 = vld [vmem:[#allocation3 + $0x3e8] sm:$0xff]
    %v942 = vld [vmem:[#allocation3 + $0x3f0] sm:$0xff]
    %v943 = vld [vmem:[#allocation3 + $0x3f8] sm:$0xff]
    %v944 = vld [vmem:[#allocation3 + $0x400] sm:$0xff]
    %v945 = vld [vmem:[#allocation3 + $0x408] sm:$0xff]
    %v946 = vld [vmem:[#allocation3 + $0x410] sm:$0xff]
    %v947 = vld [vmem:[#allocation3 + $0x418] sm:$0xff]
    %v948 = vld [vmem:[#allocation3 + $0x420] sm:$0xff]
    %v949 = vld [vmem:[#allocation3 + $0x428] sm:$0xff]
    %v950 = vld [vmem:[#allocation3 + $0x430] sm:$0xff]
    %v951 = vld [vmem:[#allocation3 + $0x438] sm:$0xff]
    %v952 = vld [vmem:[#allocation3 + $0x440] sm:$0xff]
    %v953 = vld [vmem:[#allocation3 + $0x448] sm:$0xff]
    %v954 = vld [vmem:[#allocation3 + $0x450] sm:$0xff]
    %v955 = vld [vmem:[#allocation3 + $0x458] sm:$0xff]
    %v956 = vld [vmem:[#allocation3 + $0x460] sm:$0xff]
    %v957 = vld [vmem:[#allocation3 + $0x468] sm:$0xff]
    %v958 = vld [vmem:[#allocation3 + $0x470] sm:$0xff]
    %v959 = vld [vmem:[#allocation3 + $0x478] sm:$0xff]
    %v960 = vld [vmem:[#allocation3 + $0x480] sm:$0xff]
    %v961 = vld [vmem:[#allocation3 + $0x488] sm:$0xff]
    %v962 = vld [vmem:[#allocation3 + $0x490] sm:$0xff]
    %v963 = vld [vmem:[#allocation3 + $0x498] sm:$0xff]
    %v964 = vld [vmem:[#allocation3 + $0x4a0] sm:$0xff]
    %v965 = vld [vmem:[#allocation3 + $0x4a8] sm:$0xff]
    %v966 = vld [vmem:[#allocation3 + $0x4b0] sm:$0xff]
    %v967 = vld [vmem:[#allocation3 + $0x4b8] sm:$0xff]
    %v968 = vld [vmem:[#allocation3 + $0x4c0] sm:$0xff]
    %v969 = vld [vmem:[#allocation3 + $0x4c8] sm:$0xff]
    %v970 = vld [vmem:[#allocation3 + $0x4d0] sm:$0xff]
    %v971 = vld [vmem:[#allocation3 + $0x4d8] sm:$0xff]
    %v972 = vld [vmem:[#allocation3 + $0x4e0] sm:$0xff]
    %v973 = vld [vmem:[#allocation3 + $0x4e8] sm:$0xff]
    %v974 = vld [vmem:[#allocation3 + $0x4f0] sm:$0xff]
    %v975 = vld [vmem:[#allocation3 + $0x4f8] sm:$0xff]
    %v976 = vld [vmem:[#allocation3 + $0x500] sm:$0xff]
    %v977 = vld [vmem:[#allocation3 + $0x508] sm:$0xff]
    %v978 = vld [vmem:[#allocation3 + $0x510] sm:$0xff]
    %v979 = vld [vmem:[#allocation3 + $0x518] sm:$0xff]
    %v980 = vld [vmem:[#allocation3 + $0x520] sm:$0xff]
    %v981 = vld [vmem:[#allocation3 + $0x528] sm:$0xff]
    %v982 = vld [vmem:[#allocation3 + $0x530] sm:$0xff]
    %v983 = vld [vmem:[#allocation3 + $0x538] sm:$0xff]
    %v984 = vld [vmem:[#allocation3 + $0x540] sm:$0xff]
    %v985 = vld [vmem:[#allocation3 + $0x548] sm:$0xff]
    %v986 = vld [vmem:[#allocation3 + $0x550] sm:$0xff]
    %v987 = vld [vmem:[#allocation3 + $0x558] sm:$0xff]
    %v988 = vld [vmem:[#allocation3 + $0x560] sm:$0xff]
    %v989 = vld [vmem:[#allocation3 + $0x568] sm:$0xff]
    %v990 = vld [vmem:[#allocation3 + $0x570] sm:$0xff]
    %v991 = vld [vmem:[#allocation3 + $0x578] sm:$0xff]
    %v992 = vld [vmem:[#allocation3 + $0x580] sm:$0xff]
    %v993 = vld [vmem:[#allocation3 + $0x588] sm:$0xff]
    %v994 = vld [vmem:[#allocation3 + $0x590] sm:$0xff]
    %v995 = vld [vmem:[#allocation3 + $0x598] sm:$0xff]
    %v996 = vld [vmem:[#allocation3 + $0x5a0] sm:$0xff]
    %v997 = vld [vmem:[#allocation3 + $0x5a8] sm:$0xff]
    %v998 = vld [vmem:[#allocation3 + $0x5b0] sm:$0xff]
    %v999 = vld [vmem:[#allocation3 + $0x5b8] sm:$0xff]
    %v1000 = vld [vmem:[#allocation3 + $0x5c0] sm:$0xff]
    %v1001 = vld [vmem:[#allocation3 + $0x5c8] sm:$0xff]
    %v1002 = vld [vmem:[#allocation3 + $0x5d0] sm:$0xff]
    %v1003 = vld [vmem:[#allocation3 + $0x5d8] sm:$0xff]
    %v1004 = vld [vmem:[#allocation3 + $0x5e0] sm:$0xff]
    %v1005 = vld [vmem:[#allocation3 + $0x5e8] sm:$0xff]
    %v1006 = vld [vmem:[#allocation3 + $0x5f0] sm:$0xff]
    %v1007 = vld [vmem:[#allocation3 + $0x5f8] sm:$0xff]
    %1008 = vmatprep.subr.bf16.mxu0 %v881
    %1009 = vmatpush1.bf16.msra.mxu0 %v880
    %1010 = vmatprep.subr.bf16.mxu0 %v885
    %1011 = vmatpush1.bf16.msra.mxu0 %v884
    %1012 = vmatprep.subr.bf16.mxu0 %v889
    %1013 = vmatpush1.bf16.msra.mxu0 %v888
    %1014 = vmatprep.subr.bf16.mxu0 %v893
    %1015 = vmatpush1.bf16.msra.mxu0 %v892
    %1016 = vmatprep.subr.bf16.mxu0 %v897
    %1017 = vmatpush1.bf16.msra.mxu0 %v896
    %1018 = vmatprep.subr.bf16.mxu0 %v901
    %1019 = vmatpush1.bf16.msra.mxu0 %v900
    %1020 = vmatprep.subr.bf16.mxu0 %v905
    %1021 = vmatpush1.bf16.msra.mxu0 %v904
    %1022 = vmatprep.subr.bf16.mxu0 %v909
    %1023 = vmatpush1.bf16.msra.mxu0 %v908
    %1024 = vmatprep.subr.bf16.mxu0 %v913
    %1025 = vmatpush1.bf16.msra.mxu0 %v912
    %1026 = vmatprep.subr.bf16.mxu0 %v917
    %1027 = vmatpush1.bf16.msra.mxu0 %v916
    %1028 = vmatprep.subr.bf16.mxu0 %v921
    %1029 = vmatpush1.bf16.msra.mxu0 %v920
    %1030 = vmatprep.subr.bf16.mxu0 %v925
    %1031 = vmatpush1.bf16.msra.mxu0 %v924
    %1032 = vmatprep.subr.bf16.mxu0 %v929
    %1033 = vmatpush1.bf16.msra.mxu0 %v928
    %1034 = vmatprep.subr.bf16.mxu0 %v933
    %1035 = vmatpush1.bf16.msra.mxu0 %v932
    %1036 = vmatprep.subr.bf16.mxu0 %v937
    %1037 = vmatpush1.bf16.msra.mxu0 %v936
    %1038 = vmatprep.subr.bf16.mxu0 %v941
    %1039 = vmatpush1.bf16.msra.mxu0 %v940
    %1040 = vmatprep.mubr.bf16.mxu0 %v877
    %1041 = vmatmul.mubr.bf16.gmra.mrb[0].mxu0 %v876
    %v1042 = vpop.f32.mrb[0].mxu0
    %v1043 = vadd.f32 0.0, %v1042
    %v1044 = vpop.f32.mrb[0].mxu0
    %v1045 = vadd.f32 0.0, %v1044
    %v1046 = vpop.f32.mrb[0].mxu0
    %v1047 = vpop.f32.mrb[0].mxu0
    %1048 = vdwg.mxu0
    %1049 = vmatprep.subr.bf16.mxu0 %v945
    %1050 = vmatpush1.bf16.msra.mxu0 %v944
    %1051 = vmatprep.subr.bf16.mxu0 %v949
    %1052 = vmatpush1.bf16.msra.mxu0 %v948
    %1053 = vmatprep.subr.bf16.mxu0 %v953
    %1054 = vmatpush1.bf16.msra.mxu0 %v952
    %1055 = vmatprep.subr.bf16.mxu0 %v957
    %1056 = vmatpush1.bf16.msra.mxu0 %v956
    %1057 = vmatprep.subr.bf16.mxu0 %v961
    %1058 = vmatpush1.bf16.msra.mxu0 %v960
    %1059 = vmatprep.subr.bf16.mxu0 %v965
    %1060 = vmatpush1.bf16.msra.mxu0 %v964
    %1061 = vmatprep.subr.bf16.mxu0 %v969
    %1062 = vmatpush1.bf16.msra.mxu0 %v968
    %1063 = vmatprep.subr.bf16.mxu0 %v973
    %1064 = vmatpush1.bf16.msra.mxu0 %v972
    %1065 = vmatprep.subr.bf16.mxu0 %v977
    %1066 = vmatpush1.bf16.msra.mxu0 %v976
    %1067 = vmatprep.subr.bf16.mxu0 %v981
    %1068 = vmatpush1.bf16.msra.mxu0 %v980
    %1069 = vmatprep.subr.bf16.mxu0 %v985
    %1070 = vmatpush1.bf16.msra.mxu0 %v984
    %1071 = vmatprep.subr.bf16.mxu0 %v989
    %1072 = vmatpush1.bf16.msra.mxu0 %v988
    %1073 = vmatprep.subr.bf16.mxu0 %v993
    %1074 = vmatpush1.bf16.msra.mxu0 %v992
    %1075 = vmatprep.subr.bf16.mxu0 %v997
    %1076 = vmatpush1.bf16.msra.mxu0 %v996
    %1077 = vmatprep.subr.bf16.mxu0 %v1001
    %1078 = vmatpush1.bf16.msra.mxu0 %v1000
    %1079 = vmatprep.subr.bf16.mxu0 %v1005
    %1080 = vmatpush1.bf16.msra.mxu0 %v1004
    %1081 = vmatprep.mubr.bf16.mxu0 %v879
    %1082 = vmatmul.mubr.bf16.gmra.mrb[0].mxu0 %v878
    %v1083 = vpop.f32.mrb[0].mxu0
    %v1084 = vadd.f32 %v1043, %v1083
    %v1085 = vpop.f32.mrb[0].mxu0
    %v1086 = vadd.f32 %v1045, %v1085
    %v1087 = vpop.f32.mrb[0].mxu0
    %v1088 = vpop.f32.mrb[0].mxu0
    %1089 = vdwg.mxu0
    %1090 = vmatprep.subr.bf16.mxu0 %v883
    %1091 = vmatpush1.bf16.msra.mxu0 %v882
    %1092 = vmatprep.subr.bf16.mxu0 %v887
    %1093 = vmatpush1.bf16.msra.mxu0 %v886
    %1094 = vmatprep.subr.bf16.mxu0 %v891
    %1095 = vmatpush1.bf16.msra.mxu0 %v890
    %1096 = vmatprep.subr.bf16.mxu0 %v895
    %1097 = vmatpush1.bf16.msra.mxu0 %v894
    %1098 = vmatprep.subr.bf16.mxu0 %v899
    %1099 = vmatpush1.bf16.msra.mxu0 %v898
    %1100 = vmatprep.subr.bf16.mxu0 %v903
    %1101 = vmatpush1.bf16.msra.mxu0 %v902
    %1102 = vmatprep.subr.bf16.mxu0 %v907
    %1103 = vmatpush1.bf16.msra.mxu0 %v906
    %1104 = vmatprep.subr.bf16.mxu0 %v911
    %1105 = vmatpush1.bf16.msra.mxu0 %v910
    %1106 = vmatprep.subr.bf16.mxu0 %v915
    %1107 = vmatpush1.bf16.msra.mxu0 %v914
    %1108 = vmatprep.subr.bf16.mxu0 %v919
    %1109 = vmatpush1.bf16.msra.mxu0 %v918
    %1110 = vmatprep.subr.bf16.mxu0 %v923
    %1111 = vmatpush1.bf16.msra.mxu0 %v922
    %1112 = vmatprep.subr.bf16.mxu0 %v927
    %1113 = vmatpush1.bf16.msra.mxu0 %v926
    %1114 = vmatprep.subr.bf16.mxu0 %v931
    %1115 = vmatpush1.bf16.msra.mxu0 %v930
    %1116 = vmatprep.subr.bf16.mxu0 %v935
    %1117 = vmatpush1.bf16.msra.mxu0 %v934
    %1118 = vmatprep.subr.bf16.mxu0 %v939
    %1119 = vmatpush1.bf16.msra.mxu0 %v938
    %1120 = vmatprep.subr.bf16.mxu0 %v943
    %1121 = vmatpush1.bf16.msra.mxu0 %v942
    %1122 = vmatprep.mubr.bf16.mxu0 %v877
    %1123 = vmatmul.mubr.bf16.gmra.mrb[0].mxu0 %v876
    %v1124 = vpop.f32.mrb[0].mxu0
    %v1125 = vadd.f32 0.0, %v1124
    %v1126 = vpop.f32.mrb[0].mxu0
    %v1127 = vadd.f32 0.0, %v1126
    %v1128 = vpop.f32.mrb[0].mxu0
    %v1129 = vpop.f32.mrb[0].mxu0
    %1130 = vdwg.mxu0
    %1131 = vmatprep.subr.bf16.mxu0 %v947
    %1132 = vmatpush1.bf16.msra.mxu0 %v946
    %1133 = vmatprep.subr.bf16.mxu0 %v951
    %1134 = vmatpush1.bf16.msra.mxu0 %v950
    %1135 = vmatprep.subr.bf16.mxu0 %v955
    %1136 = vmatpush1.bf16.msra.mxu0 %v954
    %1137 = vmatprep.subr.bf16.mxu0 %v959
    %1138 = vmatpush1.bf16.msra.mxu0 %v958
    %1139 = vmatprep.subr.bf16.mxu0 %v963
    %1140 = vmatpush1.bf16.msra.mxu0 %v962
    %1141 = vmatprep.subr.bf16.mxu0 %v967
    %1142 = vmatpush1.bf16.msra.mxu0 %v966
    %1143 = vmatprep.subr.bf16.mxu0 %v971
    %1144 = vmatpush1.bf16.msra.mxu0 %v970
    %1145 = vmatprep.subr.bf16.mxu0 %v975
    %1146 = vmatpush1.bf16.msra.mxu0 %v974
    %1147 = vmatprep.subr.bf16.mxu0 %v979
    %1148 = vmatpush1.bf16.msra.mxu0 %v978
    %1149 = vmatprep.subr.bf16.mxu0 %v983
    %1150 = vmatpush1.bf16.msra.mxu0 %v982
    %1151 = vmatprep.subr.bf16.mxu0 %v987
    %1152 = vmatpush1.bf16.msra.mxu0 %v986
    %1153 = vmatprep.subr.bf16.mxu0 %v991
    %1154 = vmatpush1.bf16.msra.mxu0 %v990
    %1155 = vmatprep.subr.bf16.mxu0 %v995
    %1156 = vmatpush1.bf16.msra.mxu0 %v994
    %1157 = vmatprep.subr.bf16.mxu0 %v999
    %1158 = vmatpush1.bf16.msra.mxu0 %v998
    %1159 = vmatprep.subr.bf16.mxu0 %v1003
    %1160 = vmatpush1.bf16.msra.mxu0 %v1002
    %1161 = vmatprep.subr.bf16.mxu0 %v1007
    %1162 = vmatpush1.bf16.msra.mxu0 %v1006
    %1163 = vmatprep.mubr.bf16.mxu0 %v879
    %1164 = vmatmul.mubr.bf16.gmra.mrb[0].mxu0 %v878
    %v1165 = vpop.f32.mrb[0].mxu0
    %v1166 = vadd.f32 %v1125, %v1165
    %v1167 = vpop.f32.mrb[0].mxu0
    %v1168 = vadd.f32 %v1127, %v1167
    %v1169 = vpop.f32.mrb[0].mxu0
    %v1170 = vpop.f32.mrb[0].mxu0
    %1171 = vdwg.mxu0
    %v1172 = vrot.slane %v1084, 4
    %v1173 = vadd.f32 %v1084, %v1172
    %v1174 = vrot.slane %v1173, 2
    %v1175 = vadd.f32 %v1173, %v1174
    %v1176 = vrot.slane %v1175, 1
    %v1177 = vadd.f32 %v1175, %v1176
    %v1178 = vrot.slane %v1086, 4
    %v1179 = vadd.f32 %v1086, %v1178
    %v1180 = vrot.slane %v1179, 2
    %v1181 = vadd.f32 %v1179, %v1180
    %v1182 = vrot.slane %v1181, 1
    %v1183 = vadd.f32 %v1181, %v1182
    %v1184 = vrot.slane %v1166, 4
    %v1185 = vadd.f32 %v1166, %v1184
    %v1186 = vrot.slane %v1185, 2
    %v1187 = vadd.f32 %v1185, %v1186
    %v1188 = vrot.slane %v1187, 1
    %v1189 = vadd.f32 %v1187, %v1188
    %v1190 = vrot.slane %v1168, 4
    %v1191 = vadd.f32 %v1168, %v1190
    %v1192 = vrot.slane %v1191, 2
    %v1193 = vadd.f32 %v1191, %v1192
    %v1194 = vrot.slane %v1193, 1
    %v1195 = vadd.f32 %v1193, %v1194
    %v1196 = vmul.f32 %v1177, %v318
    %v1197 = vmul.f32 %v1183, %v318
    %v1198 = vmul.f32 %v1189, %v318
    %v1199 = vmul.f32 %v1195, %v318
    %v1200 = vsub.f32 %v1084, %v1196
    %v1201 = vsub.f32 %v1086, %v1197
    %v1202 = vsub.f32 %v1166, %v1198
    %v1203 = vsub.f32 %v1168, %v1199
    %v1204 = vmul.f32 %v1200, %v1200
    %v1205 = vmul.f32 %v1201, %v1201
    %v1206 = vmul.f32 %v1202, %v1202
    %v1207 = vmul.f32 %v1203, %v1203
    %v1208 = vrot.slane %v1204, 4
    %v1209 = vadd.f32 %v1204, %v1208
    %v1210 = vrot.slane %v1209, 2
    %v1211 = vadd.f32 %v1209, %v1210
    %v1212 = vrot.slane %v1211, 1
    %v1213 = vadd.f32 %v1211, %v1212
    %v1214 = vrot.slane %v1205, 4
    %v1215 = vadd.f32 %v1205, %v1214
    %v1216 = vrot.slane %v1215, 2
    %v1217 = vadd.f32 %v1215, %v1216
    %v1218 = vrot.slane %v1217, 1
    %v1219 = vadd.f32 %v1217, %v1218
    %v1220 = vrot.slane %v1206, 4
    %v1221 = vadd.f32 %v1206, %v1220
    %v1222 = vrot.slane %v1221, 2
    %v1223 = vadd.f32 %v1221, %v1222
    %v1224 = vrot.slane %v1223, 1
    %v1225 = vadd.f32 %v1223, %v1224
    %v1226 = vrot.slane %v1207, 4
    %v1227 = vadd.f32 %v1207, %v1226
    %v1228 = vrot.slane %v1227, 2
    %v1229 = vadd.f32 %v1227, %v1228
    %v1230 = vrot.slane %v1229, 1
    %v1231 = vadd.f32 %v1229, %v1230
    %v1232 = vmul.f32 %v1213, %v318
    %v1233 = vmul.f32 %v1219, %v318
    %v1234 = vmul.f32 %v1225, %v318
    %v1235 = vmul.f32 %v1231, %v318
    %s1236 = scalar_lea.vmem [#allocation6], 5
    %v1237 = vld [vmem:[%s1236] ss:$8 sm:$0xf]
    %v1238 = vadd.f32 %v1232, 0.8
    %v1239 = vadd.f32 %v1233, 0.8
    %v1240 = vadd.f32 %v1234, 0.8
    %v1241 = vadd.f32 %v1235, 0.8
    %v1242 = vrsqrt.pop %v1238
    %v1243 = vrsqrt.pop %v1239
    %v1244 = vrsqrt.pop %v1240
    %v1245 = vrsqrt.pop %v1241
    %v1250 = vcombine.low %v1242, %v1243
    %v1251 = vcombine.low %v1244, %v1245
    %v1253 = vunpack.c.l.s4 1966171168
    %v1254 = vunpack.c.0.s8 %v1253
    %v1255 = vlaneseq
    %v1256 = vshrl.u32 %v1255, 7
    %v1257 = vsub.s32 %v1254, %v1256
    %v1258 = vrot.slane %v1250, %v1257
    %v1260 = vunpack.c.l.s4 1966171168
    %v1261 = vunpack.c.0.s8 %v1260
    %v1262 = vlaneseq
    %v1263 = vshrl.u32 %v1262, 7
    %v1264 = vsub.s32 %v1261, %v1263
    %v1265 = vrot.slane %v1251, %v1264
    %v1266 = vcombine.low %v1258, %v1265
    %v1268 = vunpack.c.l.s4 1966171168
    %v1269 = vunpack.c.0.s8 %v1268
    %v1270 = vlaneseq
    %v1271 = vshrl.u32 %v1270, 7
    %v1272 = vsub.s32 %v1269, %v1271
    %v1273 = vrot.slane %v1266, %v1272
    %v1275 = vmul.f32 %v1237, %v1273
    %v1277 = vlaneseq
    %v1278 = vshrl.u32 %v1277, 7
    %v1279 = vsub.s32 0, %v1278
    %v1280 = vrot.slane %v1275, %v1279
    %v1281 = vlaneseq
    %v1282 = vshrl.u32 %v1281, 7
    %v1283 = vsub.s32 1, %v1282
    %v1284 = vrot.slane %v1275, %v1283
    %v1285 = vlaneseq
    %v1286 = vshrl.u32 %v1285, 7
    %v1287 = vsub.s32 2, %v1286
    %v1288 = vrot.slane %v1275, %v1287
    %v1289 = vlaneseq
    %v1290 = vshrl.u32 %v1289, 7
    %v1291 = vsub.s32 3, %v1290
    %v1292 = vrot.slane %v1275, %v1291
    %v1297 = vmul.f32 %v1200, %v1280
    %v1298 = vmul.f32 %v1201, %v1284
    %v1299 = vmul.f32 %v1202, %v1288
    %v1300 = vmul.f32 %v1203, %v1292
    %s1301 = scalar_lea.vmem [#allocation6], 66
    %v1302 = vld [vmem:[%s1301] ss:$8 sm:$0xf]
    %v1304 = vlaneseq
    %v1305 = vshrl.u32 %v1304, 7
    %v1306 = vsub.s32 0, %v1305
    %v1307 = vrot.slane %v1302, %v1306
    %v1308 = vlaneseq
    %v1309 = vshrl.u32 %v1308, 7
    %v1310 = vsub.s32 1, %v1309
    %v1311 = vrot.slane %v1302, %v1310
    %v1312 = vlaneseq
    %v1313 = vshrl.u32 %v1312, 7
    %v1314 = vsub.s32 2, %v1313
    %v1315 = vrot.slane %v1302, %v1314
    %v1316 = vlaneseq
    %v1317 = vshrl.u32 %v1316, 7
    %v1318 = vsub.s32 3, %v1317
    %v1319 = vrot.slane %v1302, %v1318
    %v1324 = vadd.f32 %v1297, %v1307
    %v1325 = vadd.f32 %v1298, %v1311
    %v1326 = vadd.f32 %v1299, %v1315
    %v1327 = vadd.f32 %v1300, %v1319
    %v1328 = vmul.f32 %v1324, 0.2
    %v1329 = vmul.f32 %v1325, 0.2
    %v1330 = vmul.f32 %v1326, 0.2
    %v1331 = vmul.f32 %v1327, 0.2
    %v1332 = vmax.f32 %v1324, %v1328
    %v1333 = vmax.f32 %v1325, %v1329
    %v1334 = vmax.f32 %v1326, %v1330
    %v1335 = vmax.f32 %v1327, %v1331
    %s1336 = smul.u32 4, 64
    %s1337 = smul.u32 %s1336, 8
    %s1338 = sshll.u32 %s1337, 4
    %1339 = dma.done %s99, %s1338
    %v1340 = vpack.c.bf16 %v1332, %v1332
    %v1341 = vpack.c.bf16 %v1333, %v1333
    %v1342 = vpack.c.bf16 %v1334, %v1334
    %v1343 = vpack.c.bf16 %v1335, %v1335
    %v1344 = vld [vmem:[#allocation4] sm:$0xff]
    %v1345 = vld [vmem:[#allocation4 + $0x8] sm:$0xff]
    %v1346 = vld [vmem:[#allocation4 + $0x10] sm:$0xff]
    %v1347 = vld [vmem:[#allocation4 + $0x18] sm:$0xff]
    %v1348 = vld [vmem:[#allocation4 + $0x20] sm:$0xff]
    %v1349 = vld [vmem:[#allocation4 + $0x28] sm:$0xff]
    %v1350 = vld [vmem:[#allocation4 + $0x30] sm:$0xff]
    %v1351 = vld [vmem:[#allocation4 + $0x38] sm:$0xff]
    %v1352 = vld [vmem:[#allocation4 + $0x40] sm:$0xff]
    %v1353 = vld [vmem:[#allocation4 + $0x48] sm:$0xff]
    %v1354 = vld [vmem:[#allocation4 + $0x50] sm:$0xff]
    %v1355 = vld [vmem:[#allocation4 + $0x58] sm:$0xff]
    %v1356 = vld [vmem:[#allocation4 + $0x60] sm:$0xff]
    %v1357 = vld [vmem:[#allocation4 + $0x68] sm:$0xff]
    %v1358 = vld [vmem:[#allocation4 + $0x70] sm:$0xff]
    %v1359 = vld [vmem:[#allocation4 + $0x78] sm:$0xff]
    %v1360 = vld [vmem:[#allocation4 + $0x80] sm:$0xff]
    %v1361 = vld [vmem:[#allocation4 + $0x88] sm:$0xff]
    %v1362 = vld [vmem:[#allocation4 + $0x90] sm:$0xff]
    %v1363 = vld [vmem:[#allocation4 + $0x98] sm:$0xff]
    %v1364 = vld [vmem:[#allocation4 + $0xa0] sm:$0xff]
    %v1365 = vld [vmem:[#allocation4 + $0xa8] sm:$0xff]
    %v1366 = vld [vmem:[#allocation4 + $0xb0] sm:$0xff]
    %v1367 = vld [vmem:[#allocation4 + $0xb8] sm:$0xff]
    %v1368 = vld [vmem:[#allocation4 + $0xc0] sm:$0xff]
    %v1369 = vld [vmem:[#allocation4 + $0xc8] sm:$0xff]
    %v1370 = vld [vmem:[#allocation4 + $0xd0] sm:$0xff]
    %v1371 = vld [vmem:[#allocation4 + $0xd8] sm:$0xff]
    %v1372 = vld [vmem:[#allocation4 + $0xe0] sm:$0xff]
    %v1373 = vld [vmem:[#allocation4 + $0xe8] sm:$0xff]
    %v1374 = vld [vmem:[#allocation4 + $0xf0] sm:$0xff]
    %v1375 = vld [vmem:[#allocation4 + $0xf8] sm:$0xff]
    %v1376 = vld [vmem:[#allocation4 + $0x100] sm:$0xff]
    %v1377 = vld [vmem:[#allocation4 + $0x108] sm:$0xff]
    %v1378 = vld [vmem:[#allocation4 + $0x110] sm:$0xff]
    %v1379 = vld [vmem:[#allocation4 + $0x118] sm:$0xff]
    %v1380 = vld [vmem:[#allocation4 + $0x120] sm:$0xff]
    %v1381 = vld [vmem:[#allocation4 + $0x128] sm:$0xff]
    %v1382 = vld [vmem:[#allocation4 + $0x130] sm:$0xff]
    %v1383 = vld [vmem:[#allocation4 + $0x138] sm:$0xff]
    %v1384 = vld [vmem:[#allocation4 + $0x140] sm:$0xff]
    %v1385 = vld [vmem:[#allocation4 + $0x148] sm:$0xff]
    %v1386 = vld [vmem:[#allocation4 + $0x150] sm:$0xff]
    %v1387 = vld [vmem:[#allocation4 + $0x158] sm:$0xff]
    %v1388 = vld [vmem:[#allocation4 + $0x160] sm:$0xff]
    %v1389 = vld [vmem:[#allocation4 + $0x168] sm:$0xff]
    %v1390 = vld [vmem:[#allocation4 + $0x170] sm:$0xff]
    %v1391 = vld [vmem:[#allocation4 + $0x178] sm:$0xff]
    %v1392 = vld [vmem:[#allocation4 + $0x180] sm:$0xff]
    %v1393 = vld [vmem:[#allocation4 + $0x188] sm:$0xff]
    %v1394 = vld [vmem:[#allocation4 + $0x190] sm:$0xff]
    %v1395 = vld [vmem:[#allocation4 + $0x198] sm:$0xff]
    %v1396 = vld [vmem:[#allocation4 + $0x1a0] sm:$0xff]
    %v1397 = vld [vmem:[#allocation4 + $0x1a8] sm:$0xff]
    %v1398 = vld [vmem:[#allocation4 + $0x1b0] sm:$0xff]
    %v1399 = vld [vmem:[#allocation4 + $0x1b8] sm:$0xff]
    %v1400 = vld [vmem:[#allocation4 + $0x1c0] sm:$0xff]
    %v1401 = vld [vmem:[#allocation4 + $0x1c8] sm:$0xff]
    %v1402 = vld [vmem:[#allocation4 + $0x1d0] sm:$0xff]
    %v1403 = vld [vmem:[#allocation4 + $0x1d8] sm:$0xff]
    %v1404 = vld [vmem:[#allocation4 + $0x1e0] sm:$0xff]
    %v1405 = vld [vmem:[#allocation4 + $0x1e8] sm:$0xff]
    %v1406 = vld [vmem:[#allocation4 + $0x1f0] sm:$0xff]
    %v1407 = vld [vmem:[#allocation4 + $0x1f8] sm:$0xff]
    %v1408 = vld [vmem:[#allocation4 + $0x200] sm:$0xff]
    %v1409 = vld [vmem:[#allocation4 + $0x208] sm:$0xff]
    %v1410 = vld [vmem:[#allocation4 + $0x210] sm:$0xff]
    %v1411 = vld [vmem:[#allocation4 + $0x218] sm:$0xff]
    %v1412 = vld [vmem:[#allocation4 + $0x220] sm:$0xff]
    %v1413 = vld [vmem:[#allocation4 + $0x228] sm:$0xff]
    %v1414 = vld [vmem:[#allocation4 + $0x230] sm:$0xff]
    %v1415 = vld [vmem:[#allocation4 + $0x238] sm:$0xff]
    %v1416 = vld [vmem:[#allocation4 + $0x240] sm:$0xff]
    %v1417 = vld [vmem:[#allocation4 + $0x248] sm:$0xff]
    %v1418 = vld [vmem:[#allocation4 + $0x250] sm:$0xff]
    %v1419 = vld [vmem:[#allocation4 + $0x258] sm:$0xff]
    %v1420 = vld [vmem:[#allocation4 + $0x260] sm:$0xff]
    %v1421 = vld [vmem:[#allocation4 + $0x268] sm:$0xff]
    %v1422 = vld [vmem:[#allocation4 + $0x270] sm:$0xff]
    %v1423 = vld [vmem:[#allocation4 + $0x278] sm:$0xff]
    %v1424 = vld [vmem:[#allocation4 + $0x280] sm:$0xff]
    %v1425 = vld [vmem:[#allocation4 + $0x288] sm:$0xff]
    %v1426 = vld [vmem:[#allocation4 + $0x290] sm:$0xff]
    %v1427 = vld [vmem:[#allocation4 + $0x298] sm:$0xff]
    %v1428 = vld [vmem:[#allocation4 + $0x2a0] sm:$0xff]
    %v1429 = vld [vmem:[#allocation4 + $0x2a8] sm:$0xff]
    %v1430 = vld [vmem:[#allocation4 + $0x2b0] sm:$0xff]
    %v1431 = vld [vmem:[#allocation4 + $0x2b8] sm:$0xff]
    %v1432 = vld [vmem:[#allocation4 + $0x2c0] sm:$0xff]
    %v1433 = vld [vmem:[#allocation4 + $0x2c8] sm:$0xff]
    %v1434 = vld [vmem:[#allocation4 + $0x2d0] sm:$0xff]
    %v1435 = vld [vmem:[#allocation4 + $0x2d8] sm:$0xff]
    %v1436 = vld [vmem:[#allocation4 + $0x2e0] sm:$0xff]
    %v1437 = vld [vmem:[#allocation4 + $0x2e8] sm:$0xff]
    %v1438 = vld [vmem:[#allocation4 + $0x2f0] sm:$0xff]
    %v1439 = vld [vmem:[#allocation4 + $0x2f8] sm:$0xff]
    %v1440 = vld [vmem:[#allocation4 + $0x300] sm:$0xff]
    %v1441 = vld [vmem:[#allocation4 + $0x308] sm:$0xff]
    %v1442 = vld [vmem:[#allocation4 + $0x310] sm:$0xff]
    %v1443 = vld [vmem:[#allocation4 + $0x318] sm:$0xff]
    %v1444 = vld [vmem:[#allocation4 + $0x320] sm:$0xff]
    %v1445 = vld [vmem:[#allocation4 + $0x328] sm:$0xff]
    %v1446 = vld [vmem:[#allocation4 + $0x330] sm:$0xff]
    %v1447 = vld [vmem:[#allocation4 + $0x338] sm:$0xff]
    %v1448 = vld [vmem:[#allocation4 + $0x340] sm:$0xff]
    %v1449 = vld [vmem:[#allocation4 + $0x348] sm:$0xff]
    %v1450 = vld [vmem:[#allocation4 + $0x350] sm:$0xff]
    %v1451 = vld [vmem:[#allocation4 + $0x358] sm:$0xff]
    %v1452 = vld [vmem:[#allocation4 + $0x360] sm:$0xff]
    %v1453 = vld [vmem:[#allocation4 + $0x368] sm:$0xff]
    %v1454 = vld [vmem:[#allocation4 + $0x370] sm:$0xff]
    %v1455 = vld [vmem:[#allocation4 + $0x378] sm:$0xff]
    %v1456 = vld [vmem:[#allocation4 + $0x380] sm:$0xff]
    %v1457 = vld [vmem:[#allocation4 + $0x388] sm:$0xff]
    %v1458 = vld [vmem:[#allocation4 + $0x390] sm:$0xff]
    %v1459 = vld [vmem:[#allocation4 + $0x398] sm:$0xff]
    %v1460 = vld [vmem:[#allocation4 + $0x3a0] sm:$0xff]
    %v1461 = vld [vmem:[#allocation4 + $0x3a8] sm:$0xff]
    %v1462 = vld [vmem:[#allocation4 + $0x3b0] sm:$0xff]
    %v1463 = vld [vmem:[#allocation4 + $0x3b8] sm:$0xff]
    %v1464 = vld [vmem:[#allocation4 + $0x3c0] sm:$0xff]
    %v1465 = vld [vmem:[#allocation4 + $0x3c8] sm:$0xff]
    %v1466 = vld [vmem:[#allocation4 + $0x3d0] sm:$0xff]
    %v1467 = vld [vmem:[#allocation4 + $0x3d8] sm:$0xff]
    %v1468 = vld [vmem:[#allocation4 + $0x3e0] sm:$0xff]
    %v1469 = vld [vmem:[#allocation4 + $0x3e8] sm:$0xff]
    %v1470 = vld [vmem:[#allocation4 + $0x3f0] sm:$0xff]
    %v1471 = vld [vmem:[#allocation4 + $0x3f8] sm:$0xff]
    %v1472 = vld [vmem:[#allocation4 + $0x400] sm:$0xff]
    %v1473 = vld [vmem:[#allocation4 + $0x408] sm:$0xff]
    %v1474 = vld [vmem:[#allocation4 + $0x410] sm:$0xff]
    %v1475 = vld [vmem:[#allocation4 + $0x418] sm:$0xff]
    %v1476 = vld [vmem:[#allocation4 + $0x420] sm:$0xff]
    %v1477 = vld [vmem:[#allocation4 + $0x428] sm:$0xff]
    %v1478 = vld [vmem:[#allocation4 + $0x430] sm:$0xff]
    %v1479 = vld [vmem:[#allocation4 + $0x438] sm:$0xff]
    %v1480 = vld [vmem:[#allocation4 + $0x440] sm:$0xff]
    %v1481 = vld [vmem:[#allocation4 + $0x448] sm:$0xff]
    %v1482 = vld [vmem:[#allocation4 + $0x450] sm:$0xff]
    %v1483 = vld [vmem:[#allocation4 + $0x458] sm:$0xff]
    %v1484 = vld [vmem:[#allocation4 + $0x460] sm:$0xff]
    %v1485 = vld [vmem:[#allocation4 + $0x468] sm:$0xff]
    %v1486 = vld [vmem:[#allocation4 + $0x470] sm:$0xff]
    %v1487 = vld [vmem:[#allocation4 + $0x478] sm:$0xff]
    %v1488 = vld [vmem:[#allocation4 + $0x480] sm:$0xff]
    %v1489 = vld [vmem:[#allocation4 + $0x488] sm:$0xff]
    %v1490 = vld [vmem:[#allocation4 + $0x490] sm:$0xff]
    %v1491 = vld [vmem:[#allocation4 + $0x498] sm:$0xff]
    %v1492 = vld [vmem:[#allocation4 + $0x4a0] sm:$0xff]
    %v1493 = vld [vmem:[#allocation4 + $0x4a8] sm:$0xff]
    %v1494 = vld [vmem:[#allocation4 + $0x4b0] sm:$0xff]
    %v1495 = vld [vmem:[#allocation4 + $0x4b8] sm:$0xff]
    %v1496 = vld [vmem:[#allocation4 + $0x4c0] sm:$0xff]
    %v1497 = vld [vmem:[#allocation4 + $0x4c8] sm:$0xff]
    %v1498 = vld [vmem:[#allocation4 + $0x4d0] sm:$0xff]
    %v1499 = vld [vmem:[#allocation4 + $0x4d8] sm:$0xff]
    %v1500 = vld [vmem:[#allocation4 + $0x4e0] sm:$0xff]
    %v1501 = vld [vmem:[#allocation4 + $0x4e8] sm:$0xff]
    %v1502 = vld [vmem:[#allocation4 + $0x4f0] sm:$0xff]
    %v1503 = vld [vmem:[#allocation4 + $0x4f8] sm:$0xff]
    %v1504 = vld [vmem:[#allocation4 + $0x500] sm:$0xff]
    %v1505 = vld [vmem:[#allocation4 + $0x508] sm:$0xff]
    %v1506 = vld [vmem:[#allocation4 + $0x510] sm:$0xff]
    %v1507 = vld [vmem:[#allocation4 + $0x518] sm:$0xff]
    %v1508 = vld [vmem:[#allocation4 + $0x520] sm:$0xff]
    %v1509 = vld [vmem:[#allocation4 + $0x528] sm:$0xff]
    %v1510 = vld [vmem:[#allocation4 + $0x530] sm:$0xff]
    %v1511 = vld [vmem:[#allocation4 + $0x538] sm:$0xff]
    %v1512 = vld [vmem:[#allocation4 + $0x540] sm:$0xff]
    %v1513 = vld [vmem:[#allocation4 + $0x548] sm:$0xff]
    %v1514 = vld [vmem:[#allocation4 + $0x550] sm:$0xff]
    %v1515 = vld [vmem:[#allocation4 + $0x558] sm:$0xff]
    %v1516 = vld [vmem:[#allocation4 + $0x560] sm:$0xff]
    %v1517 = vld [vmem:[#allocation4 + $0x568] sm:$0xff]
    %v1518 = vld [vmem:[#allocation4 + $0x570] sm:$0xff]
    %v1519 = vld [vmem:[#allocation4 + $0x578] sm:$0xff]
    %v1520 = vld [vmem:[#allocation4 + $0x580] sm:$0xff]
    %v1521 = vld [vmem:[#allocation4 + $0x588] sm:$0xff]
    %v1522 = vld [vmem:[#allocation4 + $0x590] sm:$0xff]
    %v1523 = vld [vmem:[#allocation4 + $0x598] sm:$0xff]
    %v1524 = vld [vmem:[#allocation4 + $0x5a0] sm:$0xff]
    %v1525 = vld [vmem:[#allocation4 + $0x5a8] sm:$0xff]
    %v1526 = vld [vmem:[#allocation4 + $0x5b0] sm:$0xff]
    %v1527 = vld [vmem:[#allocation4 + $0x5b8] sm:$0xff]
    %v1528 = vld [vmem:[#allocation4 + $0x5c0] sm:$0xff]
    %v1529 = vld [vmem:[#allocation4 + $0x5c8] sm:$0xff]
    %v1530 = vld [vmem:[#allocation4 + $0x5d0] sm:$0xff]
    %v1531 = vld [vmem:[#allocation4 + $0x5d8] sm:$0xff]
    %v1532 = vld [vmem:[#allocation4 + $0x5e0] sm:$0xff]
    %v1533 = vld [vmem:[#allocation4 + $0x5e8] sm:$0xff]
    %v1534 = vld [vmem:[#allocation4 + $0x5f0] sm:$0xff]
    %v1535 = vld [vmem:[#allocation4 + $0x5f8] sm:$0xff]
    %v1536 = vld [vmem:[#allocation4 + $0x600] sm:$0xff]
    %v1537 = vld [vmem:[#allocation4 + $0x608] sm:$0xff]
    %v1538 = vld [vmem:[#allocation4 + $0x610] sm:$0xff]
    %v1539 = vld [vmem:[#allocation4 + $0x618] sm:$0xff]
    %v1540 = vld [vmem:[#allocation4 + $0x620] sm:$0xff]
    %v1541 = vld [vmem:[#allocation4 + $0x628] sm:$0xff]
    %v1542 = vld [vmem:[#allocation4 + $0x630] sm:$0xff]
    %v1543 = vld [vmem:[#allocation4 + $0x638] sm:$0xff]
    %v1544 = vld [vmem:[#allocation4 + $0x640] sm:$0xff]
    %v1545 = vld [vmem:[#allocation4 + $0x648] sm:$0xff]
    %v1546 = vld [vmem:[#allocation4 + $0x650] sm:$0xff]
    %v1547 = vld [vmem:[#allocation4 + $0x658] sm:$0xff]
    %v1548 = vld [vmem:[#allocation4 + $0x660] sm:$0xff]
    %v1549 = vld [vmem:[#allocation4 + $0x668] sm:$0xff]
    %v1550 = vld [vmem:[#allocation4 + $0x670] sm:$0xff]
    %v1551 = vld [vmem:[#allocation4 + $0x678] sm:$0xff]
    %v1552 = vld [vmem:[#allocation4 + $0x680] sm:$0xff]
    %v1553 = vld [vmem:[#allocation4 + $0x688] sm:$0xff]
    %v1554 = vld [vmem:[#allocation4 + $0x690] sm:$0xff]
    %v1555 = vld [vmem:[#allocation4 + $0x698] sm:$0xff]
    %v1556 = vld [vmem:[#allocation4 + $0x6a0] sm:$0xff]
    %v1557 = vld [vmem:[#allocation4 + $0x6a8] sm:$0xff]
    %v1558 = vld [vmem:[#allocation4 + $0x6b0] sm:$0xff]
    %v1559 = vld [vmem:[#allocation4 + $0x6b8] sm:$0xff]
    %v1560 = vld [vmem:[#allocation4 + $0x6c0] sm:$0xff]
    %v1561 = vld [vmem:[#allocation4 + $0x6c8] sm:$0xff]
    %v1562 = vld [vmem:[#allocation4 + $0x6d0] sm:$0xff]
    %v1563 = vld [vmem:[#allocation4 + $0x6d8] sm:$0xff]
    %v1564 = vld [vmem:[#allocation4 + $0x6e0] sm:$0xff]
    %v1565 = vld [vmem:[#allocation4 + $0x6e8] sm:$0xff]
    %v1566 = vld [vmem:[#allocation4 + $0x6f0] sm:$0xff]
    %v1567 = vld [vmem:[#allocation4 + $0x6f8] sm:$0xff]
    %v1568 = vld [vmem:[#allocation4 + $0x700] sm:$0xff]
    %v1569 = vld [vmem:[#allocation4 + $0x708] sm:$0xff]
    %v1570 = vld [vmem:[#allocation4 + $0x710] sm:$0xff]
    %v1571 = vld [vmem:[#allocation4 + $0x718] sm:$0xff]
    %v1572 = vld [vmem:[#allocation4 + $0x720] sm:$0xff]
    %v1573 = vld [vmem:[#allocation4 + $0x728] sm:$0xff]
    %v1574 = vld [vmem:[#allocation4 + $0x730] sm:$0xff]
    %v1575 = vld [vmem:[#allocation4 + $0x738] sm:$0xff]
    %v1576 = vld [vmem:[#allocation4 + $0x740] sm:$0xff]
    %v1577 = vld [vmem:[#allocation4 + $0x748] sm:$0xff]
    %v1578 = vld [vmem:[#allocation4 + $0x750] sm:$0xff]
    %v1579 = vld [vmem:[#allocation4 + $0x758] sm:$0xff]
    %v1580 = vld [vmem:[#allocation4 + $0x760] sm:$0xff]
    %v1581 = vld [vmem:[#allocation4 + $0x768] sm:$0xff]
    %v1582 = vld [vmem:[#allocation4 + $0x770] sm:$0xff]
    %v1583 = vld [vmem:[#allocation4 + $0x778] sm:$0xff]
    %v1584 = vld [vmem:[#allocation4 + $0x780] sm:$0xff]
    %v1585 = vld [vmem:[#allocation4 + $0x788] sm:$0xff]
    %v1586 = vld [vmem:[#allocation4 + $0x790] sm:$0xff]
    %v1587 = vld [vmem:[#allocation4 + $0x798] sm:$0xff]
    %v1588 = vld [vmem:[#allocation4 + $0x7a0] sm:$0xff]
    %v1589 = vld [vmem:[#allocation4 + $0x7a8] sm:$0xff]
    %v1590 = vld [vmem:[#allocation4 + $0x7b0] sm:$0xff]
    %v1591 = vld [vmem:[#allocation4 + $0x7b8] sm:$0xff]
    %v1592 = vld [vmem:[#allocation4 + $0x7c0] sm:$0xff]
    %v1593 = vld [vmem:[#allocation4 + $0x7c8] sm:$0xff]
    %v1594 = vld [vmem:[#allocation4 + $0x7d0] sm:$0xff]
    %v1595 = vld [vmem:[#allocation4 + $0x7d8] sm:$0xff]
    %v1596 = vld [vmem:[#allocation4 + $0x7e0] sm:$0xff]
    %v1597 = vld [vmem:[#allocation4 + $0x7e8] sm:$0xff]
    %v1598 = vld [vmem:[#allocation4 + $0x7f0] sm:$0xff]
    %v1599 = vld [vmem:[#allocation4 + $0x7f8] sm:$0xff]
    %1600 = vmatprep.subr.bf16.mxu0 %v1345
    %1601 = vmatpush1.bf16.msra.mxu0 %v1344
    %1602 = vmatprep.subr.bf16.mxu0 %v1353
    %1603 = vmatpush1.bf16.msra.mxu0 %v1352
    %1604 = vmatprep.subr.bf16.mxu0 %v1361
    %1605 = vmatpush1.bf16.msra.mxu0 %v1360
    %1606 = vmatprep.subr.bf16.mxu0 %v1369
    %1607 = vmatpush1.bf16.msra.mxu0 %v1368
    %1608 = vmatprep.subr.bf16.mxu0 %v1377
    %1609 = vmatpush1.bf16.msra.mxu0 %v1376
    %1610 = vmatprep.subr.bf16.mxu0 %v1385
    %1611 = vmatpush1.bf16.msra.mxu0 %v1384
    %1612 = vmatprep.subr.bf16.mxu0 %v1393
    %1613 = vmatpush1.bf16.msra.mxu0 %v1392
    %1614 = vmatprep.subr.bf16.mxu0 %v1401
    %1615 = vmatpush1.bf16.msra.mxu0 %v1400
    %1616 = vmatprep.subr.bf16.mxu0 %v1409
    %1617 = vmatpush1.bf16.msra.mxu0 %v1408
    %1618 = vmatprep.subr.bf16.mxu0 %v1417
    %1619 = vmatpush1.bf16.msra.mxu0 %v1416
    %1620 = vmatprep.subr.bf16.mxu0 %v1425
    %1621 = vmatpush1.bf16.msra.mxu0 %v1424
    %1622 = vmatprep.subr.bf16.mxu0 %v1433
    %1623 = vmatpush1.bf16.msra.mxu0 %v1432
    %1624 = vmatprep.subr.bf16.mxu0 %v1441
    %1625 = vmatpush1.bf16.msra.mxu0 %v1440
    %1626 = vmatprep.subr.bf16.mxu0 %v1449
    %1627 = vmatpush1.bf16.msra.mxu0 %v1448
    %1628 = vmatprep.subr.bf16.mxu0 %v1457
    %1629 = vmatpush1.bf16.msra.mxu0 %v1456
    %1630 = vmatprep.subr.bf16.mxu0 %v1465
    %1631 = vmatpush1.bf16.msra.mxu0 %v1464
    %1632 = vmatprep.mubr.bf16.mxu0 %v1341
    %1633 = vmatmul.mubr.bf16.gmra.mrb[0].mxu0 %v1340
    %v1634 = vpop.f32.mrb[0].mxu0
    %v1635 = vadd.f32 0.0, %v1634
    %v1636 = vpop.f32.mrb[0].mxu0
    %v1637 = vadd.f32 0.0, %v1636
    %v1638 = vpop.f32.mrb[0].mxu0
    %v1639 = vpop.f32.mrb[0].mxu0
    %1640 = vdwg.mxu0
    %1641 = vmatprep.subr.bf16.mxu0 %v1473
    %1642 = vmatpush1.bf16.msra.mxu0 %v1472
    %1643 = vmatprep.subr.bf16.mxu0 %v1481
    %1644 = vmatpush1.bf16.msra.mxu0 %v1480
    %1645 = vmatprep.subr.bf16.mxu0 %v1489
    %1646 = vmatpush1.bf16.msra.mxu0 %v1488
    %1647 = vmatprep.subr.bf16.mxu0 %v1497
    %1648 = vmatpush1.bf16.msra.mxu0 %v1496
    %1649 = vmatprep.subr.bf16.mxu0 %v1505
    %1650 = vmatpush1.bf16.msra.mxu0 %v1504
    %1651 = vmatprep.subr.bf16.mxu0 %v1513
    %1652 = vmatpush1.bf16.msra.mxu0 %v1512
    %1653 = vmatprep.subr.bf16.mxu0 %v1521
    %1654 = vmatpush1.bf16.msra.mxu0 %v1520
    %1655 = vmatprep.subr.bf16.mxu0 %v1529
    %1656 = vmatpush1.bf16.msra.mxu0 %v1528
    %1657 = vmatprep.subr.bf16.mxu0 %v1537
    %1658 = vmatpush1.bf16.msra.mxu0 %v1536
    %1659 = vmatprep.subr.bf16.mxu0 %v1545
    %1660 = vmatpush1.bf16.msra.mxu0 %v1544
    %1661 = vmatprep.subr.bf16.mxu0 %v1553
    %1662 = vmatpush1.bf16.msra.mxu0 %v1552
    %1663 = vmatprep.subr.bf16.mxu0 %v1561
    %1664 = vmatpush1.bf16.msra.mxu0 %v1560
    %1665 = vmatprep.subr.bf16.mxu0 %v1569
    %1666 = vmatpush1.bf16.msra.mxu0 %v1568
    %1667 = vmatprep.subr.bf16.mxu0 %v1577
    %1668 = vmatpush1.bf16.msra.mxu0 %v1576
    %1669 = vmatprep.subr.bf16.mxu0 %v1585
    %1670 = vmatpush1.bf16.msra.mxu0 %v1584
    %1671 = vmatprep.subr.bf16.mxu0 %v1593
    %1672 = vmatpush1.bf16.msra.mxu0 %v1592
    %1673 = vmatprep.mubr.bf16.mxu0 %v1343
    %1674 = vmatmul.mubr.bf16.gmra.mrb[0].mxu0 %v1342
    %v1675 = vpop.f32.mrb[0].mxu0
    %v1676 = vadd.f32 %v1635, %v1675
    %v1677 = vpop.f32.mrb[0].mxu0
    %v1678 = vadd.f32 %v1637, %v1677
    %v1679 = vpop.f32.mrb[0].mxu0
    %v1680 = vpop.f32.mrb[0].mxu0
    %1681 = vdwg.mxu0
    %1682 = vmatprep.subr.bf16.mxu0 %v1347
    %1683 = vmatpush1.bf16.msra.mxu0 %v1346
    %1684 = vmatprep.subr.bf16.mxu0 %v1355
    %1685 = vmatpush1.bf16.msra.mxu0 %v1354
    %1686 = vmatprep.subr.bf16.mxu0 %v1363
    %1687 = vmatpush1.bf16.msra.mxu0 %v1362
    %1688 = vmatprep.subr.bf16.mxu0 %v1371
    %1689 = vmatpush1.bf16.msra.mxu0 %v1370
    %1690 = vmatprep.subr.bf16.mxu0 %v1379
    %1691 = vmatpush1.bf16.msra.mxu0 %v1378
    %1692 = vmatprep.subr.bf16.mxu0 %v1387
    %1693 = vmatpush1.bf16.msra.mxu0 %v1386
    %1694 = vmatprep.subr.bf16.mxu0 %v1395
    %1695 = vmatpush1.bf16.msra.mxu0 %v1394
    %1696 = vmatprep.subr.bf16.mxu0 %v1403
    %1697 = vmatpush1.bf16.msra.mxu0 %v1402
    %1698 = vmatprep.subr.bf16.mxu0 %v1411
    %1699 = vmatpush1.bf16.msra.mxu0 %v1410
    %1700 = vmatprep.subr.bf16.mxu0 %v1419
    %1701 = vmatpush1.bf16.msra.mxu0 %v1418
    %1702 = vmatprep.subr.bf16.mxu0 %v1427
    %1703 = vmatpush1.bf16.msra.mxu0 %v1426
    %1704 = vmatprep.subr.bf16.mxu0 %v1435
    %1705 = vmatpush1.bf16.msra.mxu0 %v1434
    %1706 = vmatprep.subr.bf16.mxu0 %v1443
    %1707 = vmatpush1.bf16.msra.mxu0 %v1442
    %1708 = vmatprep.subr.bf16.mxu0 %v1451
    %1709 = vmatpush1.bf16.msra.mxu0 %v1450
    %1710 = vmatprep.subr.bf16.mxu0 %v1459
    %1711 = vmatpush1.bf16.msra.mxu0 %v1458
    %1712 = vmatprep.subr.bf16.mxu0 %v1467
    %1713 = vmatpush1.bf16.msra.mxu0 %v1466
    %1714 = vmatprep.mubr.bf16.mxu0 %v1341
    %1715 = vmatmul.mubr.bf16.gmra.mrb[0].mxu0 %v1340
    %v1716 = vpop.f32.mrb[0].mxu0
    %v1717 = vadd.f32 0.0, %v1716
    %v1718 = vpop.f32.mrb[0].mxu0
    %v1719 = vadd.f32 0.0, %v1718
    %v1720 = vpop.f32.mrb[0].mxu0
    %v1721 = vpop.f32.mrb[0].mxu0
    %1722 = vdwg.mxu0
    %1723 = vmatprep.subr.bf16.mxu0 %v1475
    %1724 = vmatpush1.bf16.msra.mxu0 %v1474
    %1725 = vmatprep.subr.bf16.mxu0 %v1483
    %1726 = vmatpush1.bf16.msra.mxu0 %v1482
    %1727 = vmatprep.subr.bf16.mxu0 %v1491
    %1728 = vmatpush1.bf16.msra.mxu0 %v1490
    %1729 = vmatprep.subr.bf16.mxu0 %v1499
    %1730 = vmatpush1.bf16.msra.mxu0 %v1498
    %1731 = vmatprep.subr.bf16.mxu0 %v1507
    %1732 = vmatpush1.bf16.msra.mxu0 %v1506
    %1733 = vmatprep.subr.bf16.mxu0 %v1515
    %1734 = vmatpush1.bf16.msra.mxu0 %v1514
    %1735 = vmatprep.subr.bf16.mxu0 %v1523
    %1736 = vmatpush1.bf16.msra.mxu0 %v1522
    %1737 = vmatprep.subr.bf16.mxu0 %v1531
    %1738 = vmatpush1.bf16.msra.mxu0 %v1530
    %1739 = vmatprep.subr.bf16.mxu0 %v1539
    %1740 = vmatpush1.bf16.msra.mxu0 %v1538
    %1741 = vmatprep.subr.bf16.mxu0 %v1547
    %1742 = vmatpush1.bf16.msra.mxu0 %v1546
    %1743 = vmatprep.subr.bf16.mxu0 %v1555
    %1744 = vmatpush1.bf16.msra.mxu0 %v1554
    %1745 = vmatprep.subr.bf16.mxu0 %v1563
    %1746 = vmatpush1.bf16.msra.mxu0 %v1562
    %1747 = vmatprep.subr.bf16.mxu0 %v1571
    %1748 = vmatpush1.bf16.msra.mxu0 %v1570
    %1749 = vmatprep.subr.bf16.mxu0 %v1579
    %1750 = vmatpush1.bf16.msra.mxu0 %v1578
    %1751 = vmatprep.subr.bf16.mxu0 %v1587
    %1752 = vmatpush1.bf16.msra.mxu0 %v1586
    %1753 = vmatprep.subr.bf16.mxu0 %v1595
    %1754 = vmatpush1.bf16.msra.mxu0 %v1594
    %1755 = vmatprep.mubr.bf16.mxu0 %v1343
    %1756 = vmatmul.mubr.bf16.gmra.mrb[0].mxu0 %v1342
    %v1757 = vpop.f32.mrb[0].mxu0
    %v1758 = vadd.f32 %v1717, %v1757
    %v1759 = vpop.f32.mrb[0].mxu0
    %v1760 = vadd.f32 %v1719, %v1759
    %v1761 = vpop.f32.mrb[0].mxu0
    %v1762 = vpop.f32.mrb[0].mxu0
    %1763 = vdwg.mxu0
    %1764 = vmatprep.subr.bf16.mxu0 %v1349
    %1765 = vmatpush1.bf16.msra.mxu0 %v1348
    %1766 = vmatprep.subr.bf16.mxu0 %v1357
    %1767 = vmatpush1.bf16.msra.mxu0 %v1356
    %1768 = vmatprep.subr.bf16.mxu0 %v1365
    %1769 = vmatpush1.bf16.msra.mxu0 %v1364
    %1770 = vmatprep.subr.bf16.mxu0 %v1373
    %1771 = vmatpush1.bf16.msra.mxu0 %v1372
    %1772 = vmatprep.subr.bf16.mxu0 %v1381
    %1773 = vmatpush1.bf16.msra.mxu0 %v1380
    %1774 = vmatprep.subr.bf16.mxu0 %v1389
    %1775 = vmatpush1.bf16.msra.mxu0 %v1388
    %1776 = vmatprep.subr.bf16.mxu0 %v1397
    %1777 = vmatpush1.bf16.msra.mxu0 %v1396
    %1778 = vmatprep.subr.bf16.mxu0 %v1405
    %1779 = vmatpush1.bf16.msra.mxu0 %v1404
    %1780 = vmatprep.subr.bf16.mxu0 %v1413
    %1781 = vmatpush1.bf16.msra.mxu0 %v1412
    %1782 = vmatprep.subr.bf16.mxu0 %v1421
    %1783 = vmatpush1.bf16.msra.mxu0 %v1420
    %1784 = vmatprep.subr.bf16.mxu0 %v1429
    %1785 = vmatpush1.bf16.msra.mxu0 %v1428
    %1786 = vmatprep.subr.bf16.mxu0 %v1437
    %1787 = vmatpush1.bf16.msra.mxu0 %v1436
    %1788 = vmatprep.subr.bf16.mxu0 %v1445
    %1789 = vmatpush1.bf16.msra.mxu0 %v1444
    %1790 = vmatprep.subr.bf16.mxu0 %v1453
    %1791 = vmatpush1.bf16.msra.mxu0 %v1452
    %1792 = vmatprep.subr.bf16.mxu0 %v1461
    %1793 = vmatpush1.bf16.msra.mxu0 %v1460
    %1794 = vmatprep.subr.bf16.mxu0 %v1469
    %1795 = vmatpush1.bf16.msra.mxu0 %v1468
    %1796 = vmatprep.mubr.bf16.mxu0 %v1341
    %1797 = vmatmul.mubr.bf16.gmra.mrb[0].mxu0 %v1340
    %v1798 = vpop.f32.mrb[0].mxu0
    %v1799 = vadd.f32 0.0, %v1798
    %v1800 = vpop.f32.mrb[0].mxu0
    %v1801 = vadd.f32 0.0, %v1800
    %v1802 = vpop.f32.mrb[0].mxu0
    %v1803 = vpop.f32.mrb[0].mxu0
    %1804 = vdwg.mxu0
    %1805 = vmatprep.subr.bf16.mxu0 %v1477
    %1806 = vmatpush1.bf16.msra.mxu0 %v1476
    %1807 = vmatprep.subr.bf16.mxu0 %v1485
    %1808 = vmatpush1.bf16.msra.mxu0 %v1484
    %1809 = vmatprep.subr.bf16.mxu0 %v1493
    %1810 = vmatpush1.bf16.msra.mxu0 %v1492
    %1811 = vmatprep.subr.bf16.mxu0 %v1501
    %1812 = vmatpush1.bf16.msra.mxu0 %v1500
    %1813 = vmatprep.subr.bf16.mxu0 %v1509
    %1814 = vmatpush1.bf16.msra.mxu0 %v1508
    %1815 = vmatprep.subr.bf16.mxu0 %v1517
    %1816 = vmatpush1.bf16.msra.mxu0 %v1516
    %1817 = vmatprep.subr.bf16.mxu0 %v1525
    %1818 = vmatpush1.bf16.msra.mxu0 %v1524
    %1819 = vmatprep.subr.bf16.mxu0 %v1533
    %1820 = vmatpush1.bf16.msra.mxu0 %v1532
    %1821 = vmatprep.subr.bf16.mxu0 %v1541
    %1822 = vmatpush1.bf16.msra.mxu0 %v1540
    %1823 = vmatprep.subr.bf16.mxu0 %v1549
    %1824 = vmatpush1.bf16.msra.mxu0 %v1548
    %1825 = vmatprep.subr.bf16.mxu0 %v1557
    %1826 = vmatpush1.bf16.msra.mxu0 %v1556
    %1827 = vmatprep.subr.bf16.mxu0 %v1565
    %1828 = vmatpush1.bf16.msra.mxu0 %v1564
    %1829 = vmatprep.subr.bf16.mxu0 %v1573
    %1830 = vmatpush1.bf16.msra.mxu0 %v1572
    %1831 = vmatprep.subr.bf16.mxu0 %v1581
    %1832 = vmatpush1.bf16.msra.mxu0 %v1580
    %1833 = vmatprep.subr.bf16.mxu0 %v1589
    %1834 = vmatpush1.bf16.msra.mxu0 %v1588
    %1835 = vmatprep.subr.bf16.mxu0 %v1597
    %1836 = vmatpush1.bf16.msra.mxu0 %v1596
    %1837 = vmatprep.mubr.bf16.mxu0 %v1343
    %1838 = vmatmul.mubr.bf16.gmra.mrb[0].mxu0 %v1342
    %v1839 = vpop.f32.mrb[0].mxu0
    %v1840 = vadd.f32 %v1799, %v1839
    %v1841 = vpop.f32.mrb[0].mxu0
    %v1842 = vadd.f32 %v1801, %v1841
    %v1843 = vpop.f32.mrb[0].mxu0
    %v1844 = vpop.f32.mrb[0].mxu0
    %1845 = vdwg.mxu0
    %1846 = vmatprep.subr.bf16.mxu0 %v1351
    %1847 = vmatpush1.bf16.msra.mxu0 %v1350
    %1848 = vmatprep.subr.bf16.mxu0 %v1359
    %1849 = vmatpush1.bf16.msra.mxu0 %v1358
    %1850 = vmatprep.subr.bf16.mxu0 %v1367
    %1851 = vmatpush1.bf16.msra.mxu0 %v1366
    %1852 = vmatprep.subr.bf16.mxu0 %v1375
    %1853 = vmatpush1.bf16.msra.mxu0 %v1374
    %1854 = vmatprep.subr.bf16.mxu0 %v1383
    %1855 = vmatpush1.bf16.msra.mxu0 %v1382
    %1856 = vmatprep.subr.bf16.mxu0 %v1391
    %1857 = vmatpush1.bf16.msra.mxu0 %v1390
    %1858 = vmatprep.subr.bf16.mxu0 %v1399
    %1859 = vmatpush1.bf16.msra.mxu0 %v1398
    %1860 = vmatprep.subr.bf16.mxu0 %v1407
    %1861 = vmatpush1.bf16.msra.mxu0 %v1406
    %1862 = vmatprep.subr.bf16.mxu0 %v1415
    %1863 = vmatpush1.bf16.msra.mxu0 %v1414
    %1864 = vmatprep.subr.bf16.mxu0 %v1423
    %1865 = vmatpush1.bf16.msra.mxu0 %v1422
    %1866 = vmatprep.subr.bf16.mxu0 %v1431
    %1867 = vmatpush1.bf16.msra.mxu0 %v1430
    %1868 = vmatprep.subr.bf16.mxu0 %v1439
    %1869 = vmatpush1.bf16.msra.mxu0 %v1438
    %1870 = vmatprep.subr.bf16.mxu0 %v1447
    %1871 = vmatpush1.bf16.msra.mxu0 %v1446
    %1872 = vmatprep.subr.bf16.mxu0 %v1455
    %1873 = vmatpush1.bf16.msra.mxu0 %v1454
    %1874 = vmatprep.subr.bf16.mxu0 %v1463
    %1875 = vmatpush1.bf16.msra.mxu0 %v1462
    %1876 = vmatprep.subr.bf16.mxu0 %v1471
    %1877 = vmatpush1.bf16.msra.mxu0 %v1470
    %1878 = vmatprep.mubr.bf16.mxu0 %v1341
    %1879 = vmatmul.mubr.bf16.gmra.mrb[0].mxu0 %v1340
    %v1880 = vpop.f32.mrb[0].mxu0
    %v1881 = vadd.f32 0.0, %v1880
    %v1882 = vpop.f32.mrb[0].mxu0
    %v1883 = vadd.f32 0.0, %v1882
    %v1884 = vpop.f32.mrb[0].mxu0
    %v1885 = vpop.f32.mrb[0].mxu0
    %1886 = vdwg.mxu0
    %1887 = vmatprep.subr.bf16.mxu0 %v1479
    %1888 = vmatpush1.bf16.msra.mxu0 %v1478
    %1889 = vmatprep.subr.bf16.mxu0 %v1487
    %1890 = vmatpush1.bf16.msra.mxu0 %v1486
    %1891 = vmatprep.subr.bf16.mxu0 %v1495
    %1892 = vmatpush1.bf16.msra.mxu0 %v1494
    %1893 = vmatprep.subr.bf16.mxu0 %v1503
    %1894 = vmatpush1.bf16.msra.mxu0 %v1502
    %1895 = vmatprep.subr.bf16.mxu0 %v1511
    %1896 = vmatpush1.bf16.msra.mxu0 %v1510
    %1897 = vmatprep.subr.bf16.mxu0 %v1519
    %1898 = vmatpush1.bf16.msra.mxu0 %v1518
    %1899 = vmatprep.subr.bf16.mxu0 %v1527
    %1900 = vmatpush1.bf16.msra.mxu0 %v1526
    %1901 = vmatprep.subr.bf16.mxu0 %v1535
    %1902 = vmatpush1.bf16.msra.mxu0 %v1534
    %1903 = vmatprep.subr.bf16.mxu0 %v1543
    %1904 = vmatpush1.bf16.msra.mxu0 %v1542
    %1905 = vmatprep.subr.bf16.mxu0 %v1551
    %1906 = vmatpush1.bf16.msra.mxu0 %v1550
    %1907 = vmatprep.subr.bf16.mxu0 %v1559
    %1908 = vmatpush1.bf16.msra.mxu0 %v1558
    %1909 = vmatprep.subr.bf16.mxu0 %v1567
    %1910 = vmatpush1.bf16.msra.mxu0 %v1566
    %1911 = vmatprep.subr.bf16.mxu0 %v1575
    %1912 = vmatpush1.bf16.msra.mxu0 %v1574
    %1913 = vmatprep.subr.bf16.mxu0 %v1583
    %1914 = vmatpush1.bf16.msra.mxu0 %v1582
    %1915 = vmatprep.subr.bf16.mxu0 %v1591
    %1916 = vmatpush1.bf16.msra.mxu0 %v1590
    %1917 = vmatprep.subr.bf16.mxu0 %v1599
    %1918 = vmatpush1.bf16.msra.mxu0 %v1598
    %1919 = vmatprep.mubr.bf16.mxu0 %v1343
    %1920 = vmatmul.mubr.bf16.gmra.mrb[0].mxu0 %v1342
    %v1921 = vpop.f32.mrb[0].mxu0
    %v1922 = vadd.f32 %v1881, %v1921
    %v1923 = vpop.f32.mrb[0].mxu0
    %v1924 = vadd.f32 %v1883, %v1923
    %v1925 = vpop.f32.mrb[0].mxu0
    %v1926 = vpop.f32.mrb[0].mxu0
    %1927 = vdwg.mxu0
    %v1928 = vrot.slane %v1676, 4
    %v1929 = vadd.f32 %v1676, %v1928
    %v1930 = vrot.slane %v1929, 2
    %v1931 = vadd.f32 %v1929, %v1930
    %v1932 = vrot.slane %v1931, 1
    %v1933 = vadd.f32 %v1931, %v1932
    %v1934 = vrot.slane %v1678, 4
    %v1935 = vadd.f32 %v1678, %v1934
    %v1936 = vrot.slane %v1935, 2
    %v1937 = vadd.f32 %v1935, %v1936
    %v1938 = vrot.slane %v1937, 1
    %v1939 = vadd.f32 %v1937, %v1938
    %v1940 = vrot.slane %v1758, 4
    %v1941 = vadd.f32 %v1758, %v1940
    %v1942 = vrot.slane %v1941, 2
    %v1943 = vadd.f32 %v1941, %v1942
    %v1944 = vrot.slane %v1943, 1
    %v1945 = vadd.f32 %v1943, %v1944
    %v1946 = vrot.slane %v1760, 4
    %v1947 = vadd.f32 %v1760, %v1946
    %v1948 = vrot.slane %v1947, 2
    %v1949 = vadd.f32 %v1947, %v1948
    %v1950 = vrot.slane %v1949, 1
    %v1951 = vadd.f32 %v1949, %v1950
    %v1952 = vrot.slane %v1840, 4
    %v1953 = vadd.f32 %v1840, %v1952
    %v1954 = vrot.slane %v1953, 2
    %v1955 = vadd.f32 %v1953, %v1954
    %v1956 = vrot.slane %v1955, 1
    %v1957 = vadd.f32 %v1955, %v1956
    %v1958 = vrot.slane %v1842, 4
    %v1959 = vadd.f32 %v1842, %v1958
    %v1960 = vrot.slane %v1959, 2
    %v1961 = vadd.f32 %v1959, %v1960
    %v1962 = vrot.slane %v1961, 1
    %v1963 = vadd.f32 %v1961, %v1962
    %v1964 = vrot.slane %v1922, 4
    %v1965 = vadd.f32 %v1922, %v1964
    %v1966 = vrot.slane %v1965, 2
    %v1967 = vadd.f32 %v1965, %v1966
    %v1968 = vrot.slane %v1967, 1
    %v1969 = vadd.f32 %v1967, %v1968
    %v1970 = vrot.slane %v1924, 4
    %v1971 = vadd.f32 %v1924, %v1970
    %v1972 = vrot.slane %v1971, 2
    %v1973 = vadd.f32 %v1971, %v1972
    %v1974 = vrot.slane %v1973, 1
    %v1975 = vadd.f32 %v1973, %v1974
    %v1976 = vmul.f32 %v1933, %v318
    %v1977 = vmul.f32 %v1939, %v318
    %v1978 = vmul.f32 %v1945, %v318
    %v1979 = vmul.f32 %v1951, %v318
    %v1980 = vmul.f32 %v1957, %v318
    %v1981 = vmul.f32 %v1963, %v318
    %v1982 = vmul.f32 %v1969, %v318
    %v1983 = vmul.f32 %v1975, %v318
    %v1984 = vsub.f32 %v1676, %v1976
    %v1985 = vsub.f32 %v1678, %v1977
    %v1986 = vsub.f32 %v1758, %v1978
    %v1987 = vsub.f32 %v1760, %v1979
    %v1988 = vsub.f32 %v1840, %v1980
    %v1989 = vsub.f32 %v1842, %v1981
    %v1990 = vsub.f32 %v1922, %v1982
    %v1991 = vsub.f32 %v1924, %v1983
    %v1992 = vmul.f32 %v1984, %v1984
    %v1993 = vmul.f32 %v1985, %v1985
    %v1994 = vmul.f32 %v1986, %v1986
    %v1995 = vmul.f32 %v1987, %v1987
    %v1996 = vmul.f32 %v1988, %v1988
    %v1997 = vmul.f32 %v1989, %v1989
    %v1998 = vmul.f32 %v1990, %v1990
    %v1999 = vmul.f32 %v1991, %v1991
    %v2000 = vrot.slane %v1992, 4
    %v2001 = vadd.f32 %v1992, %v2000
    %v2002 = vrot.slane %v2001, 2
    %v2003 = vadd.f32 %v2001, %v2002
    %v2004 = vrot.slane %v2003, 1
    %v2005 = vadd.f32 %v2003, %v2004
    %v2006 = vrot.slane %v1993, 4
    %v2007 = vadd.f32 %v1993, %v2006
    %v2008 = vrot.slane %v2007, 2
    %v2009 = vadd.f32 %v2007, %v2008
    %v2010 = vrot.slane %v2009, 1
    %v2011 = vadd.f32 %v2009, %v2010
    %v2012 = vrot.slane %v1994, 4
    %v2013 = vadd.f32 %v1994, %v2012
    %v2014 = vrot.slane %v2013, 2
    %v2015 = vadd.f32 %v2013, %v2014
    %v2016 = vrot.slane %v2015, 1
    %v2017 = vadd.f32 %v2015, %v2016
    %v2018 = vrot.slane %v1995, 4
    %v2019 = vadd.f32 %v1995, %v2018
    %v2020 = vrot.slane %v2019, 2
    %v2021 = vadd.f32 %v2019, %v2020
    %v2022 = vrot.slane %v2021, 1
    %v2023 = vadd.f32 %v2021, %v2022
    %v2024 = vrot.slane %v1996, 4
    %v2025 = vadd.f32 %v1996, %v2024
    %v2026 = vrot.slane %v2025, 2
    %v2027 = vadd.f32 %v2025, %v2026
    %v2028 = vrot.slane %v2027, 1
    %v2029 = vadd.f32 %v2027, %v2028
    %v2030 = vrot.slane %v1997, 4
    %v2031 = vadd.f32 %v1997, %v2030
    %v2032 = vrot.slane %v2031, 2
    %v2033 = vadd.f32 %v2031, %v2032
    %v2034 = vrot.slane %v2033, 1
    %v2035 = vadd.f32 %v2033, %v2034
    %v2036 = vrot.slane %v1998, 4
    %v2037 = vadd.f32 %v1998, %v2036
    %v2038 = vrot.slane %v2037, 2
    %v2039 = vadd.f32 %v2037, %v2038
    %v2040 = vrot.slane %v2039, 1
    %v2041 = vadd.f32 %v2039, %v2040
    %v2042 = vrot.slane %v1999, 4
    %v2043 = vadd.f32 %v1999, %v2042
    %v2044 = vrot.slane %v2043, 2
    %v2045 = vadd.f32 %v2043, %v2044
    %v2046 = vrot.slane %v2045, 1
    %v2047 = vadd.f32 %v2045, %v2046
    %v2048 = vmul.f32 %v2005, %v318
    %v2049 = vmul.f32 %v2011, %v318
    %v2050 = vmul.f32 %v2017, %v318
    %v2051 = vmul.f32 %v2023, %v318
    %v2052 = vmul.f32 %v2029, %v318
    %v2053 = vmul.f32 %v2035, %v318
    %v2054 = vmul.f32 %v2041, %v318
    %v2055 = vmul.f32 %v2047, %v318
    %s2056 = scalar_lea.vmem [#allocation6], 6
    %v2057 = vld [vmem:[%s2056] ss:$8 sm:$0xf]
    %v2058 = vld [vmem:[%s2056] ss:$8 sm:$0xf0]
    %v2059 = vor.u32 %v2057, %v2058
    %v2060 = vadd.f32 %v2048, 0.8
    %v2061 = vadd.f32 %v2049, 0.8
    %v2062 = vadd.f32 %v2050, 0.8
    %v2063 = vadd.f32 %v2051, 0.8
    %v2064 = vadd.f32 %v2052, 0.8
    %v2065 = vadd.f32 %v2053, 0.8
    %v2066 = vadd.f32 %v2054, 0.8
    %v2067 = vadd.f32 %v2055, 0.8
    %v2068 = vrsqrt.pop %v2060
    %v2069 = vrsqrt.pop %v2061
    %v2070 = vrsqrt.pop %v2062
    %v2071 = vrsqrt.pop %v2063
    %v2072 = vrsqrt.pop %v2064
    %v2073 = vrsqrt.pop %v2065
    %v2074 = vrsqrt.pop %v2066
    %v2075 = vrsqrt.pop %v2067
    %v2084 = vcombine.low %v2068, %v2069
    %v2085 = vcombine.low %v2070, %v2071
    %v2086 = vcombine.low %v2072, %v2073
    %v2087 = vcombine.low %v2074, %v2075
    %v2089 = vunpack.c.l.s4 1966171168
    %v2090 = vunpack.c.0.s8 %v2089
    %v2091 = vlaneseq
    %v2092 = vshrl.u32 %v2091, 7
    %v2093 = vsub.s32 %v2090, %v2092
    %v2094 = vrot.slane %v2084, %v2093
    %v2096 = vunpack.c.l.s4 1966171168
    %v2097 = vunpack.c.0.s8 %v2096
    %v2098 = vlaneseq
    %v2099 = vshrl.u32 %v2098, 7
    %v2100 = vsub.s32 %v2097, %v2099
    %v2101 = vrot.slane %v2085, %v2100
    %v2103 = vunpack.c.l.s4 1966171168
    %v2104 = vunpack.c.0.s8 %v2103
    %v2105 = vlaneseq
    %v2106 = vshrl.u32 %v2105, 7
    %v2107 = vsub.s32 %v2104, %v2106
    %v2108 = vrot.slane %v2086, %v2107
    %v2110 = vunpack.c.l.s4 1966171168
    %v2111 = vunpack.c.0.s8 %v2110
    %v2112 = vlaneseq
    %v2113 = vshrl.u32 %v2112, 7
    %v2114 = vsub.s32 %v2111, %v2113
    %v2115 = vrot.slane %v2087, %v2114
    %v2116 = vcombine.low %v2094, %v2101
    %v2117 = vcombine.low %v2108, %v2115
    %v2119 = vunpack.c.l.s4 1966171168
    %v2120 = vunpack.c.0.s8 %v2119
    %v2121 = vlaneseq
    %v2122 = vshrl.u32 %v2121, 7
    %v2123 = vsub.s32 %v2120, %v2122
    %v2124 = vrot.slane %v2116, %v2123
    %v2126 = vunpack.c.l.s4 1966171168
    %v2127 = vunpack.c.0.s8 %v2126
    %v2128 = vlaneseq
    %v2129 = vshrl.u32 %v2128, 7
    %v2130 = vsub.s32 %v2127, %v2129
    %v2131 = vrot.slane %v2117, %v2130
    %v2132 = vcombine.low %v2124, %v2131
    %v2134 = vmul.f32 %v2059, %v2132
    %v2136 = vlaneseq
    %v2137 = vshrl.u32 %v2136, 7
    %v2138 = vsub.s32 0, %v2137
    %v2139 = vrot.slane %v2134, %v2138
    %v2140 = vlaneseq
    %v2141 = vshrl.u32 %v2140, 7
    %v2142 = vsub.s32 1, %v2141
    %v2143 = vrot.slane %v2134, %v2142
    %v2144 = vlaneseq
    %v2145 = vshrl.u32 %v2144, 7
    %v2146 = vsub.s32 2, %v2145
    %v2147 = vrot.slane %v2134, %v2146
    %v2148 = vlaneseq
    %v2149 = vshrl.u32 %v2148, 7
    %v2150 = vsub.s32 3, %v2149
    %v2151 = vrot.slane %v2134, %v2150
    %v2152 = vlaneseq
    %v2153 = vshrl.u32 %v2152, 7
    %v2154 = vsub.s32 4, %v2153
    %v2155 = vrot.slane %v2134, %v2154
    %v2156 = vlaneseq
    %v2157 = vshrl.u32 %v2156, 7
    %v2158 = vsub.s32 5, %v2157
    %v2159 = vrot.slane %v2134, %v2158
    %v2160 = vlaneseq
    %v2161 = vshrl.u32 %v2160, 7
    %v2162 = vsub.s32 6, %v2161
    %v2163 = vrot.slane %v2134, %v2162
    %v2164 = vlaneseq
    %v2165 = vshrl.u32 %v2164, 7
    %v2166 = vsub.s32 7, %v2165
    %v2167 = vrot.slane %v2134, %v2166
    %v2176 = vmul.f32 %v1984, %v2139
    %v2177 = vmul.f32 %v1985, %v2143
    %v2178 = vmul.f32 %v1986, %v2147
    %v2179 = vmul.f32 %v1987, %v2151
    %v2180 = vmul.f32 %v1988, %v2155
    %v2181 = vmul.f32 %v1989, %v2159
    %v2182 = vmul.f32 %v1990, %v2163
    %v2183 = vmul.f32 %v1991, %v2167
    %s2184 = scalar_lea.vmem [#allocation6], 67
    %v2185 = vld [vmem:[%s2184] ss:$8 sm:$0xf]
    %v2186 = vld [vmem:[%s2184] ss:$8 sm:$0xf0]
    %v2187 = vor.u32 %v2185, %v2186
    %v2189 = vlaneseq
    %v2190 = vshrl.u32 %v2189, 7
    %v2191 = vsub.s32 0, %v2190
    %v2192 = vrot.slane %v2187, %v2191
    %v2193 = vlaneseq
    %v2194 = vshrl.u32 %v2193, 7
    %v2195 = vsub.s32 1, %v2194
    %v2196 = vrot.slane %v2187, %v2195
    %v2197 = vlaneseq
    %v2198 = vshrl.u32 %v2197, 7
    %v2199 = vsub.s32 2, %v2198
    %v2200 = vrot.slane %v2187, %v2199
    %v2201 = vlaneseq
    %v2202 = vshrl.u32 %v2201, 7
    %v2203 = vsub.s32 3, %v2202
    %v2204 = vrot.slane %v2187, %v2203
    %v2205 = vlaneseq
    %v2206 = vshrl.u32 %v2205, 7
    %v2207 = vsub.s32 4, %v2206
    %v2208 = vrot.slane %v2187, %v2207
    %v2209 = vlaneseq
    %v2210 = vshrl.u32 %v2209, 7
    %v2211 = vsub.s32 5, %v2210
    %v2212 = vrot.slane %v2187, %v2211
    %v2213 = vlaneseq
    %v2214 = vshrl.u32 %v2213, 7
    %v2215 = vsub.s32 6, %v2214
    %v2216 = vrot.slane %v2187, %v2215
    %v2217 = vlaneseq
    %v2218 = vshrl.u32 %v2217, 7
    %v2219 = vsub.s32 7, %v2218
    %v2220 = vrot.slane %v2187, %v2219
    %v2229 = vadd.f32 %v2176, %v2192
    %v2230 = vadd.f32 %v2177, %v2196
    %v2231 = vadd.f32 %v2178, %v2200
    %v2232 = vadd.f32 %v2179, %v2204
    %v2233 = vadd.f32 %v2180, %v2208
    %v2234 = vadd.f32 %v2181, %v2212
    %v2235 = vadd.f32 %v2182, %v2216
    %v2236 = vadd.f32 %v2183, %v2220
    %v2237 = vmul.f32 %v2229, 0.2
    %v2238 = vmul.f32 %v2230, 0.2
    %v2239 = vmul.f32 %v2231, 0.2
    %v2240 = vmul.f32 %v2232, 0.2
    %v2241 = vmul.f32 %v2233, 0.2
    %v2242 = vmul.f32 %v2234, 0.2
    %v2243 = vmul.f32 %v2235, 0.2
    %v2244 = vmul.f32 %v2236, 0.2
    %v2245 = vmax.f32 %v2229, %v2237
    %v2246 = vmax.f32 %v2230, %v2238
    %v2247 = vmax.f32 %v2231, %v2239
    %v2248 = vmax.f32 %v2232, %v2240
    %v2249 = vmax.f32 %v2233, %v2241
    %v2250 = vmax.f32 %v2234, %v2242
    %v2251 = vmax.f32 %v2235, %v2243
    %v2252 = vmax.f32 %v2236, %v2244
    %v2253 = vpack.c.bf16 %v2245, %v2245
    %v2254 = vpack.c.bf16 %v2246, %v2246
    %v2255 = vpack.c.bf16 %v2247, %v2247
    %v2256 = vpack.c.bf16 %v2248, %v2248
    %v2257 = vpack.c.bf16 %v2249, %v2249
    %v2258 = vpack.c.bf16 %v2250, %v2250
    %v2259 = vpack.c.bf16 %v2251, %v2251
    %v2260 = vpack.c.bf16 %v2252, %v2252
    %v2261 = vld [vmem:[#allocation2 + $0x1a0] sm:$0xff]
    %v2262 = vld [vmem:[#allocation2 + $0x1a8] sm:$0xff]
    %v2263 = vld [vmem:[#allocation2 + $0x1b0] sm:$0xff]
    %v2264 = vld [vmem:[#allocation2 + $0x1b8] sm:$0xff]
    %v2265 = vld [vmem:[#allocation2 + $0x1c0] sm:$0xff]
    %v2266 = vld [vmem:[#allocation2 + $0x1c8] sm:$0xff]
    %v2267 = vld [vmem:[#allocation2 + $0x1d0] sm:$0xff]
    %v2268 = vld [vmem:[#allocation2 + $0x1d8] sm:$0xff]
    %v2269 = vld [vmem:[#allocation2 + $0x1e0] sm:$0xff]
    %v2270 = vld [vmem:[#allocation2 + $0x1e8] sm:$0xff]
    %v2271 = vld [vmem:[#allocation2 + $0x1f0] sm:$0xff]
    %v2272 = vld [vmem:[#allocation2 + $0x1f8] sm:$0xff]
    %v2273 = vld [vmem:[#allocation2 + $0x200] sm:$0xff]
    %v2274 = vld [vmem:[#allocation2 + $0x208] sm:$0xff]
    %v2275 = vld [vmem:[#allocation2 + $0x210] sm:$0xff]
    %v2276 = vld [vmem:[#allocation2 + $0x218] sm:$0xff]
    %v2277 = vld [vmem:[#allocation2 + $0x220] sm:$0xff]
    %v2278 = vld [vmem:[#allocation2 + $0x228] sm:$0xff]
    %v2279 = vld [vmem:[#allocation2 + $0x230] sm:$0xff]
    %v2280 = vld [vmem:[#allocation2 + $0x238] sm:$0xff]
    %v2281 = vld [vmem:[#allocation2 + $0x240] sm:$0xff]
    %v2282 = vld [vmem:[#allocation2 + $0x248] sm:$0xff]
    %v2283 = vld [vmem:[#allocation2 + $0x250] sm:$0xff]
    %v2284 = vld [vmem:[#allocation2 + $0x258] sm:$0xff]
    %v2285 = vld [vmem:[#allocation2 + $0x260] sm:$0xff]
    %v2286 = vld [vmem:[#allocation2 + $0x268] sm:$0xff]
    %v2287 = vld [vmem:[#allocation2 + $0x270] sm:$0xff]
    %v2288 = vld [vmem:[#allocation2 + $0x278] sm:$0xff]
    %v2289 = vld [vmem:[#allocation2 + $0x280] sm:$0xff]
    %v2290 = vld [vmem:[#allocation2 + $0x288] sm:$0xff]
    %v2291 = vld [vmem:[#allocation2 + $0x290] sm:$0xff]
    %v2292 = vld [vmem:[#allocation2 + $0x298] sm:$0xff]
    %v2293 = vld [vmem:[#allocation2 + $0x2a0] sm:$0xff]
    %v2294 = vld [vmem:[#allocation2 + $0x2a8] sm:$0xff]
    %v2295 = vld [vmem:[#allocation2 + $0x2b0] sm:$0xff]
    %v2296 = vld [vmem:[#allocation2 + $0x2b8] sm:$0xff]
    %v2297 = vld [vmem:[#allocation2 + $0x2c0] sm:$0xff]
    %v2298 = vld [vmem:[#allocation2 + $0x2c8] sm:$0xff]
    %v2299 = vld [vmem:[#allocation2 + $0x2d0] sm:$0xff]
    %v2300 = vld [vmem:[#allocation2 + $0x2d8] sm:$0xff]
    %v2301 = vld [vmem:[#allocation2 + $0x2e0] sm:$0xff]
    %v2302 = vld [vmem:[#allocation2 + $0x2e8] sm:$0xff]
    %v2303 = vld [vmem:[#allocation2 + $0x2f0] sm:$0xff]
    %v2304 = vld [vmem:[#allocation2 + $0x2f8] sm:$0xff]
    %v2305 = vld [vmem:[#allocation2 + $0x300] sm:$0xff]
    %v2306 = vld [vmem:[#allocation2 + $0x308] sm:$0xff]
    %v2307 = vld [vmem:[#allocation2 + $0x310] sm:$0xff]
    %v2308 = vld [vmem:[#allocation2 + $0x318] sm:$0xff]
    %v2309 = vld [vmem:[#allocation2 + $0x320] sm:$0xff]
    %v2310 = vld [vmem:[#allocation2 + $0x328] sm:$0xff]
    %v2311 = vld [vmem:[#allocation2 + $0x330] sm:$0xff]
    %v2312 = vld [vmem:[#allocation2 + $0x338] sm:$0xff]
    %v2313 = vld [vmem:[#allocation2 + $0x340] sm:$0xff]
    %v2314 = vld [vmem:[#allocation2 + $0x348] sm:$0xff]
    %v2315 = vld [vmem:[#allocation2 + $0x350] sm:$0xff]
    %v2316 = vld [vmem:[#allocation2 + $0x358] sm:$0xff]
    %v2317 = vld [vmem:[#allocation2 + $0x360] sm:$0xff]
    %v2318 = vld [vmem:[#allocation2 + $0x368] sm:$0xff]
    %v2319 = vld [vmem:[#allocation2 + $0x370] sm:$0xff]
    %v2320 = vld [vmem:[#allocation2 + $0x378] sm:$0xff]
    %v2321 = vld [vmem:[#allocation2 + $0x380] sm:$0xff]
    %v2322 = vld [vmem:[#allocation2 + $0x388] sm:$0xff]
    %v2323 = vld [vmem:[#allocation2 + $0x390] sm:$0xff]
    %v2324 = vld [vmem:[#allocation2 + $0x398] sm:$0xff]
    %v2325 = vld [vmem:[#allocation2 + $0x3a0] sm:$0xff]
    %v2326 = vld [vmem:[#allocation2 + $0x3a8] sm:$0xff]
    %v2327 = vld [vmem:[#allocation2 + $0x3b0] sm:$0xff]
    %v2328 = vld [vmem:[#allocation2 + $0x3b8] sm:$0xff]
    %v2329 = vld [vmem:[#allocation2 + $0x3c0] sm:$0xff]
    %v2330 = vld [vmem:[#allocation2 + $0x3c8] sm:$0xff]
    %v2331 = vld [vmem:[#allocation2 + $0x3d0] sm:$0xff]
    %v2332 = vld [vmem:[#allocation2 + $0x3d8] sm:$0xff]
    %v2333 = vld [vmem:[#allocation2 + $0x3e0] sm:$0xff]
    %v2334 = vld [vmem:[#allocation2 + $0x3e8] sm:$0xff]
    %v2335 = vld [vmem:[#allocation2 + $0x3f0] sm:$0xff]
    %v2336 = vld [vmem:[#allocation2 + $0x3f8] sm:$0xff]
    %v2337 = vld [vmem:[#allocation2 + $0x400] sm:$0xff]
    %v2338 = vld [vmem:[#allocation2 + $0x408] sm:$0xff]
    %v2339 = vld [vmem:[#allocation2 + $0x410] sm:$0xff]
    %v2340 = vld [vmem:[#allocation2 + $0x418] sm:$0xff]
    %v2341 = vld [vmem:[#allocation2 + $0x420] sm:$0xff]
    %v2342 = vld [vmem:[#allocation2 + $0x428] sm:$0xff]
    %v2343 = vld [vmem:[#allocation2 + $0x430] sm:$0xff]
    %v2344 = vld [vmem:[#allocation2 + $0x438] sm:$0xff]
    %v2345 = vld [vmem:[#allocation2 + $0x440] sm:$0xff]
    %v2346 = vld [vmem:[#allocation2 + $0x448] sm:$0xff]
    %v2347 = vld [vmem:[#allocation2 + $0x450] sm:$0xff]
    %v2348 = vld [vmem:[#allocation2 + $0x458] sm:$0xff]
    %v2349 = vld [vmem:[#allocation2 + $0x460] sm:$0xff]
    %v2350 = vld [vmem:[#allocation2 + $0x468] sm:$0xff]
    %v2351 = vld [vmem:[#allocation2 + $0x470] sm:$0xff]
    %v2352 = vld [vmem:[#allocation2 + $0x478] sm:$0xff]
    %v2353 = vld [vmem:[#allocation2 + $0x480] sm:$0xff]
    %v2354 = vld [vmem:[#allocation2 + $0x488] sm:$0xff]
    %v2355 = vld [vmem:[#allocation2 + $0x490] sm:$0xff]
    %v2356 = vld [vmem:[#allocation2 + $0x498] sm:$0xff]
    %v2357 = vld [vmem:[#allocation2 + $0x4a0] sm:$0xff]
    %v2358 = vld [vmem:[#allocation2 + $0x4a8] sm:$0xff]
    %v2359 = vld [vmem:[#allocation2 + $0x4b0] sm:$0xff]
    %v2360 = vld [vmem:[#allocation2 + $0x4b8] sm:$0xff]
    %v2361 = vld [vmem:[#allocation2 + $0x4c0] sm:$0xff]
    %v2362 = vld [vmem:[#allocation2 + $0x4c8] sm:$0xff]
    %v2363 = vld [vmem:[#allocation2 + $0x4d0] sm:$0xff]
    %v2364 = vld [vmem:[#allocation2 + $0x4d8] sm:$0xff]
    %v2365 = vld [vmem:[#allocation2 + $0x4e0] sm:$0xff]
    %v2366 = vld [vmem:[#allocation2 + $0x4e8] sm:$0xff]
    %v2367 = vld [vmem:[#allocation2 + $0x4f0] sm:$0xff]
    %v2368 = vld [vmem:[#allocation2 + $0x4f8] sm:$0xff]
    %v2369 = vld [vmem:[#allocation2 + $0x500] sm:$0xff]
    %v2370 = vld [vmem:[#allocation2 + $0x508] sm:$0xff]
    %v2371 = vld [vmem:[#allocation2 + $0x510] sm:$0xff]
    %v2372 = vld [vmem:[#allocation2 + $0x518] sm:$0xff]
    %v2373 = vld [vmem:[#allocation2 + $0x520] sm:$0xff]
    %v2374 = vld [vmem:[#allocation2 + $0x528] sm:$0xff]
    %v2375 = vld [vmem:[#allocation2 + $0x530] sm:$0xff]
    %v2376 = vld [vmem:[#allocation2 + $0x538] sm:$0xff]
    %v2377 = vld [vmem:[#allocation2 + $0x540] sm:$0xff]
    %v2378 = vld [vmem:[#allocation2 + $0x548] sm:$0xff]
    %v2379 = vld [vmem:[#allocation2 + $0x550] sm:$0xff]
    %v2380 = vld [vmem:[#allocation2 + $0x558] sm:$0xff]
    %v2381 = vld [vmem:[#allocation2 + $0x560] sm:$0xff]
    %v2382 = vld [vmem:[#allocation2 + $0x568] sm:$0xff]
    %v2383 = vld [vmem:[#allocation2 + $0x570] sm:$0xff]
    %v2384 = vld [vmem:[#allocation2 + $0x578] sm:$0xff]
    %v2385 = vld [vmem:[#allocation2 + $0x580] sm:$0xff]
    %v2386 = vld [vmem:[#allocation2 + $0x588] sm:$0xff]
    %v2387 = vld [vmem:[#allocation2 + $0x590] sm:$0xff]
    %v2388 = vld [vmem:[#allocation2 + $0x598] sm:$0xff]
    %s2389 = scalar_lea.vmem [#allocation6], 1
    %v2390 = vld [vmem:[%s2389] ss:$8 sm:$0x3]
    %v2392 = vlaneseq
    %v2393 = vshrl.u32 %v2392, 7
    %v2394 = vsub.s32 0, %v2393
    %v2395 = vrot.slane %v2390, %v2394
    %v2396 = vlaneseq
    %v2397 = vshrl.u32 %v2396, 7
    %v2398 = vsub.s32 1, %v2397
    %v2399 = vrot.slane %v2390, %v2398
    %2402 = vmatprep.subr.bf16.mxu0 %v2262
    %2403 = vmatpush1.bf16.msra.mxu0 %v2261
    %2404 = vmatprep.subr.bf16.mxu0 %v2264
    %2405 = vmatpush1.bf16.msra.mxu0 %v2263
    %2406 = vmatprep.subr.bf16.mxu0 %v2266
    %2407 = vmatpush1.bf16.msra.mxu0 %v2265
    %2408 = vmatprep.subr.bf16.mxu0 %v2268
    %2409 = vmatpush1.bf16.msra.mxu0 %v2267
    %2410 = vmatprep.subr.bf16.mxu0 %v2270
    %2411 = vmatpush1.bf16.msra.mxu0 %v2269
    %2412 = vmatprep.subr.bf16.mxu0 %v2272
    %2413 = vmatpush1.bf16.msra.mxu0 %v2271
    %2414 = vmatprep.subr.bf16.mxu0 %v2274
    %2415 = vmatpush1.bf16.msra.mxu0 %v2273
    %2416 = vmatprep.subr.bf16.mxu0 %v2276
    %2417 = vmatpush1.bf16.msra.mxu0 %v2275
    %2418 = vmatprep.subr.bf16.mxu0 %v2278
    %2419 = vmatpush1.bf16.msra.mxu0 %v2277
    %2420 = vmatprep.subr.bf16.mxu0 %v2280
    %2421 = vmatpush1.bf16.msra.mxu0 %v2279
    %2422 = vmatprep.subr.bf16.mxu0 %v2282
    %2423 = vmatpush1.bf16.msra.mxu0 %v2281
    %2424 = vmatprep.subr.bf16.mxu0 %v2284
    %2425 = vmatpush1.bf16.msra.mxu0 %v2283
    %2426 = vmatprep.subr.bf16.mxu0 %v2286
    %2427 = vmatpush1.bf16.msra.mxu0 %v2285
    %2428 = vmatprep.subr.bf16.mxu0 %v2288
    %2429 = vmatpush1.bf16.msra.mxu0 %v2287
    %2430 = vmatprep.subr.bf16.mxu0 %v2290
    %2431 = vmatpush1.bf16.msra.mxu0 %v2289
    %2432 = vmatprep.subr.bf16.mxu0 %v2292
    %2433 = vmatpush1.bf16.msra.mxu0 %v2291
    %2434 = vmatprep.mubr.bf16.mxu0 %v2254
    %2435 = vmatmul.mubr.bf16.gmra.mrb[0].mxu0 %v2253
    %v2436 = vpop.f32.mrb[0].mxu0
    %v2437 = vadd.f32 %v2395, %v2436
    %v2438 = vpop.f32.mrb[0].mxu0
    %v2439 = vadd.f32 %v2399, %v2438
    %v2440 = vpop.f32.mrb[0].mxu0
    %v2441 = vpop.f32.mrb[0].mxu0
    %2442 = vdwg.mxu0
    %2443 = vmatprep.subr.bf16.mxu0 %v2294
    %2444 = vmatpush1.bf16.msra.mxu0 %v2293
    %2445 = vmatprep.subr.bf16.mxu0 %v2296
    %2446 = vmatpush1.bf16.msra.mxu0 %v2295
    %2447 = vmatprep.subr.bf16.mxu0 %v2298
    %2448 = vmatpush1.bf16.msra.mxu0 %v2297
    %2449 = vmatprep.subr.bf16.mxu0 %v2300
    %2450 = vmatpush1.bf16.msra.mxu0 %v2299
    %2451 = vmatprep.subr.bf16.mxu0 %v2302
    %2452 = vmatpush1.bf16.msra.mxu0 %v2301
    %2453 = vmatprep.subr.bf16.mxu0 %v2304
    %2454 = vmatpush1.bf16.msra.mxu0 %v2303
    %2455 = vmatprep.subr.bf16.mxu0 %v2306
    %2456 = vmatpush1.bf16.msra.mxu0 %v2305
    %2457 = vmatprep.subr.bf16.mxu0 %v2308
    %2458 = vmatpush1.bf16.msra.mxu0 %v2307
    %2459 = vmatprep.subr.bf16.mxu0 %v2310
    %2460 = vmatpush1.bf16.msra.mxu0 %v2309
    %2461 = vmatprep.subr.bf16.mxu0 %v2312
    %2462 = vmatpush1.bf16.msra.mxu0 %v2311
    %2463 = vmatprep.subr.bf16.mxu0 %v2314
    %2464 = vmatpush1.bf16.msra.mxu0 %v2313
    %2465 = vmatprep.subr.bf16.mxu0 %v2316
    %2466 = vmatpush1.bf16.msra.mxu0 %v2315
    %2467 = vmatprep.subr.bf16.mxu0 %v2318
    %2468 = vmatpush1.bf16.msra.mxu0 %v2317
    %2469 = vmatprep.subr.bf16.mxu0 %v2320
    %2470 = vmatpush1.bf16.msra.mxu0 %v2319
    %2471 = vmatprep.subr.bf16.mxu0 %v2322
    %2472 = vmatpush1.bf16.msra.mxu0 %v2321
    %2473 = vmatprep.subr.bf16.mxu0 %v2324
    %2474 = vmatpush1.bf16.msra.mxu0 %v2323
    %2475 = vmatprep.mubr.bf16.mxu0 %v2256
    %2476 = vmatmul.mubr.bf16.gmra.mrb[0].mxu0 %v2255
    %v2477 = vpop.f32.mrb[0].mxu0
    %v2478 = vadd.f32 %v2437, %v2477
    %v2479 = vpop.f32.mrb[0].mxu0
    %v2480 = vadd.f32 %v2439, %v2479
    %v2481 = vpop.f32.mrb[0].mxu0
    %v2482 = vpop.f32.mrb[0].mxu0
    %2483 = vdwg.mxu0
    %2484 = vmatprep.subr.bf16.mxu0 %v2326
    %2485 = vmatpush1.bf16.msra.mxu0 %v2325
    %2486 = vmatprep.subr.bf16.mxu0 %v2328
    %2487 = vmatpush1.bf16.msra.mxu0 %v2327
    %2488 = vmatprep.subr.bf16.mxu0 %v2330
    %2489 = vmatpush1.bf16.msra.mxu0 %v2329
    %2490 = vmatprep.subr.bf16.mxu0 %v2332
    %2491 = vmatpush1.bf16.msra.mxu0 %v2331
    %2492 = vmatprep.subr.bf16.mxu0 %v2334
    %2493 = vmatpush1.bf16.msra.mxu0 %v2333
    %2494 = vmatprep.subr.bf16.mxu0 %v2336
    %2495 = vmatpush1.bf16.msra.mxu0 %v2335
    %2496 = vmatprep.subr.bf16.mxu0 %v2338
    %2497 = vmatpush1.bf16.msra.mxu0 %v2337
    %2498 = vmatprep.subr.bf16.mxu0 %v2340
    %2499 = vmatpush1.bf16.msra.mxu0 %v2339
    %2500 = vmatprep.subr.bf16.mxu0 %v2342
    %2501 = vmatpush1.bf16.msra.mxu0 %v2341
    %2502 = vmatprep.subr.bf16.mxu0 %v2344
    %2503 = vmatpush1.bf16.msra.mxu0 %v2343
    %2504 = vmatprep.subr.bf16.mxu0 %v2346
    %2505 = vmatpush1.bf16.msra.mxu0 %v2345
    %2506 = vmatprep.subr.bf16.mxu0 %v2348
    %2507 = vmatpush1.bf16.msra.mxu0 %v2347
    %2508 = vmatprep.subr.bf16.mxu0 %v2350
    %2509 = vmatpush1.bf16.msra.mxu0 %v2349
    %2510 = vmatprep.subr.bf16.mxu0 %v2352
    %2511 = vmatpush1.bf16.msra.mxu0 %v2351
    %2512 = vmatprep.subr.bf16.mxu0 %v2354
    %2513 = vmatpush1.bf16.msra.mxu0 %v2353
    %2514 = vmatprep.subr.bf16.mxu0 %v2356
    %2515 = vmatpush1.bf16.msra.mxu0 %v2355
    %2516 = vmatprep.mubr.bf16.mxu0 %v2258
    %2517 = vmatmul.mubr.bf16.gmra.mrb[0].mxu0 %v2257
    %v2518 = vpop.f32.mrb[0].mxu0
    %v2519 = vadd.f32 %v2478, %v2518
    %v2520 = vpop.f32.mrb[0].mxu0
    %v2521 = vadd.f32 %v2480, %v2520
    %v2522 = vpop.f32.mrb[0].mxu0
    %v2523 = vpop.f32.mrb[0].mxu0
    %2524 = vdwg.mxu0
    %2525 = vmatprep.subr.bf16.mxu0 %v2358
    %2526 = vmatpush1.bf16.msra.mxu0 %v2357
    %2527 = vmatprep.subr.bf16.mxu0 %v2360
    %2528 = vmatpush1.bf16.msra.mxu0 %v2359
    %2529 = vmatprep.subr.bf16.mxu0 %v2362
    %2530 = vmatpush1.bf16.msra.mxu0 %v2361
    %2531 = vmatprep.subr.bf16.mxu0 %v2364
    %2532 = vmatpush1.bf16.msra.mxu0 %v2363
    %2533 = vmatprep.subr.bf16.mxu0 %v2366
    %2534 = vmatpush1.bf16.msra.mxu0 %v2365
    %2535 = vmatprep.subr.bf16.mxu0 %v2368
    %2536 = vmatpush1.bf16.msra.mxu0 %v2367
    %2537 = vmatprep.subr.bf16.mxu0 %v2370
    %2538 = vmatpush1.bf16.msra.mxu0 %v2369
    %2539 = vmatprep.subr.bf16.mxu0 %v2372
    %2540 = vmatpush1.bf16.msra.mxu0 %v2371
    %2541 = vmatprep.subr.bf16.mxu0 %v2374
    %2542 = vmatpush1.bf16.msra.mxu0 %v2373
    %2543 = vmatprep.subr.bf16.mxu0 %v2376
    %2544 = vmatpush1.bf16.msra.mxu0 %v2375
    %2545 = vmatprep.subr.bf16.mxu0 %v2378
    %2546 = vmatpush1.bf16.msra.mxu0 %v2377
    %2547 = vmatprep.subr.bf16.mxu0 %v2380
    %2548 = vmatpush1.bf16.msra.mxu0 %v2379
    %2549 = vmatprep.subr.bf16.mxu0 %v2382
    %2550 = vmatpush1.bf16.msra.mxu0 %v2381
    %2551 = vmatprep.subr.bf16.mxu0 %v2384
    %2552 = vmatpush1.bf16.msra.mxu0 %v2383
    %2553 = vmatprep.subr.bf16.mxu0 %v2386
    %2554 = vmatpush1.bf16.msra.mxu0 %v2385
    %2555 = vmatprep.subr.bf16.mxu0 %v2388
    %2556 = vmatpush1.bf16.msra.mxu0 %v2387
    %2557 = vmatprep.mubr.bf16.mxu0 %v2260
    %2558 = vmatmul.mubr.bf16.gmra.mrb[0].mxu0 %v2259
    %v2559 = vpop.f32.mrb[0].mxu0
    %v2560 = vadd.f32 %v2519, %v2559
    %v2561 = vpop.f32.mrb[0].mxu0
    %v2562 = vadd.f32 %v2521, %v2561
    %v2563 = vpop.f32.mrb[0].mxu0
    %v2564 = vpop.f32.mrb[0].mxu0
    %2565 = vdwg.mxu0
    %v2566 = vtanh.pop %v2560
    %v2567 = vtanh.pop %v2562
    %2568 = vst [vmem:[%s5] sm:$0xff] %v2566
    %2569 = vst [vmem:[%s5 + $0x8] sm:$0xff] %v2567
    // Predicated region
    $region14: #{generator_forward.1} parent=1 // pred_check
      _
    $region15: #{generator_forward.1} parent=1 // pred_check_branch
      %2571 = sbr.rel (0) target = $region17
    $region16: #{generator_forward.1} parent=1 // pred_region
      _
    $region17: #{generator_forward.1} parent=1 // pred_fallthru
      _
    // Predicated region
    $region18: #{generator_forward.1} parent=1 // pred_check
      _
    $region19: #{generator_forward.1} parent=1 // pred_check_branch
      %2573 = sbr.rel (0) target = $region21
    $region20: #{generator_forward.1} parent=1 // pred_region
      _
    $region21: #{generator_forward.1} parent=1 // pred_fallthru
      _
    %2574 = vsyncpa [#allocation7], 1
  %2575 = vsyncmov [#allocation5]
  %s2576 = vpop.sfrf %2575
  %p2577 = scmp.eq.s32.totalorder %s2576, 0
  %p2578 = pneg %p2577
  %2580 = shalt.err (%p2578)
  %s2581 = scalar_lea.sflag [#allocation5], 1
  %2582 = vsyncmov %s2581
  %s2583 = vpop.sfrf %2582
  %p2584 = scmp.eq.s32.totalorder %s2583, 0
  %p2585 = pneg %p2584
  %2587 = shalt.err (%p2585)
  %s2588 = scalar_lea.sflag [#allocation5], 2
  %2589 = vsyncmov %s2588
  %s2590 = vpop.sfrf %2589
  %p2591 = scmp.eq.s32.totalorder %s2590, 0
  %p2592 = pneg %p2591
  %2594 = shalt.err (%p2592)

</llo_original>
